<compile_context>
chip_gen: v7x
topology: tpu7x:2x2x1
jax: 0.10.0
libtpu: 0.0.40
codegen_flags: <defaults>
</compile_context>

<pallas_src>
import math
import jax
import jax.numpy as jnp
from jax.experimental import pallas as pl
from jax.experimental.pallas import tpu as pltpu

# ----------------------------- configuration --------------------------------
NUM_NODE = 64      # num_node
CHANNELS = 32      # channels
N_HEAD = 4         # n_head
D_HEAD = CHANNELS // N_HEAD

# V (vector pack, (13, C)) rows:
#  0: node_norm.gamma    1: node_norm.beta
#  2: node_ffn.ln.gamma  3: node_ffn.ln.beta   4: node_ffn.b1   5: node_ffn.b2
#  6: patch_norm.gamma   7: patch_norm.beta
#  8: patch_ffn.ln.gamma 9: patch_ffn.ln.beta 10: patch_ffn.b1 11: patch_ffn.b2
# 12: fuse_lin.bias
#
# Wm (matrix pack, (8*C, C)) row-blocks of size C:
#  0: node fc (w_o)   1: node_ffn lin1   2: node_ffn lin2
#  3: W_patch = patch_wv @ patch_wo + I   (exact seq-len-1 MHA collapse)
#  4: patch_ffn lin1  5: patch_ffn lin2
#  6: fuse_lin W[:C]  7: fuse_lin W[C:]
#
# wqkv: (C, 3C) = [w_q * (1/sqrt(d)) | w_k | w_v] for the node transformer.


# ------------------------------ Pallas kernel --------------------------------
def bga_kernel(x_ref, wqkv_ref, wm_ref, v_ref, o_ref):
    x = x_ref[...]                      # (N, C) float32 (batch dim squeezed)
    N = x.shape[0]
    C = x.shape[-1]
    H = N_HEAD
    d = C // H

    def W(i):                           # (C, C) matrix from flattened pack
        return wm_ref[i * C:(i + 1) * C, :]

    def vrow(i):                        # (1, C) vector row
        return v_ref[i:i + 1, :]

    col = jax.lax.broadcasted_iota(jnp.int32, (1, C), 1)   # lane / channel id
    masks = [((col >= h * d) & (col < (h + 1) * d)).astype(jnp.float32)
             for h in range(H)]

    def layer_norm(z, g, b, eps):
        mu = jnp.mean(z, axis=-1, keepdims=True)
        var = jnp.mean(jnp.square(z - mu), axis=-1, keepdims=True)
        return (z - mu) * jax.lax.rsqrt(var + eps) * g + b

    def ffn(z, g, b, w1, b1, w2, b2):
        r = z
        h1 = layer_norm(z, g, b, 1e-6)
        h1 = jnp.maximum(
            jnp.dot(h1, w1, preferred_element_type=jnp.float32) + b1, 0.0)
        return jnp.dot(h1, w2, preferred_element_type=jnp.float32) + b2 + r

    # ---- node branch -------------------------------------------------------
    xn = layer_norm(x, vrow(0), vrow(1), 1e-5)                      # node_norm

    # Fused QKV projection (1/sqrt(d) already folded into the Q columns).
    qkv = jnp.dot(xn, wqkv_ref[...], preferred_element_type=jnp.float32)
    q = qkv[:, 0:C]
    k = qkv[:, C:2 * C]
    v = qkv[:, 2 * C:3 * C]

    # All-head scores in ONE NT matmul: stack per-head lane-masked Q on the
    # sublane axis (8-aligned, cheap concat) -> (H*N, C), contract against K's
    # channel axis.  Row h*N+i of s is head h's score row for query i.
    q_st = jnp.concatenate([q * masks[h] for h in range(H)], axis=0)  # (H*N, C)
    s = jax.lax.dot_general(q_st, k, (((1,), (1,)), ((), ())),
                            preferred_element_type=jnp.float32)       # (H*N, N)

    # Single softmax pass over all H*N rows (1 max, 1 exp, 1 sum, 1 recip).
    s = s - jnp.max(s, axis=-1, keepdims=True)
    e = jnp.exp(s)
    inv = pl.reciprocal(jnp.sum(e, axis=-1, keepdims=True), approx=False)
    a = e * inv                                                        # (H*N, N)

    # Per-head output matmuls accumulate lane-aligned into one (N, C) buffer
    # (a @ (v*m_h) is nonzero only in head h's lanes -> no slices / concat).
    o = jnp.dot(a[0:N, :], v * masks[0], preferred_element_type=jnp.float32)
    for h in range(1, H):
        o = o + jnp.dot(a[h * N:(h + 1) * N, :], v * masks[h],
                        preferred_element_type=jnp.float32)

    node = jnp.dot(o, W(0), preferred_element_type=jnp.float32) + xn
    node = ffn(node, vrow(2), vrow(3), W(1), vrow(4), W(2), vrow(5))  # node_ffn

    # ---- patch branch (sequence length 1) ----------------------------------
    pm = jnp.mean(node, axis=0, keepdims=True)                        # (1, C)
    p = layer_norm(pm, vrow(6), vrow(7), 1e-5)                        # patch_norm
    # Seq-len-1 self-attention collapses exactly to p @ (Wv@Wo + I); the
    # product (+ identity for the residual) is precomputed at pack time.
    p = jnp.dot(p, W(3), preferred_element_type=jnp.float32)
    p = ffn(p, vrow(8), vrow(9), W(4), vrow(10), W(5), vrow(11))      # patch_ffn

    # ---- fuse: relu(cat([node, p.broadcast], -1) @ Wf + bf) + node ---------
    fused = (jnp.dot(node, W(6), preferred_element_type=jnp.float32)
             + jnp.dot(p, W(7), preferred_element_type=jnp.float32)
             + vrow(12))
    o_ref[...] = jnp.maximum(fused, 0.0) + node


def bga_layer_batched(x, wqkv, Wm, V):
    """x: (B, N, C) -- B independent partitions/graphs, one grid step each."""
    B, N, C = x.shape
    return pl.pallas_call(
        bga_kernel,
        out_shape=jax.ShapeDtypeStruct((B, N, C), jnp.float32),
        grid=(B,),
        in_specs=[
            pl.BlockSpec((None, N, C), lambda b: (b, 0, 0)),   # x (batch squeezed)
            pl.BlockSpec(wqkv.shape, lambda b: (0, 0)),         # shared weights
            pl.BlockSpec(Wm.shape, lambda b: (0, 0)),
            pl.BlockSpec(V.shape, lambda b: (0, 0)),
        ],
        out_specs=pl.BlockSpec((None, N, C), lambda b: (b, 0, 0)),
        compiler_params=pltpu.CompilerParams(
            dimension_semantics=("parallel",)),                 # megacore on v7x
    )(x, wqkv, Wm, V)


def bga_layer(x, wqkv, Wm, V):
    """Single-graph convenience wrapper matching the PyTorch forward."""
    return bga_layer_batched(x[None], wqkv, Wm, V)[0]


# ------------------------- pure-JAX reference --------------------------------
# Faithful to the PyTorch module math (separate q/k/v, per-head softmax, full
# patch MHA) so the assert also validates the kernel's algebraic rewrites.
def bga_reference(x, p):
    C = x.shape[-1]
    H = N_HEAD
    d = C // H

    def ln(z, g, b, eps):
        mu = jnp.mean(z, axis=-1, keepdims=True)
        var = jnp.mean(jnp.square(z - mu), axis=-1, keepdims=True)
        return (z - mu) / jnp.sqrt(var + eps) * g + b

    def mha(z, wq, wk, wv, wo):
        N = z.shape[0]
        q = (z @ wq).reshape(N, H, d).transpose(1, 0, 2)
        k = (z @ wk).reshape(N, H, d).transpose(1, 0, 2)
        v = (z @ wv).reshape(N, H, d).transpose(1, 0, 2)
        attn = jax.nn.softmax(
            jnp.einsum('hnd,hmd->hnm', q / math.sqrt(float(d)), k), axis=-1)
        o = jnp.einsum('hnm,hmd->hnd', attn, v).transpose(1, 0, 2).reshape(N, C)
        return o @ wo + z

    def ffn(z, g, b, w1, b1, w2, b2):
        r = z
        h1 = ln(z, g, b, 1e-6)
        h1 = jax.nn.relu(h1 @ w1 + b1)
        return h1 @ w2 + b2 + r

    xn = ln(x, p['node_norm_g'], p['node_norm_b'], 1e-5)
    node = mha(xn, p['node_wq'], p['node_wk'], p['node_wv'], p['node_wo'])
    node = ffn(node, p['node_ffn_ln_g'], p['node_ffn_ln_b'],
               p['node_ffn_w1'], p['node_ffn_b1'],
               p['node_ffn_w2'], p['node_ffn_b2'])

    pm = jnp.mean(node, axis=0, keepdims=True)
    pp = ln(pm, p['patch_norm_g'], p['patch_norm_b'], 1e-5)
    pp = mha(pp, p['patch_wq'], p['patch_wk'], p['patch_wv'], p['patch_wo'])
    pp = ffn(pp, p['patch_ffn_ln_g'], p['patch_ffn_ln_b'],
             p['patch_ffn_w1'], p['patch_ffn_b1'],
             p['patch_ffn_w2'], p['patch_ffn_b2'])

    z = jnp.concatenate([node, jnp.broadcast_to(pp, node.shape)], axis=-1)
    return jax.nn.relu(z @ p['fuse_w'] + p['fuse_b']) + node


# ------------------------------ param init -----------------------------------
def init_params(key, C):
    keys = jax.random.split(key, 26)

    def kaiming(k, fan_in, shape):
        bound = math.sqrt(6.0 / fan_in)
        return jax.random.uniform(k, shape, jnp.float32, -bound, bound)

    def vec(k, scale=0.1):
        return scale * jax.random.normal(k, (C,), jnp.float32)

    mats = ['node_wq', 'node_wk', 'node_wv', 'node_wo',
            'node_ffn_w1', 'node_ffn_w2',
            'patch_wq', 'patch_wk', 'patch_wv', 'patch_wo',
            'patch_ffn_w1', 'patch_ffn_w2']
    p = {n: kaiming(keys[i], C, (C, C)) for i, n in enumerate(mats)}
    p['fuse_w'] = kaiming(keys[12], 2 * C, (2 * C, C))

    # Randomized LN gammas/betas and biases -> stronger numerical check.
    p['node_norm_g'] = 1.0 + vec(keys[13]); p['node_norm_b'] = vec(keys[14])
    p['node_ffn_ln_g'] = 1.0 + vec(keys[15]); p['node_ffn_ln_b'] = vec(keys[16])
    p['node_ffn_b1'] = vec(keys[17]); p['node_ffn_b2'] = vec(keys[18])
    p['patch_norm_g'] = 1.0 + vec(keys[19]); p['patch_norm_b'] = vec(keys[20])
    p['patch_ffn_ln_g'] = 1.0 + vec(keys[21]); p['patch_ffn_ln_b'] = vec(keys[22])
    p['patch_ffn_b1'] = vec(keys[23]); p['patch_ffn_b2'] = vec(keys[24])
    p['fuse_b'] = vec(keys[25])
    return p


def pack_params(p, C):
    inv_temp = 1.0 / math.sqrt(float(C // N_HEAD))
    # Fused QKV with 1/sqrt(d) folded into the Q columns.
    wqkv = jnp.concatenate(
        [p['node_wq'] * inv_temp, p['node_wk'], p['node_wv']], axis=1)  # (C, 3C)
    # Exact collapse of the seq-len-1 patch MHA (softmax over (1,1) score == 1):
    # p_new = p @ Wv @ Wo + p = p @ (Wv @ Wo + I).
    w_patch = p['patch_wv'] @ p['patch_wo'] + jnp.eye(C, dtype=jnp.float32)
    Wm = jnp.concatenate([
        p['node_wo'], p['node_ffn_w1'], p['node_ffn_w2'],
        w_patch,
        p['patch_ffn_w1'], p['patch_ffn_w2'],
        p['fuse_w'][:C, :], p['fuse_w'][C:, :],
    ], axis=0)                                                          # (8C, C)
    vec_names = ['node_norm_g', 'node_norm_b',
                 'node_ffn_ln_g', 'node_ffn_ln_b', 'node_ffn_b1', 'node_ffn_b2',
                 'patch_norm_g', 'patch_norm_b',
                 'patch_ffn_ln_g', 'patch_ffn_ln_b', 'patch_ffn_b1', 'patch_ffn_b2',
                 'fuse_b']
    V = jnp.stack([p[n] for n in vec_names], axis=0)                    # (13, C)
    return wqkv, Wm, V


# ---------------------------------- main --------------------------------------
if __name__ == "__main__":
    key = jax.random.PRNGKey(0)
    kx, kp = jax.random.split(key)
    B = 4                                            # independent partitions
    x = jax.random.normal(kx, (B, NUM_NODE, CHANNELS), jnp.float32)
    params = init_params(kp, CHANNELS)
    wqkv, Wm, V = pack_params(params, CHANNELS)

    out = jax.block_until_ready(bga_layer_batched(x, wqkv, Wm, V))
    assert out.shape == (B, NUM_NODE, CHANNELS)

    for b in range(B):
        ref = bga_reference(x[b], params)
        err = jnp.max(jnp.abs(out[b] - ref))
        assert jnp.allclose(out[b], ref, rtol=1e-4, atol=1e-4), (
            f"batch {b}: max abs err {err}")

    print("KERNEL_OK")
</pallas_src>

<mosaic_0001>
module attributes {stable_mosaic.version = 11 : i64} {
  func.func @bga_kernel(%arg0: i32, %arg1: memref<1x64x32xf32, #tpu.memory_space<vmem>>, %arg2: memref<32x96xf32, #tpu.memory_space<vmem>>, %arg3: memref<256x32xf32, #tpu.memory_space<vmem>>, %arg4: memref<13x32xf32, #tpu.memory_space<vmem>>, %arg5: memref<1x64x32xf32, #tpu.memory_space<vmem>>) attributes {dimension_semantics = [#tpu.dimension_semantics<parallel>], iteration_bounds = array<i64: 4>, scalar_prefetch = 0 : i64, scratch_operands = 0 : i64, tpu.core_type = #tpu.core_type<tc>, window_params = [{transform_indices = @transform_0, window_bounds = array<i64: 1, 64, 32>}, {pipeline_mode = #tpu.pipeline_mode<synchronous>, transform_indices = @transform_1, window_bounds = array<i64: 32, 96>}, {pipeline_mode = #tpu.pipeline_mode<synchronous>, transform_indices = @transform_2, window_bounds = array<i64: 256, 32>}, {pipeline_mode = #tpu.pipeline_mode<synchronous>, transform_indices = @transform_3, window_bounds = array<i64: 13, 32>}, {transform_indices = @transform_4, window_bounds = array<i64: 1, 64, 32>}]} {
    %c0 = arith.constant 0 : index
    %c0_0 = arith.constant 0 : index
    %c0_1 = arith.constant 0 : index
    %0 = vector.load %arg1[%c0, %c0_0, %c0_1] : memref<1x64x32xf32, #tpu.memory_space<vmem>>, vector<1x64x32xf32>
    %1 = vector.shape_cast %0 : vector<1x64x32xf32> to vector<64x32xf32>
    %2 = tpu.iota {dimensions = array<i32: 1>} : vector<1x32xi32>
    %c0_i32 = arith.constant 0 : i32
    %3 = vector.broadcast %c0_i32 : i32 to vector<1x32xi32>
    %4 = arith.cmpi sge, %2, %3 : vector<1x32xi32>
    %c8_i32 = arith.constant 8 : i32
    %5 = vector.broadcast %c8_i32 : i32 to vector<1x32xi32>
    %6 = arith.cmpi slt, %2, %5 : vector<1x32xi32>
    %7 = arith.andi %4, %6 : vector<1x32xi1>
    %8 = arith.extui %7 : vector<1x32xi1> to vector<1x32xi32>
    %9 = arith.sitofp %8 : vector<1x32xi32> to vector<1x32xf32>
    %c8_i32_2 = arith.constant 8 : i32
    %10 = vector.broadcast %c8_i32_2 : i32 to vector<1x32xi32>
    %11 = arith.cmpi sge, %2, %10 : vector<1x32xi32>
    %c16_i32 = arith.constant 16 : i32
    %12 = vector.broadcast %c16_i32 : i32 to vector<1x32xi32>
    %13 = arith.cmpi slt, %2, %12 : vector<1x32xi32>
    %14 = arith.andi %11, %13 : vector<1x32xi1>
    %15 = arith.extui %14 : vector<1x32xi1> to vector<1x32xi32>
    %16 = arith.sitofp %15 : vector<1x32xi32> to vector<1x32xf32>
    %c16_i32_3 = arith.constant 16 : i32
    %17 = vector.broadcast %c16_i32_3 : i32 to vector<1x32xi32>
    %18 = arith.cmpi sge, %2, %17 : vector<1x32xi32>
    %c24_i32 = arith.constant 24 : i32
    %19 = vector.broadcast %c24_i32 : i32 to vector<1x32xi32>
    %20 = arith.cmpi slt, %2, %19 : vector<1x32xi32>
    %21 = arith.andi %18, %20 : vector<1x32xi1>
    %22 = arith.extui %21 : vector<1x32xi1> to vector<1x32xi32>
    %23 = arith.sitofp %22 : vector<1x32xi32> to vector<1x32xf32>
    %c24_i32_4 = arith.constant 24 : i32
    %24 = vector.broadcast %c24_i32_4 : i32 to vector<1x32xi32>
    %25 = arith.cmpi sge, %2, %24 : vector<1x32xi32>
    %c32_i32 = arith.constant 32 : i32
    %26 = vector.broadcast %c32_i32 : i32 to vector<1x32xi32>
    %27 = arith.cmpi slt, %2, %26 : vector<1x32xi32>
    %28 = arith.andi %25, %27 : vector<1x32xi1>
    %29 = arith.extui %28 : vector<1x32xi1> to vector<1x32xi32>
    %30 = arith.sitofp %29 : vector<1x32xi32> to vector<1x32xf32>
    %c0_5 = arith.constant 0 : index
    %c0_6 = arith.constant 0 : index
    %31 = vector.load %arg4[%c0_5, %c0_6] : memref<13x32xf32, #tpu.memory_space<vmem>>, vector<1x32xf32>
    %c1 = arith.constant 1 : index
    %c0_7 = arith.constant 0 : index
    %32 = vector.load %arg4[%c1, %c0_7] : memref<13x32xf32, #tpu.memory_space<vmem>>, vector<1x32xf32>
    %cst = arith.constant dense<0.000000e+00> : vector<64xf32>
    %33 = vector.multi_reduction <add>, %1, %cst [1] : vector<64x32xf32> to vector<64xf32>
    %34 = vector.shape_cast %33 : vector<64xf32> to vector<64x1xf32>
    %cst_8 = arith.constant 3.200000e+01 : f32
    %35 = vector.broadcast %cst_8 : f32 to vector<64x1xf32>
    %36 = arith.divf %34, %35 : vector<64x1xf32>
    %37 = vector.broadcast %36 : vector<64x1xf32> to vector<64x32xf32>
    %38 = arith.subf %1, %37 : vector<64x32xf32>
    %39 = arith.mulf %38, %38 : vector<64x32xf32>
    %cst_9 = arith.constant dense<0.000000e+00> : vector<64xf32>
    %40 = vector.multi_reduction <add>, %39, %cst_9 [1] : vector<64x32xf32> to vector<64xf32>
    %41 = vector.shape_cast %40 : vector<64xf32> to vector<64x1xf32>
    %cst_10 = arith.constant 3.200000e+01 : f32
    %42 = vector.broadcast %cst_10 : f32 to vector<64x1xf32>
    %43 = arith.divf %41, %42 : vector<64x1xf32>
    %44 = vector.broadcast %36 : vector<64x1xf32> to vector<64x32xf32>
    %45 = arith.subf %1, %44 : vector<64x32xf32>
    %cst_11 = arith.constant 9.99999974E-6 : f32
    %46 = vector.broadcast %cst_11 : f32 to vector<64x1xf32>
    %47 = arith.addf %43, %46 : vector<64x1xf32>
    %48 = math.rsqrt %47 : vector<64x1xf32>
    %49 = vector.broadcast %48 : vector<64x1xf32> to vector<64x32xf32>
    %50 = arith.mulf %45, %49 : vector<64x32xf32>
    %51 = vector.broadcast %31 : vector<1x32xf32> to vector<64x32xf32>
    %52 = arith.mulf %50, %51 : vector<64x32xf32>
    %53 = vector.broadcast %32 : vector<1x32xf32> to vector<64x32xf32>
    %54 = arith.addf %52, %53 : vector<64x32xf32>
    %c0_12 = arith.constant 0 : index
    %c0_13 = arith.constant 0 : index
    %55 = vector.load %arg2[%c0_12, %c0_13] : memref<32x96xf32, #tpu.memory_space<vmem>>, vector<32x96xf32>
    %cst_14 = arith.constant dense<0.000000e+00> : vector<64x96xf32>
    %56 = tpu.matmul %54, %55, %cst_14 {dimension_numbers = #tpu.dot_dimension_numbers<[1], [0], [0], [1], [0, 0, 1, 1], [], []>} : vector<64x32xf32>, vector<32x96xf32>, vector<64x96xf32> -> vector<64x96xf32>
    %57 = vector.extract_strided_slice %56 {offsets = [0, 0], sizes = [64, 32], strides = [1, 1]} : vector<64x96xf32> to vector<64x32xf32>
    %58 = vector.extract_strided_slice %56 {offsets = [0, 32], sizes = [64, 32], strides = [1, 1]} : vector<64x96xf32> to vector<64x32xf32>
    %59 = vector.extract_strided_slice %56 {offsets = [0, 64], sizes = [64, 32], strides = [1, 1]} : vector<64x96xf32> to vector<64x32xf32>
    %60 = vector.broadcast %9 : vector<1x32xf32> to vector<64x32xf32>
    %61 = arith.mulf %57, %60 : vector<64x32xf32>
    %62 = vector.broadcast %16 : vector<1x32xf32> to vector<64x32xf32>
    %63 = arith.mulf %57, %62 : vector<64x32xf32>
    %64 = vector.broadcast %23 : vector<1x32xf32> to vector<64x32xf32>
    %65 = arith.mulf %57, %64 : vector<64x32xf32>
    %66 = vector.broadcast %30 : vector<1x32xf32> to vector<64x32xf32>
    %67 = arith.mulf %57, %66 : vector<64x32xf32>
    %68 = tpu.concatenate %61, %63, %65, %67 in 0 : vector<64x32xf32>, vector<64x32xf32>, vector<64x32xf32>, vector<64x32xf32> -> vector<256x32xf32>
    %cst_15 = arith.constant dense<0.000000e+00> : vector<256x64xf32>
    %69 = tpu.matmul %68, %58, %cst_15 {dimension_numbers = #tpu.dot_dimension_numbers<[1], [1], [0], [0], [0, 0, 1, 0], [], []>} : vector<256x32xf32>, vector<64x32xf32>, vector<256x64xf32> -> vector<256x64xf32>
    %cst_16 = arith.constant dense<0xFF800000> : vector<256xf32>
    %70 = vector.multi_reduction <maximumf>, %69, %cst_16 [1] : vector<256x64xf32> to vector<256xf32>
    %71 = vector.shape_cast %70 : vector<256xf32> to vector<256x1xf32>
    %72 = vector.broadcast %71 : vector<256x1xf32> to vector<256x64xf32>
    %73 = arith.subf %69, %72 : vector<256x64xf32>
    %74 = math.exp %73 : vector<256x64xf32>
    %cst_17 = arith.constant dense<0.000000e+00> : vector<256xf32>
    %75 = vector.multi_reduction <add>, %74, %cst_17 [1] : vector<256x64xf32> to vector<256xf32>
    %76 = vector.shape_cast %75 : vector<256xf32> to vector<256x1xf32>
    %77 = tpu.reciprocal %76 : vector<256x1xf32> -> vector<256x1xf32>
    %78 = vector.broadcast %77 : vector<256x1xf32> to vector<256x64xf32>
    %79 = arith.mulf %74, %78 : vector<256x64xf32>
    %80 = vector.extract_strided_slice %79 {offsets = [0, 0], sizes = [64, 64], strides = [1, 1]} : vector<256x64xf32> to vector<64x64xf32>
    %81 = vector.broadcast %9 : vector<1x32xf32> to vector<64x32xf32>
    %82 = arith.mulf %59, %81 : vector<64x32xf32>
    %cst_18 = arith.constant dense<0.000000e+00> : vector<64x32xf32>
    %83 = tpu.matmul %80, %82, %cst_18 {dimension_numbers = #tpu.dot_dimension_numbers<[1], [0], [0], [1], [0, 0, 1, 1], [], []>} : vector<64x64xf32>, vector<64x32xf32>, vector<64x32xf32> -> vector<64x32xf32>
    %84 = vector.extract_strided_slice %79 {offsets = [64, 0], sizes = [64, 64], strides = [1, 1]} : vector<256x64xf32> to vector<64x64xf32>
    %85 = vector.broadcast %16 : vector<1x32xf32> to vector<64x32xf32>
    %86 = arith.mulf %59, %85 : vector<64x32xf32>
    %cst_19 = arith.constant dense<0.000000e+00> : vector<64x32xf32>
    %87 = tpu.matmul %84, %86, %cst_19 {dimension_numbers = #tpu.dot_dimension_numbers<[1], [0], [0], [1], [0, 0, 1, 1], [], []>} : vector<64x64xf32>, vector<64x32xf32>, vector<64x32xf32> -> vector<64x32xf32>
    %88 = arith.addf %83, %87 : vector<64x32xf32>
    %89 = vector.extract_strided_slice %79 {offsets = [128, 0], sizes = [64, 64], strides = [1, 1]} : vector<256x64xf32> to vector<64x64xf32>
    %90 = vector.broadcast %23 : vector<1x32xf32> to vector<64x32xf32>
    %91 = arith.mulf %59, %90 : vector<64x32xf32>
    %cst_20 = arith.constant dense<0.000000e+00> : vector<64x32xf32>
    %92 = tpu.matmul %89, %91, %cst_20 {dimension_numbers = #tpu.dot_dimension_numbers<[1], [0], [0], [1], [0, 0, 1, 1], [], []>} : vector<64x64xf32>, vector<64x32xf32>, vector<64x32xf32> -> vector<64x32xf32>
    %93 = arith.addf %88, %92 : vector<64x32xf32>
    %94 = vector.extract_strided_slice %79 {offsets = [192, 0], sizes = [64, 64], strides = [1, 1]} : vector<256x64xf32> to vector<64x64xf32>
    %95 = vector.broadcast %30 : vector<1x32xf32> to vector<64x32xf32>
    %96 = arith.mulf %59, %95 : vector<64x32xf32>
    %cst_21 = arith.constant dense<0.000000e+00> : vector<64x32xf32>
    %97 = tpu.matmul %94, %96, %cst_21 {dimension_numbers = #tpu.dot_dimension_numbers<[1], [0], [0], [1], [0, 0, 1, 1], [], []>} : vector<64x64xf32>, vector<64x32xf32>, vector<64x32xf32> -> vector<64x32xf32>
    %98 = arith.addf %93, %97 : vector<64x32xf32>
    %c0_22 = arith.constant 0 : index
    %c0_23 = arith.constant 0 : index
    %99 = vector.load %arg3[%c0_22, %c0_23] : memref<256x32xf32, #tpu.memory_space<vmem>>, vector<32x32xf32>
    %cst_24 = arith.constant dense<0.000000e+00> : vector<64x32xf32>
    %100 = tpu.matmul %98, %99, %cst_24 {dimension_numbers = #tpu.dot_dimension_numbers<[1], [0], [0], [1], [0, 0, 1, 1], [], []>} : vector<64x32xf32>, vector<32x32xf32>, vector<64x32xf32> -> vector<64x32xf32>
    %101 = arith.addf %100, %54 : vector<64x32xf32>
    %c2 = arith.constant 2 : index
    %c0_25 = arith.constant 0 : index
    %102 = vector.load %arg4[%c2, %c0_25] : memref<13x32xf32, #tpu.memory_space<vmem>>, vector<1x32xf32>
    %c3 = arith.constant 3 : index
    %c0_26 = arith.constant 0 : index
    %103 = vector.load %arg4[%c3, %c0_26] : memref<13x32xf32, #tpu.memory_space<vmem>>, vector<1x32xf32>
    %c32 = arith.constant 32 : index
    %c0_27 = arith.constant 0 : index
    %104 = vector.load %arg3[%c32, %c0_27] : memref<256x32xf32, #tpu.memory_space<vmem>>, vector<32x32xf32>
    %c4 = arith.constant 4 : index
    %c0_28 = arith.constant 0 : index
    %105 = vector.load %arg4[%c4, %c0_28] : memref<13x32xf32, #tpu.memory_space<vmem>>, vector<1x32xf32>
    %c64 = arith.constant 64 : index
    %c0_29 = arith.constant 0 : index
    %106 = vector.load %arg3[%c64, %c0_29] : memref<256x32xf32, #tpu.memory_space<vmem>>, vector<32x32xf32>
    %c5 = arith.constant 5 : index
    %c0_30 = arith.constant 0 : index
    %107 = vector.load %arg4[%c5, %c0_30] : memref<13x32xf32, #tpu.memory_space<vmem>>, vector<1x32xf32>
    %cst_31 = arith.constant dense<0.000000e+00> : vector<64xf32>
    %108 = vector.multi_reduction <add>, %101, %cst_31 [1] : vector<64x32xf32> to vector<64xf32>
    %109 = vector.shape_cast %108 : vector<64xf32> to vector<64x1xf32>
    %cst_32 = arith.constant 3.200000e+01 : f32
    %110 = vector.broadcast %cst_32 : f32 to vector<64x1xf32>
    %111 = arith.divf %109, %110 : vector<64x1xf32>
    %112 = vector.broadcast %111 : vector<64x1xf32> to vector<64x32xf32>
    %113 = arith.subf %101, %112 : vector<64x32xf32>
    %114 = arith.mulf %113, %113 : vector<64x32xf32>
    %cst_33 = arith.constant dense<0.000000e+00> : vector<64xf32>
    %115 = vector.multi_reduction <add>, %114, %cst_33 [1] : vector<64x32xf32> to vector<64xf32>
    %116 = vector.shape_cast %115 : vector<64xf32> to vector<64x1xf32>
    %cst_34 = arith.constant 3.200000e+01 : f32
    %117 = vector.broadcast %cst_34 : f32 to vector<64x1xf32>
    %118 = arith.divf %116, %117 : vector<64x1xf32>
    %119 = vector.broadcast %111 : vector<64x1xf32> to vector<64x32xf32>
    %120 = arith.subf %101, %119 : vector<64x32xf32>
    %cst_35 = arith.constant 9.99999997E-7 : f32
    %121 = vector.broadcast %cst_35 : f32 to vector<64x1xf32>
    %122 = arith.addf %118, %121 : vector<64x1xf32>
    %123 = math.rsqrt %122 : vector<64x1xf32>
    %124 = vector.broadcast %123 : vector<64x1xf32> to vector<64x32xf32>
    %125 = arith.mulf %120, %124 : vector<64x32xf32>
    %126 = vector.broadcast %102 : vector<1x32xf32> to vector<64x32xf32>
    %127 = arith.mulf %125, %126 : vector<64x32xf32>
    %128 = vector.broadcast %103 : vector<1x32xf32> to vector<64x32xf32>
    %129 = arith.addf %127, %128 : vector<64x32xf32>
    %cst_36 = arith.constant dense<0.000000e+00> : vector<64x32xf32>
    %130 = tpu.matmul %129, %104, %cst_36 {dimension_numbers = #tpu.dot_dimension_numbers<[1], [0], [0], [1], [0, 0, 1, 1], [], []>} : vector<64x32xf32>, vector<32x32xf32>, vector<64x32xf32> -> vector<64x32xf32>
    %131 = vector.broadcast %105 : vector<1x32xf32> to vector<64x32xf32>
    %132 = arith.addf %130, %131 : vector<64x32xf32>
    %cst_37 = arith.constant 0.000000e+00 : f32
    %133 = vector.broadcast %cst_37 : f32 to vector<64x32xf32>
    %134 = arith.maximumf %132, %133 : vector<64x32xf32>
    %cst_38 = arith.constant dense<0.000000e+00> : vector<64x32xf32>
    %135 = tpu.matmul %134, %106, %cst_38 {dimension_numbers = #tpu.dot_dimension_numbers<[1], [0], [0], [1], [0, 0, 1, 1], [], []>} : vector<64x32xf32>, vector<32x32xf32>, vector<64x32xf32> -> vector<64x32xf32>
    %136 = vector.broadcast %107 : vector<1x32xf32> to vector<64x32xf32>
    %137 = arith.addf %135, %136 : vector<64x32xf32>
    %138 = arith.addf %137, %101 : vector<64x32xf32>
    %cst_39 = arith.constant dense<0.000000e+00> : vector<32xf32>
    %139 = vector.multi_reduction <add>, %138, %cst_39 [0] : vector<64x32xf32> to vector<32xf32>
    %140 = vector.shape_cast %139 : vector<32xf32> to vector<1x32xf32>
    %cst_40 = arith.constant 6.400000e+01 : f32
    %141 = vector.broadcast %cst_40 : f32 to vector<1x32xf32>
    %142 = arith.divf %140, %141 : vector<1x32xf32>
    %c6 = arith.constant 6 : index
    %c0_41 = arith.constant 0 : index
    %143 = vector.load %arg4[%c6, %c0_41] : memref<13x32xf32, #tpu.memory_space<vmem>>, vector<1x32xf32>
    %c7 = arith.constant 7 : index
    %c0_42 = arith.constant 0 : index
    %144 = vector.load %arg4[%c7, %c0_42] : memref<13x32xf32, #tpu.memory_space<vmem>>, vector<1x32xf32>
    %cst_43 = arith.constant dense<0.000000e+00> : vector<1xf32>
    %145 = vector.multi_reduction <add>, %142, %cst_43 [1] : vector<1x32xf32> to vector<1xf32>
    %146 = vector.shape_cast %145 : vector<1xf32> to vector<1x1xf32>
    %cst_44 = arith.constant 3.200000e+01 : f32
    %147 = vector.broadcast %cst_44 : f32 to vector<1x1xf32>
    %148 = arith.divf %146, %147 : vector<1x1xf32>
    %149 = vector.broadcast %148 : vector<1x1xf32> to vector<1x32xf32>
    %150 = arith.subf %142, %149 : vector<1x32xf32>
    %151 = arith.mulf %150, %150 : vector<1x32xf32>
    %cst_45 = arith.constant dense<0.000000e+00> : vector<1xf32>
    %152 = vector.multi_reduction <add>, %151, %cst_45 [1] : vector<1x32xf32> to vector<1xf32>
    %153 = vector.shape_cast %152 : vector<1xf32> to vector<1x1xf32>
    %cst_46 = arith.constant 3.200000e+01 : f32
    %154 = vector.broadcast %cst_46 : f32 to vector<1x1xf32>
    %155 = arith.divf %153, %154 : vector<1x1xf32>
    %156 = vector.broadcast %148 : vector<1x1xf32> to vector<1x32xf32>
    %157 = arith.subf %142, %156 : vector<1x32xf32>
    %cst_47 = arith.constant 9.99999974E-6 : f32
    %158 = vector.broadcast %cst_47 : f32 to vector<1x1xf32>
    %159 = arith.addf %155, %158 : vector<1x1xf32>
    %160 = math.rsqrt %159 : vector<1x1xf32>
    %161 = vector.broadcast %160 : vector<1x1xf32> to vector<1x32xf32>
    %162 = arith.mulf %157, %161 : vector<1x32xf32>
    %163 = arith.mulf %162, %143 : vector<1x32xf32>
    %164 = arith.addf %163, %144 : vector<1x32xf32>
    %c96 = arith.constant 96 : index
    %c0_48 = arith.constant 0 : index
    %165 = vector.load %arg3[%c96, %c0_48] : memref<256x32xf32, #tpu.memory_space<vmem>>, vector<32x32xf32>
    %cst_49 = arith.constant dense<0.000000e+00> : vector<1x32xf32>
    %166 = tpu.matmul %164, %165, %cst_49 {dimension_numbers = #tpu.dot_dimension_numbers<[1], [0], [0], [1], [0, 0, 1, 1], [], []>} : vector<1x32xf32>, vector<32x32xf32>, vector<1x32xf32> -> vector<1x32xf32>
    %c8 = arith.constant 8 : index
    %c0_50 = arith.constant 0 : index
    %167 = vector.load %arg4[%c8, %c0_50] : memref<13x32xf32, #tpu.memory_space<vmem>>, vector<1x32xf32>
    %c9 = arith.constant 9 : index
    %c0_51 = arith.constant 0 : index
    %168 = vector.load %arg4[%c9, %c0_51] : memref<13x32xf32, #tpu.memory_space<vmem>>, vector<1x32xf32>
    %c128 = arith.constant 128 : index
    %c0_52 = arith.constant 0 : index
    %169 = vector.load %arg3[%c128, %c0_52] : memref<256x32xf32, #tpu.memory_space<vmem>>, vector<32x32xf32>
    %c10 = arith.constant 10 : index
    %c0_53 = arith.constant 0 : index
    %170 = vector.load %arg4[%c10, %c0_53] : memref<13x32xf32, #tpu.memory_space<vmem>>, vector<1x32xf32>
    %c160 = arith.constant 160 : index
    %c0_54 = arith.constant 0 : index
    %171 = vector.load %arg3[%c160, %c0_54] : memref<256x32xf32, #tpu.memory_space<vmem>>, vector<32x32xf32>
    %c11 = arith.constant 11 : index
    %c0_55 = arith.constant 0 : index
    %172 = vector.load %arg4[%c11, %c0_55] : memref<13x32xf32, #tpu.memory_space<vmem>>, vector<1x32xf32>
    %cst_56 = arith.constant dense<0.000000e+00> : vector<1xf32>
    %173 = vector.multi_reduction <add>, %166, %cst_56 [1] : vector<1x32xf32> to vector<1xf32>
    %174 = vector.shape_cast %173 : vector<1xf32> to vector<1x1xf32>
    %cst_57 = arith.constant 3.200000e+01 : f32
    %175 = vector.broadcast %cst_57 : f32 to vector<1x1xf32>
    %176 = arith.divf %174, %175 : vector<1x1xf32>
    %177 = vector.broadcast %176 : vector<1x1xf32> to vector<1x32xf32>
    %178 = arith.subf %166, %177 : vector<1x32xf32>
    %179 = arith.mulf %178, %178 : vector<1x32xf32>
    %cst_58 = arith.constant dense<0.000000e+00> : vector<1xf32>
    %180 = vector.multi_reduction <add>, %179, %cst_58 [1] : vector<1x32xf32> to vector<1xf32>
    %181 = vector.shape_cast %180 : vector<1xf32> to vector<1x1xf32>
    %cst_59 = arith.constant 3.200000e+01 : f32
    %182 = vector.broadcast %cst_59 : f32 to vector<1x1xf32>
    %183 = arith.divf %181, %182 : vector<1x1xf32>
    %184 = vector.broadcast %176 : vector<1x1xf32> to vector<1x32xf32>
    %185 = arith.subf %166, %184 : vector<1x32xf32>
    %cst_60 = arith.constant 9.99999997E-7 : f32
    %186 = vector.broadcast %cst_60 : f32 to vector<1x1xf32>
    %187 = arith.addf %183, %186 : vector<1x1xf32>
    %188 = math.rsqrt %187 : vector<1x1xf32>
    %189 = vector.broadcast %188 : vector<1x1xf32> to vector<1x32xf32>
    %190 = arith.mulf %185, %189 : vector<1x32xf32>
    %191 = arith.mulf %190, %167 : vector<1x32xf32>
    %192 = arith.addf %191, %168 : vector<1x32xf32>
    %cst_61 = arith.constant dense<0.000000e+00> : vector<1x32xf32>
    %193 = tpu.matmul %192, %169, %cst_61 {dimension_numbers = #tpu.dot_dimension_numbers<[1], [0], [0], [1], [0, 0, 1, 1], [], []>} : vector<1x32xf32>, vector<32x32xf32>, vector<1x32xf32> -> vector<1x32xf32>
    %194 = arith.addf %193, %170 : vector<1x32xf32>
    %cst_62 = arith.constant 0.000000e+00 : f32
    %195 = vector.broadcast %cst_62 : f32 to vector<1x32xf32>
    %196 = arith.maximumf %194, %195 : vector<1x32xf32>
    %cst_63 = arith.constant dense<0.000000e+00> : vector<1x32xf32>
    %197 = tpu.matmul %196, %171, %cst_63 {dimension_numbers = #tpu.dot_dimension_numbers<[1], [0], [0], [1], [0, 0, 1, 1], [], []>} : vector<1x32xf32>, vector<32x32xf32>, vector<1x32xf32> -> vector<1x32xf32>
    %198 = arith.addf %197, %172 : vector<1x32xf32>
    %199 = arith.addf %198, %166 : vector<1x32xf32>
    %c192 = arith.constant 192 : index
    %c0_64 = arith.constant 0 : index
    %200 = vector.load %arg3[%c192, %c0_64] : memref<256x32xf32, #tpu.memory_space<vmem>>, vector<32x32xf32>
    %cst_65 = arith.constant dense<0.000000e+00> : vector<64x32xf32>
    %201 = tpu.matmul %138, %200, %cst_65 {dimension_numbers = #tpu.dot_dimension_numbers<[1], [0], [0], [1], [0, 0, 1, 1], [], []>} : vector<64x32xf32>, vector<32x32xf32>, vector<64x32xf32> -> vector<64x32xf32>
    %c224 = arith.constant 224 : index
    %c0_66 = arith.constant 0 : index
    %202 = vector.load %arg3[%c224, %c0_66] : memref<256x32xf32, #tpu.memory_space<vmem>>, vector<32x32xf32>
    %cst_67 = arith.constant dense<0.000000e+00> : vector<1x32xf32>
    %203 = tpu.matmul %199, %202, %cst_67 {dimension_numbers = #tpu.dot_dimension_numbers<[1], [0], [0], [1], [0, 0, 1, 1], [], []>} : vector<1x32xf32>, vector<32x32xf32>, vector<1x32xf32> -> vector<1x32xf32>
    %204 = vector.broadcast %203 : vector<1x32xf32> to vector<64x32xf32>
    %205 = arith.addf %201, %204 : vector<64x32xf32>
    %c12 = arith.constant 12 : index
    %c0_68 = arith.constant 0 : index
    %206 = vector.load %arg4[%c12, %c0_68] : memref<13x32xf32, #tpu.memory_space<vmem>>, vector<1x32xf32>
    %207 = vector.broadcast %206 : vector<1x32xf32> to vector<64x32xf32>
    %208 = arith.addf %205, %207 : vector<64x32xf32>
    %cst_69 = arith.constant 0.000000e+00 : f32
    %209 = vector.broadcast %cst_69 : f32 to vector<64x32xf32>
    %210 = arith.maximumf %208, %209 : vector<64x32xf32>
    %211 = arith.addf %210, %138 : vector<64x32xf32>
    %c0_70 = arith.constant 0 : index
    %c0_71 = arith.constant 0 : index
    %c0_72 = arith.constant 0 : index
    %212 = vector.load %arg5[%c0_70, %c0_71, %c0_72] : memref<1x64x32xf32, #tpu.memory_space<vmem>>, vector<1x64x32xf32>
    %213 = vector.shape_cast %212 : vector<1x64x32xf32> to vector<64x32xf32>
    %214 = vector.shape_cast %211 : vector<64x32xf32> to vector<1x64x32xf32>
    tpu.vector_store %arg5[%c0_70, %c0_71, %c0_72], %214 {strides = array<i32>} : memref<1x64x32xf32, #tpu.memory_space<vmem>>, vector<1x64x32xf32>,
    return
  }
  func.func @transform_0(%arg0: i32) -> (i32, i32, i32) {
    %c0_i32 = arith.constant 0 : i32
    %c0_i32_0 = arith.constant 0 : i32
    %c0_i32_1 = arith.constant 0 : i32
    return %arg0, %c0_i32, %c0_i32_0 : i32, i32, i32
  }
  func.func @transform_1(%arg0: i32) -> (i32, i32) {
    %c0_i32 = arith.constant 0 : i32
    %c0_i32_0 = arith.constant 0 : i32
    %c0_i32_1 = arith.constant 0 : i32
    return %c0_i32, %c0_i32_0 : i32, i32
  }
  func.func @transform_2(%arg0: i32) -> (i32, i32) {
    %c0_i32 = arith.constant 0 : i32
    %c0_i32_0 = arith.constant 0 : i32
    %c0_i32_1 = arith.constant 0 : i32
    return %c0_i32, %c0_i32_0 : i32, i32
  }
  func.func @transform_3(%arg0: i32) -> (i32, i32) {
    %c0_i32 = arith.constant 0 : i32
    %c0_i32_0 = arith.constant 0 : i32
    %c0_i32_1 = arith.constant 0 : i32
    return %c0_i32, %c0_i32_0 : i32, i32
  }
  func.func @transform_4(%arg0: i32) -> (i32, i32, i32) {
    %c0_i32 = arith.constant 0 : i32
    %c0_i32_0 = arith.constant 0 : i32
    %c0_i32_1 = arith.constant 0 : i32
    return %arg0, %c0_i32, %c0_i32_0 : i32, i32, i32
  }
}

</mosaic_0001>

<llo_original>
// kernel: tpu_custom_call.1
$region0: #{tpu_custom_call.1}
  #allocation0 [shape = 'u32[]', space=smem, size = 0x4, offset = 0x4, fixed_abs, tag = 'smem constant byte address 0x4 - core index']
  #allocation1 [shape = 'u32[144,128]{1,0:T(1,128)}', space=vmem, size = 0x12000, scoped, tag = 'internal scratch']
  %s0 = inlined_call_operand.vmem [shape: f32[4,64,32], index: 0, kind: input, shape index: {}]
  %s1 = inlined_call_operand.vmem [shape: f32[32,96], index: 1, kind: input, shape index: {}]
  %s2 = inlined_call_operand.vmem [shape: f32[256,32], index: 2, kind: input, shape index: {}]
  %s3 = inlined_call_operand.vmem [shape: f32[13,32], index: 3, kind: input, shape index: {}]
  %s4 = inlined_call_operand.vmem [shape: f32[4,64,32], index: 4, kind: output, shape index: {}]
  %s5 = sld [smem:[#allocation0]]
  $region49: #{tpu_custom_call.1} parent=0
    _
  %s7 = ssub.s32 1, %s5
  %s8 = scalar_select 0, %s7, %s5
  loop: start=0, step=1, limit=6
  $region2: #{tpu_custom_call.1} parent=0 // loop_pre_header
    _
  $region3: #{tpu_custom_call.1} parent=0 // loop_header
    %s10 = sphi 0, %s14
    %p11 = scmp.ge.s32.totalorder %s10, 6
    %s20 = sphi 0, %s22
    %s23 = sphi 0, %s20
    %s24 = sphi 0, %s23
    %s40 = sphi 0, %s24
    %s44 = sphi 0, %s44
    %s46 = sphi 0, %s44
    %s47 = sphi 0, %s46
    %s61 = sphi 0, %s47
    %s65 = sphi 0, %s65
    %s67 = sphi 0, %s65
    %s68 = sphi 0, %s67
    %s82 = sphi 0, %s68
    %s86 = sphi 0, %s86
    %s88 = sphi 0, %s86
    %s89 = sphi 0, %s88
    %s103 = sphi 0, %s89
    %s109 = sphi 0, %s111
    %s112 = sphi 0, %s109
    %s113 = sphi 0, %s112
    %s129 = sphi 0, %s113
  $region4: #{tpu_custom_call.1} parent=0 // loop_header_branch
    %13 = sbr.rel (%p11) target = $region8
  $region5: #{tpu_custom_call.1} parent=0 // loop_body
    %s15 = ssub.s32 %s10, 1
    %s16 = ssub.s32 %s10, 2
    %s17 = sadd.s32 %s10, 1
    %s18 = ssub.s32 %s10, %s17
    %p19 = scmp.eq.s32.totalorder %s18, 0
    %s21 = sadd.s32 %s20, 1
    %s22 = scalar_select %p19, %s20, %s21
    %p25 = pneg %p19
    %p26 = scmp.eq.s32.totalorder %s10, 3
    %p27 = por %p25, %p26
    %p28 = scmp.ne.s32.totalorder %s20, %s23
    %p29 = scmp.eq.s32.totalorder %s10, 0
    %p30 = por %p28, %p29
    %p31 = scmp.ne.s32.totalorder %s20, %s23
    %p32 = scmp.eq.s32.totalorder %s15, 3
    %p33 = por %p31, %p32
    %p34 = scmp.ne.s32.totalorder %s23, %s24
    %p35 = scmp.eq.s32.totalorder %s15, 0
    %p36 = por %p34, %p35
    %p37 = scmp.ne.s32.totalorder %s23, %s24
    %p38 = scmp.eq.s32.totalorder %s16, 3
    %p39 = por %p37, %p38
    %p41 = scmp.ne.s32.totalorder %s24, %s40
    %p42 = scmp.eq.s32.totalorder %s16, 0
    %p43 = por %p41, %p42
    %s45 = sadd.s32 %s44, 1
    %p48 = scmp.eq.s32.totalorder %s10, 3
    %p49 = scmp.ne.s32.totalorder %s44, %s46
    %p50 = scmp.eq.s32.totalorder %s10, 0
    %p51 = por %p49, %p50
    %p52 = scmp.ne.s32.totalorder %s44, %s46
    %p53 = scmp.eq.s32.totalorder %s15, 3
    %p54 = por %p52, %p53
    %p55 = scmp.ne.s32.totalorder %s46, %s47
    %p56 = scmp.eq.s32.totalorder %s15, 0
    %p57 = por %p55, %p56
    %p58 = scmp.ne.s32.totalorder %s46, %s47
    %p59 = scmp.eq.s32.totalorder %s16, 3
    %p60 = por %p58, %p59
    %p62 = scmp.ne.s32.totalorder %s47, %s61
    %p63 = scmp.eq.s32.totalorder %s16, 0
    %p64 = por %p62, %p63
    %s66 = sadd.s32 %s65, 1
    %p69 = scmp.eq.s32.totalorder %s10, 3
    %p70 = scmp.ne.s32.totalorder %s65, %s67
    %p71 = scmp.eq.s32.totalorder %s10, 0
    %p72 = por %p70, %p71
    %p73 = scmp.ne.s32.totalorder %s65, %s67
    %p74 = scmp.eq.s32.totalorder %s15, 3
    %p75 = por %p73, %p74
    %p76 = scmp.ne.s32.totalorder %s67, %s68
    %p77 = scmp.eq.s32.totalorder %s15, 0
    %p78 = por %p76, %p77
    %p79 = scmp.ne.s32.totalorder %s67, %s68
    %p80 = scmp.eq.s32.totalorder %s16, 3
    %p81 = por %p79, %p80
    %p83 = scmp.ne.s32.totalorder %s68, %s82
    %p84 = scmp.eq.s32.totalorder %s16, 0
    %p85 = por %p83, %p84
    %s87 = sadd.s32 %s86, 1
    %p90 = scmp.eq.s32.totalorder %s10, 3
    %p91 = scmp.ne.s32.totalorder %s86, %s88
    %p92 = scmp.eq.s32.totalorder %s10, 0
    %p93 = por %p91, %p92
    %p94 = scmp.ne.s32.totalorder %s86, %s88
    %p95 = scmp.eq.s32.totalorder %s15, 3
    %p96 = por %p94, %p95
    %p97 = scmp.ne.s32.totalorder %s88, %s89
    %p98 = scmp.eq.s32.totalorder %s15, 0
    %p99 = por %p97, %p98
    %p100 = scmp.ne.s32.totalorder %s88, %s89
    %p101 = scmp.eq.s32.totalorder %s16, 3
    %p102 = por %p100, %p101
    %p104 = scmp.ne.s32.totalorder %s89, %s103
    %p105 = scmp.eq.s32.totalorder %s16, 0
    %p106 = por %p104, %p105
    %s107 = ssub.s32 %s10, %s17
    %p108 = scmp.eq.s32.totalorder %s107, 0
    %s110 = sadd.s32 %s109, 1
    %s111 = scalar_select %p108, %s109, %s110
    %p114 = pneg %p108
    %p115 = scmp.eq.s32.totalorder %s10, 3
    %p116 = por %p114, %p115
    %p117 = scmp.ne.s32.totalorder %s109, %s112
    %p118 = scmp.eq.s32.totalorder %s10, 0
    %p119 = por %p117, %p118
    %p120 = scmp.ne.s32.totalorder %s109, %s112
    %p121 = scmp.eq.s32.totalorder %s15, 3
    %p122 = por %p120, %p121
    %p123 = scmp.ne.s32.totalorder %s112, %s113
    %p124 = scmp.eq.s32.totalorder %s15, 0
    %p125 = por %p123, %p124
    %p126 = scmp.ne.s32.totalorder %s112, %s113
    %p127 = scmp.eq.s32.totalorder %s16, 3
    %p128 = por %p126, %p127
    %p130 = scmp.ne.s32.totalorder %s113, %s129
    %p131 = scmp.eq.s32.totalorder %s16, 0
    %p132 = por %p130, %p131
    %p133 = scmp.le.s32.totalorder 1, %s10
    %p134 = scmp.lt.s32.totalorder %s10, 5
    %p135 = pnand %p133, %p134
    %p136 = pneg %p135
    // Predicated region
    $region9: #{tpu_custom_call.1} parent=5 // pred_check
      _
    $region10: #{tpu_custom_call.1} parent=5 // pred_check_branch
      %138 = sbr.rel (%p135) target = $region12
    $region11: #{tpu_custom_call.1} parent=5 // pred_region
      %s139 = ssub.s32 %s10, 1
      // Predicated region
      $region13: #{tpu_custom_call.1} parent=11 // pred_check
        %p140 = pneg %p57
      $region14: #{tpu_custom_call.1} parent=11 // pred_check_branch
        %142 = sbr.rel (%p140) target = $region16
      $region15: #{tpu_custom_call.1} parent=11 // pred_region
        _
      $region16: #{tpu_custom_call.1} parent=11 // pred_fallthru
        _
      // Predicated region
      $region17: #{tpu_custom_call.1} parent=11 // pred_check
        %p143 = pneg %p78
      $region18: #{tpu_custom_call.1} parent=11 // pred_check_branch
        %145 = sbr.rel (%p143) target = $region20
      $region19: #{tpu_custom_call.1} parent=11 // pred_region
        _
      $region20: #{tpu_custom_call.1} parent=11 // pred_fallthru
        _
      // Predicated region
      $region21: #{tpu_custom_call.1} parent=11 // pred_check
        %p146 = pneg %p99
      $region22: #{tpu_custom_call.1} parent=11 // pred_check_branch
        %148 = sbr.rel (%p146) target = $region24
      $region23: #{tpu_custom_call.1} parent=11 // pred_region
        _
      $region24: #{tpu_custom_call.1} parent=11 // pred_fallthru
        _
    $region12: #{tpu_custom_call.1} parent=5 // pred_fallthru
      _
    %p149 = scmp.lt.s32.totalorder %s10, 4
    // Predicated region
    $region25: #{tpu_custom_call.1} parent=5 // pred_check
      %p150 = pneg %p149
    $region26: #{tpu_custom_call.1} parent=5 // pred_check_branch
      %152 = sbr.rel (%p150) target = $region28
    $region27: #{tpu_custom_call.1} parent=5 // pred_region
      // Predicated region
      $region29: #{tpu_custom_call.1} parent=27 // pred_check
        %p153 = pneg %p30
      $region30: #{tpu_custom_call.1} parent=27 // pred_check_branch
        %155 = sbr.rel (%p153) target = $region32
      $region31: #{tpu_custom_call.1} parent=27 // pred_region
        %p156 = scmp.lt.s32.totalorder %s10, 3
        %s157 = scalar_select %p156, %s10, 3
        %s158 = smul.addr %s157, 8
        %s159 = smul.addr %s158, 8
        %s160 = scalar_lea.vmem %s0, %s159
      $region32: #{tpu_custom_call.1} parent=27 // pred_fallthru
        _
    $region28: #{tpu_custom_call.1} parent=5 // pred_fallthru
      _
    %p161 = scmp.le.s32.totalorder 1, %s10
    %p162 = scmp.lt.s32.totalorder %s10, 5
    %p163 = pnand %p161, %p162
    %p164 = pneg %p163
    // Predicated region
    $region33: #{tpu_custom_call.1} parent=5 // pred_check
      _
    $region34: #{tpu_custom_call.1} parent=5 // pred_check_branch
      %166 = sbr.rel (%p163) target = $region36
    $region35: #{tpu_custom_call.1} parent=5 // pred_region
      %s167 = ssub.s32 %s10, 1
      %p168 = scmp.lt.s32.totalorder %s15, 3
      %s169 = scalar_select %p168, %s15, 3
      %s170 = smul.addr %s169, 8
      %s171 = smul.addr %s170, 8
      %s172 = scalar_lea.vmem %s0, %s171
      %p173 = pneg %p36
      %p174 = pneg %p33
      %p175 = pneg %p57
      %p176 = pneg %p54
      %p177 = pneg %p78
      %p178 = pneg %p75
      %p179 = pneg %p99
      %p180 = pneg %p96
      %p181 = pneg %p125
      %p182 = pneg %p122
      %p183 = scmp.lt.s32.totalorder %s15, 3
      %s184 = scalar_select %p183, %s15, 3
      %s185 = smul.addr %s184, 8
      %s186 = smul.addr %s185, 8
      %s187 = scalar_lea.vmem %s4, %s186
      %p188 = scmp.lt.s32.totalorder %s15, 3
      %s189 = scalar_select %p188, %s15, 3
      %s190 = smul.addr %s189, 8
      %s191 = smul.addr %s190, 8
      %s192 = scalar_lea.vmem %s0, %s191
      %p193 = scmp.lt.s32.totalorder %s15, 3
      %s194 = scalar_select %p193, %s15, 3
      %s195 = smul.addr %s194, 8
      %s196 = smul.addr %s195, 8
      %s197 = scalar_lea.vmem %s4, %s196
      %v198 = vld [vmem:[%s192] sm:$0xff]
      %v199 = vld [vmem:[%s192 + $0x8] sm:$0xff]
      %v200 = vld [vmem:[%s192 + $0x10] sm:$0xff]
      %v201 = vld [vmem:[%s192 + $0x18] sm:$0xff]
      %v202 = vld [vmem:[%s192 + $0x20] sm:$0xff]
      %v203 = vld [vmem:[%s192 + $0x28] sm:$0xff]
      %v204 = vld [vmem:[%s192 + $0x30] sm:$0xff]
      %v205 = vld [vmem:[%s192 + $0x38] sm:$0xff]
      %v206 = vlaneseq
      %v207 = vand.u32 %v206, 127
      %vm208 = vcmp.ge.s32.totalorder %v207, 0
      %vm209 = vcmp.lt.s32.totalorder %v207, 8
      %vm210 = vmand %vm208, %vm209
      %v211 = vsel %vm210, 1, 0
      %v212 = vcvt.s32.f32 %v211
      %vm213 = vcmp.ge.s32.totalorder %v207, 8
      %vm214 = vcmp.lt.s32.totalorder %v207, 16
      %vm215 = vmand %vm213, %vm214
      %v216 = vsel %vm215, 1, 0
      %v217 = vcvt.s32.f32 %v216
      %vm218 = vcmp.ge.s32.totalorder %v207, 16
      %vm219 = vcmp.lt.s32.totalorder %v207, 24
      %vm220 = vmand %vm218, %vm219
      %v221 = vsel %vm220, 1, 0
      %v222 = vcvt.s32.f32 %v221
      %vm223 = vcmp.ge.s32.totalorder %v207, 24
      %vm224 = vcmp.lt.s32.totalorder %v207, 32
      %vm225 = vmand %vm223, %vm224
      %v226 = vsel %vm225, 1, 0
      %v227 = vcvt.s32.f32 %v226
      %v228 = vld [vmem:[%s3] sm:$0x1]
      %v229 = vld [vmem:[%s3 + $0x1] sm:$0x1]
      %vm230 = vcmask 261120
      %v231 = vsel %vm230, %v198, 0.0
      %232 = vadd.xlane.f32.xlu0 %v231
      %v233 = vpop.xlane.xlu0 %232
      %v234 = vsel %vm230, %v199, 0.0
      %235 = vadd.xlane.f32.xlu0 %v234
      %v236 = vpop.xlane.xlu0 %235
      %v237 = vsel %vm230, %v200, 0.0
      %238 = vadd.xlane.f32.xlu0 %v237
      %v239 = vpop.xlane.xlu0 %238
      %v240 = vsel %vm230, %v201, 0.0
      %241 = vadd.xlane.f32.xlu0 %v240
      %v242 = vpop.xlane.xlu0 %241
      %v243 = vsel %vm230, %v202, 0.0
      %244 = vadd.xlane.f32.xlu0 %v243
      %v245 = vpop.xlane.xlu0 %244
      %v246 = vsel %vm230, %v203, 0.0
      %247 = vadd.xlane.f32.xlu0 %v246
      %v248 = vpop.xlane.xlu0 %247
      %v249 = vsel %vm230, %v204, 0.0
      %250 = vadd.xlane.f32.xlu0 %v249
      %v251 = vpop.xlane.xlu0 %250
      %v252 = vsel %vm230, %v205, 0.0
      %253 = vadd.xlane.f32.xlu0 %v252
      %v254 = vpop.xlane.xlu0 %253
      %v255 = vrcp.pop 32.0
      %v256 = vmul.f32 %v233, %v255
      %v257 = vmul.f32 %v236, %v255
      %v258 = vmul.f32 %v239, %v255
      %v259 = vmul.f32 %v242, %v255
      %v260 = vmul.f32 %v245, %v255
      %v261 = vmul.f32 %v248, %v255
      %v262 = vmul.f32 %v251, %v255
      %v263 = vmul.f32 %v254, %v255
      %v264 = vsub.f32 %v198, %v256
      %v265 = vsub.f32 %v199, %v257
      %v266 = vsub.f32 %v200, %v258
      %v267 = vsub.f32 %v201, %v259
      %v268 = vsub.f32 %v202, %v260
      %v269 = vsub.f32 %v203, %v261
      %v270 = vsub.f32 %v204, %v262
      %v271 = vsub.f32 %v205, %v263
      %v272 = vmul.f32 %v264, %v264
      %v273 = vmul.f32 %v265, %v265
      %v274 = vmul.f32 %v266, %v266
      %v275 = vmul.f32 %v267, %v267
      %v276 = vmul.f32 %v268, %v268
      %v277 = vmul.f32 %v269, %v269
      %v278 = vmul.f32 %v270, %v270
      %v279 = vmul.f32 %v271, %v271
      %v280 = vsel %vm230, %v272, 0.0
      %281 = vadd.xlane.f32.xlu0 %v280
      %v282 = vpop.xlane.xlu0 %281
      %v283 = vsel %vm230, %v273, 0.0
      %284 = vadd.xlane.f32.xlu0 %v283
      %v285 = vpop.xlane.xlu0 %284
      %v286 = vsel %vm230, %v274, 0.0
      %287 = vadd.xlane.f32.xlu0 %v286
      %v288 = vpop.xlane.xlu0 %287
      %v289 = vsel %vm230, %v275, 0.0
      %290 = vadd.xlane.f32.xlu0 %v289
      %v291 = vpop.xlane.xlu0 %290
      %v292 = vsel %vm230, %v276, 0.0
      %293 = vadd.xlane.f32.xlu0 %v292
      %v294 = vpop.xlane.xlu0 %293
      %v295 = vsel %vm230, %v277, 0.0
      %296 = vadd.xlane.f32.xlu0 %v295
      %v297 = vpop.xlane.xlu0 %296
      %v298 = vsel %vm230, %v278, 0.0
      %299 = vadd.xlane.f32.xlu0 %v298
      %v300 = vpop.xlane.xlu0 %299
      %v301 = vsel %vm230, %v279, 0.0
      %302 = vadd.xlane.f32.xlu0 %v301
      %v303 = vpop.xlane.xlu0 %302
      %v304 = vmul.f32 %v282, %v255
      %v305 = vmul.f32 %v285, %v255
      %v306 = vmul.f32 %v288, %v255
      %v307 = vmul.f32 %v291, %v255
      %v308 = vmul.f32 %v294, %v255
      %v309 = vmul.f32 %v297, %v255
      %v310 = vmul.f32 %v300, %v255
      %v311 = vmul.f32 %v303, %v255
      %v312 = vadd.f32 %v304, 1e-05
      %v313 = vadd.f32 %v305, 1e-05
      %v314 = vadd.f32 %v306, 1e-05
      %v315 = vadd.f32 %v307, 1e-05
      %v316 = vadd.f32 %v308, 1e-05
      %v317 = vadd.f32 %v309, 1e-05
      %v318 = vadd.f32 %v310, 1e-05
      %v319 = vadd.f32 %v311, 1e-05
      %v320 = vrsqrt.pop %v312
      %v321 = vrsqrt.pop %v313
      %v322 = vrsqrt.pop %v314
      %v323 = vrsqrt.pop %v315
      %v324 = vrsqrt.pop %v316
      %v325 = vrsqrt.pop %v317
      %v326 = vrsqrt.pop %v318
      %v327 = vrsqrt.pop %v319
      %v328 = vmul.f32 %v264, %v320
      %v329 = vmul.f32 %v265, %v321
      %v330 = vmul.f32 %v266, %v322
      %v331 = vmul.f32 %v267, %v323
      %v332 = vmul.f32 %v268, %v324
      %v333 = vmul.f32 %v269, %v325
      %v334 = vmul.f32 %v270, %v326
      %v335 = vmul.f32 %v271, %v327
      %v336 = vlaneseq
      %v337 = vshrl.u32 %v336, 7
      %v338 = vsub.s32 0, %v337
      %v339 = vrot.slane %v228, %v338
      %v340 = vmul.f32 %v328, %v339
      %v341 = vmul.f32 %v329, %v339
      %v342 = vmul.f32 %v330, %v339
      %v343 = vmul.f32 %v331, %v339
      %v344 = vmul.f32 %v332, %v339
      %v345 = vmul.f32 %v333, %v339
      %v346 = vmul.f32 %v334, %v339
      %v347 = vmul.f32 %v335, %v339
      %v348 = vlaneseq
      %v349 = vshrl.u32 %v348, 7
      %v350 = vsub.s32 0, %v349
      %v351 = vrot.slane %v229, %v350
      %v352 = vadd.f32 %v340, %v351
      %v353 = vadd.f32 %v341, %v351
      %v354 = vadd.f32 %v342, %v351
      %v355 = vadd.f32 %v343, %v351
      %v356 = vadd.f32 %v344, %v351
      %v357 = vadd.f32 %v345, %v351
      %v358 = vadd.f32 %v346, %v351
      %v359 = vadd.f32 %v347, %v351
      %v360 = vld [vmem:[%s1] sm:$0xff]
      %v361 = vld [vmem:[%s1 + $0x8] sm:$0xff]
      %v362 = vld [vmem:[%s1 + $0x10] sm:$0xff]
      %v363 = vld [vmem:[%s1 + $0x18] sm:$0xff]
      %v365 = vsel %vm230, %v352, 0
      %v368 = vsel %vm230, %v353, 0
      %v371 = vsel %vm230, %v354, 0
      %v374 = vsel %vm230, %v355, 0
      %v377 = vsel %vm230, %v356, 0
      %v380 = vsel %vm230, %v357, 0
      %v383 = vsel %vm230, %v358, 0
      %v386 = vsel %vm230, %v359, 0
      %388 = vmatprep.subr.mxu0 0.0
      %389 = vmatpush1.msra.mxu0 %v360
      %390 = vmatprep.subr.mxu0 0.0
      %391 = vmatpush1.msra.mxu0 %v361
      %392 = vmatprep.subr.mxu0 0.0
      %393 = vmatpush1.msra.mxu0 %v362
      %394 = vmatprep.subr.mxu0 0.0
      %395 = vmatpush1.msra.mxu0 %v363
      %396 = vmatprep.subr.mxu0 0.0
      %397 = vmatpush1.msra.mxu0 0.0
      %398 = vmatprep.subr.mxu0 0.0
      %399 = vmatpush1.msra.mxu0 0.0
      %400 = vmatprep.subr.mxu0 0.0
      %401 = vmatpush1.msra.mxu0 0.0
      %402 = vmatprep.subr.mxu0 0.0
      %403 = vmatpush1.msra.mxu0 0.0
      %404 = vmatprep.subr.mxu0 0.0
      %405 = vmatpush1.msra.mxu0 0.0
      %406 = vmatprep.subr.mxu0 0.0
      %407 = vmatpush1.msra.mxu0 0.0
      %408 = vmatprep.subr.mxu0 0.0
      %409 = vmatpush1.msra.mxu0 0.0
      %410 = vmatprep.subr.mxu0 0.0
      %411 = vmatpush1.msra.mxu0 0.0
      %412 = vmatprep.subr.mxu0 0.0
      %413 = vmatpush1.msra.mxu0 0.0
      %414 = vmatprep.subr.mxu0 0.0
      %415 = vmatpush1.msra.mxu0 0.0
      %416 = vmatprep.subr.mxu0 0.0
      %417 = vmatpush1.msra.mxu0 0.0
      %418 = vmatprep.subr.mxu0 0.0
      %419 = vmatpush1.msra.mxu0 0.0
      %420 = vmatprep.subr.mxu0 0.0
      %421 = vmatpush1.msra.mxu0 0.0
      %422 = vmatprep.subr.mxu0 0.0
      %423 = vmatpush1.msra.mxu0 0.0
      %424 = vmatprep.subr.mxu0 0.0
      %425 = vmatpush1.msra.mxu0 0.0
      %426 = vmatprep.subr.mxu0 0.0
      %427 = vmatpush1.msra.mxu0 0.0
      %428 = vmatprep.subr.mxu0 0.0
      %429 = vmatpush1.msra.mxu0 0.0
      %430 = vmatprep.subr.mxu0 0.0
      %431 = vmatpush1.msra.mxu0 0.0
      %432 = vmatprep.subr.mxu0 0.0
      %433 = vmatpush1.msra.mxu0 0.0
      %434 = vmatprep.subr.mxu0 0.0
      %435 = vmatpush1.msra.mxu0 0.0
      %436 = vmatprep.subr.mxu0 0.0
      %437 = vmatpush1.msra.mxu0 0.0
      %438 = vmatprep.subr.mxu0 0.0
      %439 = vmatpush1.msra.mxu0 0.0
      %440 = vmatprep.subr.mxu0 0.0
      %441 = vmatpush1.msra.mxu0 0.0
      %442 = vmatprep.subr.mxu0 0.0
      %443 = vmatpush1.msra.mxu0 0.0
      %444 = vmatprep.subr.mxu0 0.0
      %445 = vmatpush1.msra.mxu0 0.0
      %446 = vmatprep.subr.mxu0 0.0
      %447 = vmatpush1.msra.mxu0 0.0
      %448 = vmatprep.subr.mxu0 0.0
      %449 = vmatpush1.msra.mxu0 0.0
      %450 = vmatprep.subr.mxu0 0.0
      %451 = vmatpush1.msra.mxu0 0.0
      %452 = vmatprep.mubr.f32.mxu0 0.0
      %453 = vmatmul.mubr.f32.gmra.mrb[0].mxu0 %v365
      %v454 = vpop.f32.mrb[0].mxu0
      %v455 = vadd.f32 0.0, %v454
      %v456 = vpop.f32.mrb[0].mxu0
      %457 = vmatprep.mubr.f32.mxu0 0.0
      %458 = vmatmul.mubr.f32.gmra.mrb[0].mxu0 %v368
      %v459 = vpop.f32.mrb[0].mxu0
      %v460 = vadd.f32 0.0, %v459
      %v461 = vpop.f32.mrb[0].mxu0
      %462 = vmatprep.mubr.f32.mxu0 0.0
      %463 = vmatmul.mubr.f32.gmra.mrb[0].mxu0 %v371
      %v464 = vpop.f32.mrb[0].mxu0
      %v465 = vadd.f32 0.0, %v464
      %v466 = vpop.f32.mrb[0].mxu0
      %467 = vmatprep.mubr.f32.mxu0 0.0
      %468 = vmatmul.mubr.f32.gmra.mrb[0].mxu0 %v374
      %v469 = vpop.f32.mrb[0].mxu0
      %v470 = vadd.f32 0.0, %v469
      %v471 = vpop.f32.mrb[0].mxu0
      %472 = vmatprep.mubr.f32.mxu0 0.0
      %473 = vmatmul.mubr.f32.gmra.mrb[0].mxu0 %v377
      %v474 = vpop.f32.mrb[0].mxu0
      %v475 = vadd.f32 0.0, %v474
      %v476 = vpop.f32.mrb[0].mxu0
      %477 = vmatprep.mubr.f32.mxu0 0.0
      %478 = vmatmul.mubr.f32.gmra.mrb[0].mxu0 %v380
      %v479 = vpop.f32.mrb[0].mxu0
      %v480 = vadd.f32 0.0, %v479
      %v481 = vpop.f32.mrb[0].mxu0
      %482 = vmatprep.mubr.f32.mxu0 0.0
      %483 = vmatmul.mubr.f32.gmra.mrb[0].mxu0 %v383
      %v484 = vpop.f32.mrb[0].mxu0
      %v485 = vadd.f32 0.0, %v484
      %v486 = vpop.f32.mrb[0].mxu0
      %487 = vmatprep.mubr.f32.mxu0 0.0
      %488 = vmatmul.mubr.f32.gmra.mrb[0].mxu0 %v386
      %v489 = vpop.f32.mrb[0].mxu0
      %v490 = vadd.f32 0.0, %v489
      %v491 = vpop.f32.mrb[0].mxu0
      %492 = vdwg.mxu0
      %v493 = vmul.f32 %v455, %v212
      %v494 = vmul.f32 %v460, %v212
      %v495 = vmul.f32 %v465, %v212
      %v496 = vmul.f32 %v470, %v212
      %v497 = vmul.f32 %v475, %v212
      %v498 = vmul.f32 %v480, %v212
      %v499 = vmul.f32 %v485, %v212
      %v500 = vmul.f32 %v490, %v212
      %v501 = vmul.f32 %v455, %v217
      %v502 = vmul.f32 %v460, %v217
      %v503 = vmul.f32 %v465, %v217
      %v504 = vmul.f32 %v470, %v217
      %v505 = vmul.f32 %v475, %v217
      %v506 = vmul.f32 %v480, %v217
      %v507 = vmul.f32 %v485, %v217
      %v508 = vmul.f32 %v490, %v217
      %v509 = vmul.f32 %v455, %v222
      %v510 = vmul.f32 %v460, %v222
      %v511 = vmul.f32 %v465, %v222
      %v512 = vmul.f32 %v470, %v222
      %v513 = vmul.f32 %v475, %v222
      %v514 = vmul.f32 %v480, %v222
      %v515 = vmul.f32 %v485, %v222
      %v516 = vmul.f32 %v490, %v222
      %v517 = vmul.f32 %v455, %v227
      %v518 = vmul.f32 %v460, %v227
      %v519 = vmul.f32 %v465, %v227
      %v520 = vmul.f32 %v470, %v227
      %v521 = vmul.f32 %v475, %v227
      %v522 = vmul.f32 %v480, %v227
      %v523 = vmul.f32 %v485, %v227
      %v524 = vmul.f32 %v490, %v227
      %533 = vrot.lane.b32.xlu0 %v455, 96
      %v534 = vpop.permute.xlu0 %533
      %535 = vrot.lane.b32.xlu0 %v460, 96
      %v536 = vpop.permute.xlu0 %535
      %537 = vrot.lane.b32.xlu0 %v465, 96
      %v538 = vpop.permute.xlu0 %537
      %539 = vrot.lane.b32.xlu0 %v470, 96
      %v540 = vpop.permute.xlu0 %539
      %541 = vrot.lane.b32.xlu0 %v475, 96
      %v542 = vpop.permute.xlu0 %541
      %543 = vrot.lane.b32.xlu0 %v480, 96
      %v544 = vpop.permute.xlu0 %543
      %545 = vrot.lane.b32.xlu0 %v485, 96
      %v546 = vpop.permute.xlu0 %545
      %547 = vrot.lane.b32.xlu0 %v490, 96
      %v548 = vpop.permute.xlu0 %547
      %v550 = vsel %vm230, %v493, 0
      %v553 = vsel %vm230, %v494, 0
      %v556 = vsel %vm230, %v495, 0
      %v559 = vsel %vm230, %v496, 0
      %v562 = vsel %vm230, %v497, 0
      %v565 = vsel %vm230, %v498, 0
      %v568 = vsel %vm230, %v499, 0
      %v571 = vsel %vm230, %v500, 0
      %v574 = vsel %vm230, %v501, 0
      %v577 = vsel %vm230, %v502, 0
      %v580 = vsel %vm230, %v503, 0
      %v583 = vsel %vm230, %v504, 0
      %v586 = vsel %vm230, %v505, 0
      %v589 = vsel %vm230, %v506, 0
      %v592 = vsel %vm230, %v507, 0
      %v595 = vsel %vm230, %v508, 0
      %v598 = vsel %vm230, %v509, 0
      %v601 = vsel %vm230, %v510, 0
      %v604 = vsel %vm230, %v511, 0
      %v607 = vsel %vm230, %v512, 0
      %v610 = vsel %vm230, %v513, 0
      %v613 = vsel %vm230, %v514, 0
      %v616 = vsel %vm230, %v515, 0
      %v619 = vsel %vm230, %v516, 0
      %v622 = vsel %vm230, %v517, 0
      %v625 = vsel %vm230, %v518, 0
      %v628 = vsel %vm230, %v519, 0
      %v631 = vsel %vm230, %v520, 0
      %v634 = vsel %vm230, %v521, 0
      %v637 = vsel %vm230, %v522, 0
      %v640 = vsel %vm230, %v523, 0
      %v643 = vsel %vm230, %v524, 0
      %v645 = vsel %vm230, %v534, 0
      %v647 = vsel %vm230, %v536, 0
      %v649 = vsel %vm230, %v538, 0
      %v651 = vsel %vm230, %v540, 0
      %v653 = vsel %vm230, %v542, 0
      %v655 = vsel %vm230, %v544, 0
      %v657 = vsel %vm230, %v546, 0
      %v659 = vsel %vm230, %v548, 0
      %661 = vmatprep.subr.mxu0 0.0
      %662 = vmatpush1.xpose.msra.mxu0 %v645
      %663 = vmatprep.subr.mxu0 0.0
      %664 = vmatpush1.xpose.msra.mxu0 %v647
      %665 = vmatprep.subr.mxu0 0.0
      %666 = vmatpush1.xpose.msra.mxu0 %v649
      %667 = vmatprep.subr.mxu0 0.0
      %668 = vmatpush1.xpose.msra.mxu0 %v651
      %669 = vmatprep.subr.mxu0 0.0
      %670 = vmatpush1.xpose.msra.mxu0 %v653
      %671 = vmatprep.subr.mxu0 0.0
      %672 = vmatpush1.xpose.msra.mxu0 %v655
      %673 = vmatprep.subr.mxu0 0.0
      %674 = vmatpush1.xpose.msra.mxu0 %v657
      %675 = vmatprep.subr.mxu0 0.0
      %676 = vmatpush1.xpose.msra.mxu0 %v659
      %677 = vmatprep.subr.mxu0 0.0
      %678 = vmatpush1.xpose.msra.mxu0 0.0
      %679 = vmatprep.subr.mxu0 0.0
      %680 = vmatpush1.xpose.msra.mxu0 0.0
      %681 = vmatprep.subr.mxu0 0.0
      %682 = vmatpush1.xpose.msra.mxu0 0.0
      %683 = vmatprep.subr.mxu0 0.0
      %684 = vmatpush1.xpose.msra.mxu0 0.0
      %685 = vmatprep.subr.mxu0 0.0
      %686 = vmatpush1.xpose.msra.mxu0 0.0
      %687 = vmatprep.subr.mxu0 0.0
      %688 = vmatpush1.xpose.msra.mxu0 0.0
      %689 = vmatprep.subr.mxu0 0.0
      %690 = vmatpush1.xpose.msra.mxu0 0.0
      %691 = vmatprep.subr.mxu0 0.0
      %692 = vmatpush1.xpose.msra.mxu0 0.0
      %693 = vmatprep.subr.mxu0 0.0
      %694 = vmatpush1.xpose.msra.mxu0 0.0
      %695 = vmatprep.subr.mxu0 0.0
      %696 = vmatpush1.xpose.msra.mxu0 0.0
      %697 = vmatprep.subr.mxu0 0.0
      %698 = vmatpush1.xpose.msra.mxu0 0.0
      %699 = vmatprep.subr.mxu0 0.0
      %700 = vmatpush1.xpose.msra.mxu0 0.0
      %701 = vmatprep.subr.mxu0 0.0
      %702 = vmatpush1.xpose.msra.mxu0 0.0
      %703 = vmatprep.subr.mxu0 0.0
      %704 = vmatpush1.xpose.msra.mxu0 0.0
      %705 = vmatprep.subr.mxu0 0.0
      %706 = vmatpush1.xpose.msra.mxu0 0.0
      %707 = vmatprep.subr.mxu0 0.0
      %708 = vmatpush1.xpose.msra.mxu0 0.0
      %709 = vmatprep.subr.mxu0 0.0
      %710 = vmatpush1.xpose.msra.mxu0 0.0
      %711 = vmatprep.subr.mxu0 0.0
      %712 = vmatpush1.xpose.msra.mxu0 0.0
      %713 = vmatprep.subr.mxu0 0.0
      %714 = vmatpush1.xpose.msra.mxu0 0.0
      %715 = vmatprep.subr.mxu0 0.0
      %716 = vmatpush1.xpose.msra.mxu0 0.0
      %717 = vmatprep.subr.mxu0 0.0
      %718 = vmatpush1.xpose.msra.mxu0 0.0
      %719 = vmatprep.subr.mxu0 0.0
      %720 = vmatpush1.xpose.msra.mxu0 0.0
      %721 = vmatprep.subr.mxu0 0.0
      %722 = vmatpush1.xpose.msra.mxu0 0.0
      %723 = vmatprep.subr.mxu0 0.0
      %724 = vmatpush1.xpose.msra.mxu0 0.0
      %725 = vmatprep.mubr.f32.mxu0 0.0
      %726 = vmatmul.mubr.f32.gmra.mrb[0].mxu0 %v550
      %v727 = vpop.f32.mrb[0].mxu0
      %v728 = vadd.f32 0.0, %v727
      %v729 = vpop.f32.mrb[0].mxu0
      %730 = vmatprep.mubr.f32.mxu0 0.0
      %731 = vmatmul.mubr.f32.gmra.mrb[0].mxu0 %v553
      %v732 = vpop.f32.mrb[0].mxu0
      %v733 = vadd.f32 0.0, %v732
      %v734 = vpop.f32.mrb[0].mxu0
      %735 = vmatprep.mubr.f32.mxu0 0.0
      %736 = vmatmul.mubr.f32.gmra.mrb[0].mxu0 %v556
      %v737 = vpop.f32.mrb[0].mxu0
      %v738 = vadd.f32 0.0, %v737
      %v739 = vpop.f32.mrb[0].mxu0
      %740 = vmatprep.mubr.f32.mxu0 0.0
      %741 = vmatmul.mubr.f32.gmra.mrb[0].mxu0 %v559
      %v742 = vpop.f32.mrb[0].mxu0
      %v743 = vadd.f32 0.0, %v742
      %v744 = vpop.f32.mrb[0].mxu0
      %745 = vmatprep.mubr.f32.mxu0 0.0
      %746 = vmatmul.mubr.f32.gmra.mrb[0].mxu0 %v562
      %v747 = vpop.f32.mrb[0].mxu0
      %v748 = vadd.f32 0.0, %v747
      %v749 = vpop.f32.mrb[0].mxu0
      %750 = vmatprep.mubr.f32.mxu0 0.0
      %751 = vmatmul.mubr.f32.gmra.mrb[0].mxu0 %v565
      %v752 = vpop.f32.mrb[0].mxu0
      %v753 = vadd.f32 0.0, %v752
      %v754 = vpop.f32.mrb[0].mxu0
      %755 = vmatprep.mubr.f32.mxu0 0.0
      %756 = vmatmul.mubr.f32.gmra.mrb[0].mxu0 %v568
      %v757 = vpop.f32.mrb[0].mxu0
      %v758 = vadd.f32 0.0, %v757
      %v759 = vpop.f32.mrb[0].mxu0
      %760 = vmatprep.mubr.f32.mxu0 0.0
      %761 = vmatmul.mubr.f32.gmra.mrb[0].mxu0 %v571
      %v762 = vpop.f32.mrb[0].mxu0
      %v763 = vadd.f32 0.0, %v762
      %v764 = vpop.f32.mrb[0].mxu0
      %765 = vmatprep.mubr.f32.mxu0 0.0
      %766 = vmatmul.mubr.f32.gmra.mrb[0].mxu0 %v574
      %v767 = vpop.f32.mrb[0].mxu0
      %v768 = vadd.f32 0.0, %v767
      %v769 = vpop.f32.mrb[0].mxu0
      %770 = vmatprep.mubr.f32.mxu0 0.0
      %771 = vmatmul.mubr.f32.gmra.mrb[0].mxu0 %v577
      %v772 = vpop.f32.mrb[0].mxu0
      %v773 = vadd.f32 0.0, %v772
      %v774 = vpop.f32.mrb[0].mxu0
      %775 = vmatprep.mubr.f32.mxu0 0.0
      %776 = vmatmul.mubr.f32.gmra.mrb[0].mxu0 %v580
      %v777 = vpop.f32.mrb[0].mxu0
      %v778 = vadd.f32 0.0, %v777
      %v779 = vpop.f32.mrb[0].mxu0
      %780 = vmatprep.mubr.f32.mxu0 0.0
      %781 = vmatmul.mubr.f32.gmra.mrb[0].mxu0 %v583
      %v782 = vpop.f32.mrb[0].mxu0
      %v783 = vadd.f32 0.0, %v782
      %v784 = vpop.f32.mrb[0].mxu0
      %785 = vmatprep.mubr.f32.mxu0 0.0
      %786 = vmatmul.mubr.f32.gmra.mrb[0].mxu0 %v586
      %v787 = vpop.f32.mrb[0].mxu0
      %v788 = vadd.f32 0.0, %v787
      %v789 = vpop.f32.mrb[0].mxu0
      %790 = vmatprep.mubr.f32.mxu0 0.0
      %791 = vmatmul.mubr.f32.gmra.mrb[0].mxu0 %v589
      %v792 = vpop.f32.mrb[0].mxu0
      %v793 = vadd.f32 0.0, %v792
      %v794 = vpop.f32.mrb[0].mxu0
      %795 = vmatprep.mubr.f32.mxu0 0.0
      %796 = vmatmul.mubr.f32.gmra.mrb[0].mxu0 %v592
      %v797 = vpop.f32.mrb[0].mxu0
      %v798 = vadd.f32 0.0, %v797
      %v799 = vpop.f32.mrb[0].mxu0
      %800 = vmatprep.mubr.f32.mxu0 0.0
      %801 = vmatmul.mubr.f32.gmra.mrb[0].mxu0 %v595
      %v802 = vpop.f32.mrb[0].mxu0
      %v803 = vadd.f32 0.0, %v802
      %v804 = vpop.f32.mrb[0].mxu0
      %805 = vmatprep.mubr.f32.mxu0 0.0
      %806 = vmatmul.mubr.f32.gmra.mrb[0].mxu0 %v598
      %v807 = vpop.f32.mrb[0].mxu0
      %v808 = vadd.f32 0.0, %v807
      %v809 = vpop.f32.mrb[0].mxu0
      %810 = vmatprep.mubr.f32.mxu0 0.0
      %811 = vmatmul.mubr.f32.gmra.mrb[0].mxu0 %v601
      %v812 = vpop.f32.mrb[0].mxu0
      %v813 = vadd.f32 0.0, %v812
      %v814 = vpop.f32.mrb[0].mxu0
      %815 = vmatprep.mubr.f32.mxu0 0.0
      %816 = vmatmul.mubr.f32.gmra.mrb[0].mxu0 %v604
      %v817 = vpop.f32.mrb[0].mxu0
      %v818 = vadd.f32 0.0, %v817
      %v819 = vpop.f32.mrb[0].mxu0
      %820 = vmatprep.mubr.f32.mxu0 0.0
      %821 = vmatmul.mubr.f32.gmra.mrb[0].mxu0 %v607
      %v822 = vpop.f32.mrb[0].mxu0
      %v823 = vadd.f32 0.0, %v822
      %v824 = vpop.f32.mrb[0].mxu0
      %825 = vmatprep.mubr.f32.mxu0 0.0
      %826 = vmatmul.mubr.f32.gmra.mrb[0].mxu0 %v610
      %v827 = vpop.f32.mrb[0].mxu0
      %v828 = vadd.f32 0.0, %v827
      %v829 = vpop.f32.mrb[0].mxu0
      %830 = vmatprep.mubr.f32.mxu0 0.0
      %831 = vmatmul.mubr.f32.gmra.mrb[0].mxu0 %v613
      %v832 = vpop.f32.mrb[0].mxu0
      %v833 = vadd.f32 0.0, %v832
      %v834 = vpop.f32.mrb[0].mxu0
      %835 = vmatprep.mubr.f32.mxu0 0.0
      %836 = vmatmul.mubr.f32.gmra.mrb[0].mxu0 %v616
      %v837 = vpop.f32.mrb[0].mxu0
      %v838 = vadd.f32 0.0, %v837
      %v839 = vpop.f32.mrb[0].mxu0
      %840 = vmatprep.mubr.f32.mxu0 0.0
      %841 = vmatmul.mubr.f32.gmra.mrb[0].mxu0 %v619
      %v842 = vpop.f32.mrb[0].mxu0
      %v843 = vadd.f32 0.0, %v842
      %v844 = vpop.f32.mrb[0].mxu0
      %845 = vmatprep.mubr.f32.mxu0 0.0
      %846 = vmatmul.mubr.f32.gmra.mrb[0].mxu0 %v622
      %v847 = vpop.f32.mrb[0].mxu0
      %v848 = vadd.f32 0.0, %v847
      %v849 = vpop.f32.mrb[0].mxu0
      %850 = vmatprep.mubr.f32.mxu0 0.0
      %851 = vmatmul.mubr.f32.gmra.mrb[0].mxu0 %v625
      %v852 = vpop.f32.mrb[0].mxu0
      %v853 = vadd.f32 0.0, %v852
      %v854 = vpop.f32.mrb[0].mxu0
      %855 = vmatprep.mubr.f32.mxu0 0.0
      %856 = vmatmul.mubr.f32.gmra.mrb[0].mxu0 %v628
      %v857 = vpop.f32.mrb[0].mxu0
      %v858 = vadd.f32 0.0, %v857
      %v859 = vpop.f32.mrb[0].mxu0
      %860 = vmatprep.mubr.f32.mxu0 0.0
      %861 = vmatmul.mubr.f32.gmra.mrb[0].mxu0 %v631
      %v862 = vpop.f32.mrb[0].mxu0
      %v863 = vadd.f32 0.0, %v862
      %v864 = vpop.f32.mrb[0].mxu0
      %865 = vmatprep.mubr.f32.mxu0 0.0
      %866 = vmatmul.mubr.f32.gmra.mrb[0].mxu0 %v634
      %v867 = vpop.f32.mrb[0].mxu0
      %v868 = vadd.f32 0.0, %v867
      %v869 = vpop.f32.mrb[0].mxu0
      %870 = vmatprep.mubr.f32.mxu0 0.0
      %871 = vmatmul.mubr.f32.gmra.mrb[0].mxu0 %v637
      %v872 = vpop.f32.mrb[0].mxu0
      %v873 = vadd.f32 0.0, %v872
      %v874 = vpop.f32.mrb[0].mxu0
      %875 = vmatprep.mubr.f32.mxu0 0.0
      %876 = vmatmul.mubr.f32.gmra.mrb[0].mxu0 %v640
      %v877 = vpop.f32.mrb[0].mxu0
      %v878 = vadd.f32 0.0, %v877
      %v879 = vpop.f32.mrb[0].mxu0
      %880 = vmatprep.mubr.f32.mxu0 0.0
      %881 = vmatmul.mubr.f32.gmra.mrb[0].mxu0 %v643
      %v882 = vpop.f32.mrb[0].mxu0
      %v883 = vadd.f32 0.0, %v882
      %v884 = vpop.f32.mrb[0].mxu0
      %885 = vdwg.mxu0
      %vm886 = vcmask 523264
      %v887 = vsel %vm886, %v728, -inf
      %888 = vmax.xlane.f32.xlu0 %v887
      %v889 = vpop.xlane.xlu0 %888
      %v890 = vsel %vm886, %v733, -inf
      %891 = vmax.xlane.f32.xlu0 %v890
      %v892 = vpop.xlane.xlu0 %891
      %v893 = vsel %vm886, %v738, -inf
      %894 = vmax.xlane.f32.xlu0 %v893
      %v895 = vpop.xlane.xlu0 %894
      %v896 = vsel %vm886, %v743, -inf
      %897 = vmax.xlane.f32.xlu0 %v896
      %v898 = vpop.xlane.xlu0 %897
      %v899 = vsel %vm886, %v748, -inf
      %900 = vmax.xlane.f32.xlu0 %v899
      %v901 = vpop.xlane.xlu0 %900
      %v902 = vsel %vm886, %v753, -inf
      %903 = vmax.xlane.f32.xlu0 %v902
      %v904 = vpop.xlane.xlu0 %903
      %v905 = vsel %vm886, %v758, -inf
      %906 = vmax.xlane.f32.xlu0 %v905
      %v907 = vpop.xlane.xlu0 %906
      %v908 = vsel %vm886, %v763, -inf
      %909 = vmax.xlane.f32.xlu0 %v908
      %v910 = vpop.xlane.xlu0 %909
      %v911 = vsel %vm886, %v768, -inf
      %912 = vmax.xlane.f32.xlu0 %v911
      %v913 = vpop.xlane.xlu0 %912
      %v914 = vsel %vm886, %v773, -inf
      %915 = vmax.xlane.f32.xlu0 %v914
      %v916 = vpop.xlane.xlu0 %915
      %v917 = vsel %vm886, %v778, -inf
      %918 = vmax.xlane.f32.xlu0 %v917
      %v919 = vpop.xlane.xlu0 %918
      %v920 = vsel %vm886, %v783, -inf
      %921 = vmax.xlane.f32.xlu0 %v920
      %v922 = vpop.xlane.xlu0 %921
      %v923 = vsel %vm886, %v788, -inf
      %924 = vmax.xlane.f32.xlu0 %v923
      %v925 = vpop.xlane.xlu0 %924
      %v926 = vsel %vm886, %v793, -inf
      %927 = vmax.xlane.f32.xlu0 %v926
      %v928 = vpop.xlane.xlu0 %927
      %v929 = vsel %vm886, %v798, -inf
      %930 = vmax.xlane.f32.xlu0 %v929
      %v931 = vpop.xlane.xlu0 %930
      %v932 = vsel %vm886, %v803, -inf
      %933 = vmax.xlane.f32.xlu0 %v932
      %v934 = vpop.xlane.xlu0 %933
      %v935 = vsel %vm886, %v808, -inf
      %936 = vmax.xlane.f32.xlu0 %v935
      %v937 = vpop.xlane.xlu0 %936
      %v938 = vsel %vm886, %v813, -inf
      %939 = vmax.xlane.f32.xlu0 %v938
      %v940 = vpop.xlane.xlu0 %939
      %v941 = vsel %vm886, %v818, -inf
      %942 = vmax.xlane.f32.xlu0 %v941
      %v943 = vpop.xlane.xlu0 %942
      %v944 = vsel %vm886, %v823, -inf
      %945 = vmax.xlane.f32.xlu0 %v944
      %v946 = vpop.xlane.xlu0 %945
      %v947 = vsel %vm886, %v828, -inf
      %948 = vmax.xlane.f32.xlu0 %v947
      %v949 = vpop.xlane.xlu0 %948
      %v950 = vsel %vm886, %v833, -inf
      %951 = vmax.xlane.f32.xlu0 %v950
      %v952 = vpop.xlane.xlu0 %951
      %v953 = vsel %vm886, %v838, -inf
      %954 = vmax.xlane.f32.xlu0 %v953
      %v955 = vpop.xlane.xlu0 %954
      %v956 = vsel %vm886, %v843, -inf
      %957 = vmax.xlane.f32.xlu0 %v956
      %v958 = vpop.xlane.xlu0 %957
      %v959 = vsel %vm886, %v848, -inf
      %960 = vmax.xlane.f32.xlu0 %v959
      %v961 = vpop.xlane.xlu0 %960
      %v962 = vsel %vm886, %v853, -inf
      %963 = vmax.xlane.f32.xlu0 %v962
      %v964 = vpop.xlane.xlu0 %963
      %v965 = vsel %vm886, %v858, -inf
      %966 = vmax.xlane.f32.xlu0 %v965
      %v967 = vpop.xlane.xlu0 %966
      %v968 = vsel %vm886, %v863, -inf
      %969 = vmax.xlane.f32.xlu0 %v968
      %v970 = vpop.xlane.xlu0 %969
      %v971 = vsel %vm886, %v868, -inf
      %972 = vmax.xlane.f32.xlu0 %v971
      %v973 = vpop.xlane.xlu0 %972
      %v974 = vsel %vm886, %v873, -inf
      %975 = vmax.xlane.f32.xlu0 %v974
      %v976 = vpop.xlane.xlu0 %975
      %v977 = vsel %vm886, %v878, -inf
      %978 = vmax.xlane.f32.xlu0 %v977
      %v979 = vpop.xlane.xlu0 %978
      %v980 = vsel %vm886, %v883, -inf
      %981 = vmax.xlane.f32.xlu0 %v980
      %v982 = vpop.xlane.xlu0 %981
      %v983 = vsub.f32 %v728, %v889
      %v984 = vsub.f32 %v733, %v892
      %v985 = vsub.f32 %v738, %v895
      %v986 = vsub.f32 %v743, %v898
      %v987 = vsub.f32 %v748, %v901
      %v988 = vsub.f32 %v753, %v904
      %v989 = vsub.f32 %v758, %v907
      %v990 = vsub.f32 %v763, %v910
      %v991 = vsub.f32 %v768, %v913
      %v992 = vsub.f32 %v773, %v916
      %v993 = vsub.f32 %v778, %v919
      %v994 = vsub.f32 %v783, %v922
      %v995 = vsub.f32 %v788, %v925
      %v996 = vsub.f32 %v793, %v928
      %v997 = vsub.f32 %v798, %v931
      %v998 = vsub.f32 %v803, %v934
      %v999 = vsub.f32 %v808, %v937
      %v1000 = vsub.f32 %v813, %v940
      %v1001 = vsub.f32 %v818, %v943
      %v1002 = vsub.f32 %v823, %v946
      %v1003 = vsub.f32 %v828, %v949
      %v1004 = vsub.f32 %v833, %v952
      %v1005 = vsub.f32 %v838, %v955
      %v1006 = vsub.f32 %v843, %v958
      %v1007 = vsub.f32 %v848, %v961
      %v1008 = vsub.f32 %v853, %v964
      %v1009 = vsub.f32 %v858, %v967
      %v1010 = vsub.f32 %v863, %v970
      %v1011 = vsub.f32 %v868, %v973
      %v1012 = vsub.f32 %v873, %v976
      %v1013 = vsub.f32 %v878, %v979
      %v1014 = vsub.f32 %v883, %v982
      %v1015 = vmul.f32 %v983, 1.442695
      %v1016 = vpow.pop %v1015
      %v1017 = vmul.f32 %v984, 1.442695
      %v1018 = vpow.pop %v1017
      %v1019 = vmul.f32 %v985, 1.442695
      %v1020 = vpow.pop %v1019
      %v1021 = vmul.f32 %v986, 1.442695
      %v1022 = vpow.pop %v1021
      %v1023 = vmul.f32 %v987, 1.442695
      %v1024 = vpow.pop %v1023
      %v1025 = vmul.f32 %v988, 1.442695
      %v1026 = vpow.pop %v1025
      %v1027 = vmul.f32 %v989, 1.442695
      %v1028 = vpow.pop %v1027
      %v1029 = vmul.f32 %v990, 1.442695
      %v1030 = vpow.pop %v1029
      %v1031 = vmul.f32 %v991, 1.442695
      %v1032 = vpow.pop %v1031
      %v1033 = vmul.f32 %v992, 1.442695
      %v1034 = vpow.pop %v1033
      %v1035 = vmul.f32 %v993, 1.442695
      %v1036 = vpow.pop %v1035
      %v1037 = vmul.f32 %v994, 1.442695
      %v1038 = vpow.pop %v1037
      %v1039 = vmul.f32 %v995, 1.442695
      %v1040 = vpow.pop %v1039
      %v1041 = vmul.f32 %v996, 1.442695
      %v1042 = vpow.pop %v1041
      %v1043 = vmul.f32 %v997, 1.442695
      %v1044 = vpow.pop %v1043
      %v1045 = vmul.f32 %v998, 1.442695
      %v1046 = vpow.pop %v1045
      %v1047 = vmul.f32 %v999, 1.442695
      %v1048 = vpow.pop %v1047
      %v1049 = vmul.f32 %v1000, 1.442695
      %v1050 = vpow.pop %v1049
      %v1051 = vmul.f32 %v1001, 1.442695
      %v1052 = vpow.pop %v1051
      %v1053 = vmul.f32 %v1002, 1.442695
      %v1054 = vpow.pop %v1053
      %v1055 = vmul.f32 %v1003, 1.442695
      %v1056 = vpow.pop %v1055
      %v1057 = vmul.f32 %v1004, 1.442695
      %v1058 = vpow.pop %v1057
      %v1059 = vmul.f32 %v1005, 1.442695
      %v1060 = vpow.pop %v1059
      %v1061 = vmul.f32 %v1006, 1.442695
      %v1062 = vpow.pop %v1061
      %v1063 = vmul.f32 %v1007, 1.442695
      %v1064 = vpow.pop %v1063
      %v1065 = vmul.f32 %v1008, 1.442695
      %v1066 = vpow.pop %v1065
      %v1067 = vmul.f32 %v1009, 1.442695
      %v1068 = vpow.pop %v1067
      %v1069 = vmul.f32 %v1010, 1.442695
      %v1070 = vpow.pop %v1069
      %v1071 = vmul.f32 %v1011, 1.442695
      %v1072 = vpow.pop %v1071
      %v1073 = vmul.f32 %v1012, 1.442695
      %v1074 = vpow.pop %v1073
      %v1075 = vmul.f32 %v1013, 1.442695
      %v1076 = vpow.pop %v1075
      %v1077 = vmul.f32 %v1014, 1.442695
      %v1078 = vpow.pop %v1077
      %v1079 = vsel %vm886, %v1016, 0.0
      %1080 = vadd.xlane.f32.xlu0 %v1079
      %v1081 = vpop.xlane.xlu0 %1080
      %v1082 = vsel %vm886, %v1018, 0.0
      %1083 = vadd.xlane.f32.xlu0 %v1082
      %v1084 = vpop.xlane.xlu0 %1083
      %v1085 = vsel %vm886, %v1020, 0.0
      %1086 = vadd.xlane.f32.xlu0 %v1085
      %v1087 = vpop.xlane.xlu0 %1086
      %v1088 = vsel %vm886, %v1022, 0.0
      %1089 = vadd.xlane.f32.xlu0 %v1088
      %v1090 = vpop.xlane.xlu0 %1089
      %v1091 = vsel %vm886, %v1024, 0.0
      %1092 = vadd.xlane.f32.xlu0 %v1091
      %v1093 = vpop.xlane.xlu0 %1092
      %v1094 = vsel %vm886, %v1026, 0.0
      %1095 = vadd.xlane.f32.xlu0 %v1094
      %v1096 = vpop.xlane.xlu0 %1095
      %v1097 = vsel %vm886, %v1028, 0.0
      %1098 = vadd.xlane.f32.xlu0 %v1097
      %v1099 = vpop.xlane.xlu0 %1098
      %v1100 = vsel %vm886, %v1030, 0.0
      %1101 = vadd.xlane.f32.xlu0 %v1100
      %v1102 = vpop.xlane.xlu0 %1101
      %v1103 = vsel %vm886, %v1032, 0.0
      %1104 = vadd.xlane.f32.xlu0 %v1103
      %v1105 = vpop.xlane.xlu0 %1104
      %v1106 = vsel %vm886, %v1034, 0.0
      %1107 = vadd.xlane.f32.xlu0 %v1106
      %v1108 = vpop.xlane.xlu0 %1107
      %v1109 = vsel %vm886, %v1036, 0.0
      %1110 = vadd.xlane.f32.xlu0 %v1109
      %v1111 = vpop.xlane.xlu0 %1110
      %v1112 = vsel %vm886, %v1038, 0.0
      %1113 = vadd.xlane.f32.xlu0 %v1112
      %v1114 = vpop.xlane.xlu0 %1113
      %v1115 = vsel %vm886, %v1040, 0.0
      %1116 = vadd.xlane.f32.xlu0 %v1115
      %v1117 = vpop.xlane.xlu0 %1116
      %v1118 = vsel %vm886, %v1042, 0.0
      %1119 = vadd.xlane.f32.xlu0 %v1118
      %v1120 = vpop.xlane.xlu0 %1119
      %v1121 = vsel %vm886, %v1044, 0.0
      %1122 = vadd.xlane.f32.xlu0 %v1121
      %v1123 = vpop.xlane.xlu0 %1122
      %v1124 = vsel %vm886, %v1046, 0.0
      %1125 = vadd.xlane.f32.xlu0 %v1124
      %v1126 = vpop.xlane.xlu0 %1125
      %v1127 = vsel %vm886, %v1048, 0.0
      %1128 = vadd.xlane.f32.xlu0 %v1127
      %v1129 = vpop.xlane.xlu0 %1128
      %v1130 = vsel %vm886, %v1050, 0.0
      %1131 = vadd.xlane.f32.xlu0 %v1130
      %v1132 = vpop.xlane.xlu0 %1131
      %v1133 = vsel %vm886, %v1052, 0.0
      %1134 = vadd.xlane.f32.xlu0 %v1133
      %v1135 = vpop.xlane.xlu0 %1134
      %v1136 = vsel %vm886, %v1054, 0.0
      %1137 = vadd.xlane.f32.xlu0 %v1136
      %v1138 = vpop.xlane.xlu0 %1137
      %v1139 = vsel %vm886, %v1056, 0.0
      %1140 = vadd.xlane.f32.xlu0 %v1139
      %v1141 = vpop.xlane.xlu0 %1140
      %v1142 = vsel %vm886, %v1058, 0.0
      %1143 = vadd.xlane.f32.xlu0 %v1142
      %v1144 = vpop.xlane.xlu0 %1143
      %v1145 = vsel %vm886, %v1060, 0.0
      %1146 = vadd.xlane.f32.xlu0 %v1145
      %v1147 = vpop.xlane.xlu0 %1146
      %v1148 = vsel %vm886, %v1062, 0.0
      %1149 = vadd.xlane.f32.xlu0 %v1148
      %v1150 = vpop.xlane.xlu0 %1149
      %v1151 = vsel %vm886, %v1064, 0.0
      %1152 = vadd.xlane.f32.xlu0 %v1151
      %v1153 = vpop.xlane.xlu0 %1152
      %v1154 = vsel %vm886, %v1066, 0.0
      %1155 = vadd.xlane.f32.xlu0 %v1154
      %v1156 = vpop.xlane.xlu0 %1155
      %v1157 = vsel %vm886, %v1068, 0.0
      %1158 = vadd.xlane.f32.xlu0 %v1157
      %v1159 = vpop.xlane.xlu0 %1158
      %v1160 = vsel %vm886, %v1070, 0.0
      %1161 = vadd.xlane.f32.xlu0 %v1160
      %v1162 = vpop.xlane.xlu0 %1161
      %v1163 = vsel %vm886, %v1072, 0.0
      %1164 = vadd.xlane.f32.xlu0 %v1163
      %v1165 = vpop.xlane.xlu0 %1164
      %v1166 = vsel %vm886, %v1074, 0.0
      %1167 = vadd.xlane.f32.xlu0 %v1166
      %v1168 = vpop.xlane.xlu0 %1167
      %v1169 = vsel %vm886, %v1076, 0.0
      %1170 = vadd.xlane.f32.xlu0 %v1169
      %v1171 = vpop.xlane.xlu0 %1170
      %v1172 = vsel %vm886, %v1078, 0.0
      %1173 = vadd.xlane.f32.xlu0 %v1172
      %v1174 = vpop.xlane.xlu0 %1173
      %v1175 = vrcp.pop %v1081
      %v1176 = vrcp.pop %v1084
      %v1177 = vrcp.pop %v1087
      %v1178 = vrcp.pop %v1090
      %v1179 = vrcp.pop %v1093
      %v1180 = vrcp.pop %v1096
      %v1181 = vrcp.pop %v1099
      %v1182 = vrcp.pop %v1102
      %v1183 = vrcp.pop %v1105
      %v1184 = vrcp.pop %v1108
      %v1185 = vrcp.pop %v1111
      %v1186 = vrcp.pop %v1114
      %v1187 = vrcp.pop %v1117
      %v1188 = vrcp.pop %v1120
      %v1189 = vrcp.pop %v1123
      %v1190 = vrcp.pop %v1126
      %v1191 = vrcp.pop %v1129
      %v1192 = vrcp.pop %v1132
      %v1193 = vrcp.pop %v1135
      %v1194 = vrcp.pop %v1138
      %v1195 = vrcp.pop %v1141
      %v1196 = vrcp.pop %v1144
      %v1197 = vrcp.pop %v1147
      %v1198 = vrcp.pop %v1150
      %v1199 = vrcp.pop %v1153
      %v1200 = vrcp.pop %v1156
      %v1201 = vrcp.pop %v1159
      %v1202 = vrcp.pop %v1162
      %v1203 = vrcp.pop %v1165
      %v1204 = vrcp.pop %v1168
      %v1205 = vrcp.pop %v1171
      %v1206 = vrcp.pop %v1174
      %v1207 = vmul.f32 %v1016, %v1175
      %v1208 = vmul.f32 %v1018, %v1176
      %v1209 = vmul.f32 %v1020, %v1177
      %v1210 = vmul.f32 %v1022, %v1178
      %v1211 = vmul.f32 %v1024, %v1179
      %v1212 = vmul.f32 %v1026, %v1180
      %v1213 = vmul.f32 %v1028, %v1181
      %v1214 = vmul.f32 %v1030, %v1182
      %v1215 = vmul.f32 %v1032, %v1183
      %v1216 = vmul.f32 %v1034, %v1184
      %v1217 = vmul.f32 %v1036, %v1185
      %v1218 = vmul.f32 %v1038, %v1186
      %v1219 = vmul.f32 %v1040, %v1187
      %v1220 = vmul.f32 %v1042, %v1188
      %v1221 = vmul.f32 %v1044, %v1189
      %v1222 = vmul.f32 %v1046, %v1190
      %v1223 = vmul.f32 %v1048, %v1191
      %v1224 = vmul.f32 %v1050, %v1192
      %v1225 = vmul.f32 %v1052, %v1193
      %v1226 = vmul.f32 %v1054, %v1194
      %v1227 = vmul.f32 %v1056, %v1195
      %v1228 = vmul.f32 %v1058, %v1196
      %v1229 = vmul.f32 %v1060, %v1197
      %v1230 = vmul.f32 %v1062, %v1198
      %v1231 = vmul.f32 %v1064, %v1199
      %v1232 = vmul.f32 %v1066, %v1200
      %v1233 = vmul.f32 %v1068, %v1201
      %v1234 = vmul.f32 %v1070, %v1202
      %v1235 = vmul.f32 %v1072, %v1203
      %v1236 = vmul.f32 %v1074, %v1204
      %v1237 = vmul.f32 %v1076, %v1205
      %v1238 = vmul.f32 %v1078, %v1206
      %1240 = vrot.lane.b32.xlu0 %v212, 64
      %v1241 = vpop.permute.xlu0 %1240
      %v1243 = vmul.f32 %v455, %v1241
      %v1244 = vmul.f32 %v460, %v1241
      %v1245 = vmul.f32 %v465, %v1241
      %v1246 = vmul.f32 %v470, %v1241
      %v1247 = vmul.f32 %v475, %v1241
      %v1248 = vmul.f32 %v480, %v1241
      %v1249 = vmul.f32 %v485, %v1241
      %v1250 = vmul.f32 %v490, %v1241
      %1252 = vrot.lane.b32.xlu0 %v217, 64
      %v1253 = vpop.permute.xlu0 %1252
      %v1255 = vmul.f32 %v455, %v1253
      %v1256 = vmul.f32 %v460, %v1253
      %v1257 = vmul.f32 %v465, %v1253
      %v1258 = vmul.f32 %v470, %v1253
      %v1259 = vmul.f32 %v475, %v1253
      %v1260 = vmul.f32 %v480, %v1253
      %v1261 = vmul.f32 %v485, %v1253
      %v1262 = vmul.f32 %v490, %v1253
      %1271 = vrot.lane.b32.xlu0 %v1255, 64
      %v1272 = vpop.permute.xlu0 %1271
      %1273 = vrot.lane.b32.xlu0 %v1256, 64
      %v1274 = vpop.permute.xlu0 %1273
      %1275 = vrot.lane.b32.xlu0 %v1257, 64
      %v1276 = vpop.permute.xlu0 %1275
      %1277 = vrot.lane.b32.xlu0 %v1258, 64
      %v1278 = vpop.permute.xlu0 %1277
      %1279 = vrot.lane.b32.xlu0 %v1259, 64
      %v1280 = vpop.permute.xlu0 %1279
      %1281 = vrot.lane.b32.xlu0 %v1260, 64
      %v1282 = vpop.permute.xlu0 %1281
      %1283 = vrot.lane.b32.xlu0 %v1261, 64
      %v1284 = vpop.permute.xlu0 %1283
      %1285 = vrot.lane.b32.xlu0 %v1262, 64
      %v1286 = vpop.permute.xlu0 %1285
      %v1296 = vsel %vm886, %v1215, 0
      %v1299 = vsel %vm886, %v1216, 0
      %v1302 = vsel %vm886, %v1217, 0
      %v1305 = vsel %vm886, %v1218, 0
      %v1308 = vsel %vm886, %v1219, 0
      %v1311 = vsel %vm886, %v1220, 0
      %v1314 = vsel %vm886, %v1221, 0
      %v1317 = vsel %vm886, %v1222, 0
      %1319 = vmatprep.subr.mxu0 0.0
      %1320 = vmatpush1.msra.mxu0 %v1272
      %1321 = vmatprep.subr.mxu0 0.0
      %1322 = vmatpush1.msra.mxu0 %v1274
      %1323 = vmatprep.subr.mxu0 0.0
      %1324 = vmatpush1.msra.mxu0 %v1276
      %1325 = vmatprep.subr.mxu0 0.0
      %1326 = vmatpush1.msra.mxu0 %v1278
      %1327 = vmatprep.subr.mxu0 0.0
      %1328 = vmatpush1.msra.mxu0 %v1280
      %1329 = vmatprep.subr.mxu0 0.0
      %1330 = vmatpush1.msra.mxu0 %v1282
      %1331 = vmatprep.subr.mxu0 0.0
      %1332 = vmatpush1.msra.mxu0 %v1284
      %1333 = vmatprep.subr.mxu0 0.0
      %1334 = vmatpush1.msra.mxu0 %v1286
      %1335 = vmatprep.subr.mxu0 0.0
      %1336 = vmatpush1.msra.mxu0 0.0
      %1337 = vmatprep.subr.mxu0 0.0
      %1338 = vmatpush1.msra.mxu0 0.0
      %1339 = vmatprep.subr.mxu0 0.0
      %1340 = vmatpush1.msra.mxu0 0.0
      %1341 = vmatprep.subr.mxu0 0.0
      %1342 = vmatpush1.msra.mxu0 0.0
      %1343 = vmatprep.subr.mxu0 0.0
      %1344 = vmatpush1.msra.mxu0 0.0
      %1345 = vmatprep.subr.mxu0 0.0
      %1346 = vmatpush1.msra.mxu0 0.0
      %1347 = vmatprep.subr.mxu0 0.0
      %1348 = vmatpush1.msra.mxu0 0.0
      %1349 = vmatprep.subr.mxu0 0.0
      %1350 = vmatpush1.msra.mxu0 0.0
      %1351 = vmatprep.subr.mxu0 0.0
      %1352 = vmatpush1.msra.mxu0 0.0
      %1353 = vmatprep.subr.mxu0 0.0
      %1354 = vmatpush1.msra.mxu0 0.0
      %1355 = vmatprep.subr.mxu0 0.0
      %1356 = vmatpush1.msra.mxu0 0.0
      %1357 = vmatprep.subr.mxu0 0.0
      %1358 = vmatpush1.msra.mxu0 0.0
      %1359 = vmatprep.subr.mxu0 0.0
      %1360 = vmatpush1.msra.mxu0 0.0
      %1361 = vmatprep.subr.mxu0 0.0
      %1362 = vmatpush1.msra.mxu0 0.0
      %1363 = vmatprep.subr.mxu0 0.0
      %1364 = vmatpush1.msra.mxu0 0.0
      %1365 = vmatprep.subr.mxu0 0.0
      %1366 = vmatpush1.msra.mxu0 0.0
      %1367 = vmatprep.subr.mxu0 0.0
      %1368 = vmatpush1.msra.mxu0 0.0
      %1369 = vmatprep.subr.mxu0 0.0
      %1370 = vmatpush1.msra.mxu0 0.0
      %1371 = vmatprep.subr.mxu0 0.0
      %1372 = vmatpush1.msra.mxu0 0.0
      %1373 = vmatprep.subr.mxu0 0.0
      %1374 = vmatpush1.msra.mxu0 0.0
      %1375 = vmatprep.subr.mxu0 0.0
      %1376 = vmatpush1.msra.mxu0 0.0
      %1377 = vmatprep.subr.mxu0 0.0
      %1378 = vmatpush1.msra.mxu0 0.0
      %1379 = vmatprep.subr.mxu0 0.0
      %1380 = vmatpush1.msra.mxu0 0.0
      %1381 = vmatprep.subr.mxu0 0.0
      %1382 = vmatpush1.msra.mxu0 0.0
      %1383 = vmatprep.mubr.f32.mxu0 0.0
      %1384 = vmatmul.mubr.f32.gmra.mrb[0].mxu0 %v1296
      %v1385 = vpop.f32.mrb[0].mxu0
      %v1386 = vadd.f32 0.0, %v1385
      %v1387 = vpop.f32.mrb[0].mxu0
      %1388 = vmatprep.mubr.f32.mxu0 0.0
      %1389 = vmatmul.mubr.f32.gmra.mrb[0].mxu0 %v1299
      %v1390 = vpop.f32.mrb[0].mxu0
      %v1391 = vadd.f32 0.0, %v1390
      %v1392 = vpop.f32.mrb[0].mxu0
      %1393 = vmatprep.mubr.f32.mxu0 0.0
      %1394 = vmatmul.mubr.f32.gmra.mrb[0].mxu0 %v1302
      %v1395 = vpop.f32.mrb[0].mxu0
      %v1396 = vadd.f32 0.0, %v1395
      %v1397 = vpop.f32.mrb[0].mxu0
      %1398 = vmatprep.mubr.f32.mxu0 0.0
      %1399 = vmatmul.mubr.f32.gmra.mrb[0].mxu0 %v1305
      %v1400 = vpop.f32.mrb[0].mxu0
      %v1401 = vadd.f32 0.0, %v1400
      %v1402 = vpop.f32.mrb[0].mxu0
      %1403 = vmatprep.mubr.f32.mxu0 0.0
      %1404 = vmatmul.mubr.f32.gmra.mrb[0].mxu0 %v1308
      %v1405 = vpop.f32.mrb[0].mxu0
      %v1406 = vadd.f32 0.0, %v1405
      %v1407 = vpop.f32.mrb[0].mxu0
      %1408 = vmatprep.mubr.f32.mxu0 0.0
      %1409 = vmatmul.mubr.f32.gmra.mrb[0].mxu0 %v1311
      %v1410 = vpop.f32.mrb[0].mxu0
      %v1411 = vadd.f32 0.0, %v1410
      %v1412 = vpop.f32.mrb[0].mxu0
      %1413 = vmatprep.mubr.f32.mxu0 0.0
      %1414 = vmatmul.mubr.f32.gmra.mrb[0].mxu0 %v1314
      %v1415 = vpop.f32.mrb[0].mxu0
      %v1416 = vadd.f32 0.0, %v1415
      %v1417 = vpop.f32.mrb[0].mxu0
      %1418 = vmatprep.mubr.f32.mxu0 0.0
      %1419 = vmatmul.mubr.f32.gmra.mrb[0].mxu0 %v1317
      %v1420 = vpop.f32.mrb[0].mxu0
      %v1421 = vadd.f32 0.0, %v1420
      %v1422 = vpop.f32.mrb[0].mxu0
      %1423 = vdwg.mxu0
      %1432 = vrot.lane.b32.xlu0 %v1243, 64
      %v1433 = vpop.permute.xlu0 %1432
      %1434 = vrot.lane.b32.xlu0 %v1244, 64
      %v1435 = vpop.permute.xlu0 %1434
      %1436 = vrot.lane.b32.xlu0 %v1245, 64
      %v1437 = vpop.permute.xlu0 %1436
      %1438 = vrot.lane.b32.xlu0 %v1246, 64
      %v1439 = vpop.permute.xlu0 %1438
      %1440 = vrot.lane.b32.xlu0 %v1247, 64
      %v1441 = vpop.permute.xlu0 %1440
      %1442 = vrot.lane.b32.xlu0 %v1248, 64
      %v1443 = vpop.permute.xlu0 %1442
      %1444 = vrot.lane.b32.xlu0 %v1249, 64
      %v1445 = vpop.permute.xlu0 %1444
      %1446 = vrot.lane.b32.xlu0 %v1250, 64
      %v1447 = vpop.permute.xlu0 %1446
      %v1457 = vsel %vm886, %v1207, 0
      %v1460 = vsel %vm886, %v1208, 0
      %v1463 = vsel %vm886, %v1209, 0
      %v1466 = vsel %vm886, %v1210, 0
      %v1469 = vsel %vm886, %v1211, 0
      %v1472 = vsel %vm886, %v1212, 0
      %v1475 = vsel %vm886, %v1213, 0
      %v1478 = vsel %vm886, %v1214, 0
      %1480 = vmatprep.subr.mxu0 0.0
      %1481 = vmatpush1.msra.mxu0 %v1433
      %1482 = vmatprep.subr.mxu0 0.0
      %1483 = vmatpush1.msra.mxu0 %v1435
      %1484 = vmatprep.subr.mxu0 0.0
      %1485 = vmatpush1.msra.mxu0 %v1437
      %1486 = vmatprep.subr.mxu0 0.0
      %1487 = vmatpush1.msra.mxu0 %v1439
      %1488 = vmatprep.subr.mxu0 0.0
      %1489 = vmatpush1.msra.mxu0 %v1441
      %1490 = vmatprep.subr.mxu0 0.0
      %1491 = vmatpush1.msra.mxu0 %v1443
      %1492 = vmatprep.subr.mxu0 0.0
      %1493 = vmatpush1.msra.mxu0 %v1445
      %1494 = vmatprep.subr.mxu0 0.0
      %1495 = vmatpush1.msra.mxu0 %v1447
      %1496 = vmatprep.subr.mxu0 0.0
      %1497 = vmatpush1.msra.mxu0 0.0
      %1498 = vmatprep.subr.mxu0 0.0
      %1499 = vmatpush1.msra.mxu0 0.0
      %1500 = vmatprep.subr.mxu0 0.0
      %1501 = vmatpush1.msra.mxu0 0.0
      %1502 = vmatprep.subr.mxu0 0.0
      %1503 = vmatpush1.msra.mxu0 0.0
      %1504 = vmatprep.subr.mxu0 0.0
      %1505 = vmatpush1.msra.mxu0 0.0
      %1506 = vmatprep.subr.mxu0 0.0
      %1507 = vmatpush1.msra.mxu0 0.0
      %1508 = vmatprep.subr.mxu0 0.0
      %1509 = vmatpush1.msra.mxu0 0.0
      %1510 = vmatprep.subr.mxu0 0.0
      %1511 = vmatpush1.msra.mxu0 0.0
      %1512 = vmatprep.subr.mxu0 0.0
      %1513 = vmatpush1.msra.mxu0 0.0
      %1514 = vmatprep.subr.mxu0 0.0
      %1515 = vmatpush1.msra.mxu0 0.0
      %1516 = vmatprep.subr.mxu0 0.0
      %1517 = vmatpush1.msra.mxu0 0.0
      %1518 = vmatprep.subr.mxu0 0.0
      %1519 = vmatpush1.msra.mxu0 0.0
      %1520 = vmatprep.subr.mxu0 0.0
      %1521 = vmatpush1.msra.mxu0 0.0
      %1522 = vmatprep.subr.mxu0 0.0
      %1523 = vmatpush1.msra.mxu0 0.0
      %1524 = vmatprep.subr.mxu0 0.0
      %1525 = vmatpush1.msra.mxu0 0.0
      %1526 = vmatprep.subr.mxu0 0.0
      %1527 = vmatpush1.msra.mxu0 0.0
      %1528 = vmatprep.subr.mxu0 0.0
      %1529 = vmatpush1.msra.mxu0 0.0
      %1530 = vmatprep.subr.mxu0 0.0
      %1531 = vmatpush1.msra.mxu0 0.0
      %1532 = vmatprep.subr.mxu0 0.0
      %1533 = vmatpush1.msra.mxu0 0.0
      %1534 = vmatprep.subr.mxu0 0.0
      %1535 = vmatpush1.msra.mxu0 0.0
      %1536 = vmatprep.subr.mxu0 0.0
      %1537 = vmatpush1.msra.mxu0 0.0
      %1538 = vmatprep.subr.mxu0 0.0
      %1539 = vmatpush1.msra.mxu0 0.0
      %1540 = vmatprep.subr.mxu0 0.0
      %1541 = vmatpush1.msra.mxu0 0.0
      %1542 = vmatprep.subr.mxu0 0.0
      %1543 = vmatpush1.msra.mxu0 0.0
      %1544 = vmatprep.mubr.f32.mxu0 0.0
      %1545 = vmatmul.mubr.f32.gmra.mrb[0].mxu0 %v1457
      %v1546 = vpop.f32.mrb[0].mxu0
      %v1547 = vadd.f32 %v1386, %v1546
      %v1548 = vpop.f32.mrb[0].mxu0
      %1549 = vmatprep.mubr.f32.mxu0 0.0
      %1550 = vmatmul.mubr.f32.gmra.mrb[0].mxu0 %v1460
      %v1551 = vpop.f32.mrb[0].mxu0
      %v1552 = vadd.f32 %v1391, %v1551
      %v1553 = vpop.f32.mrb[0].mxu0
      %1554 = vmatprep.mubr.f32.mxu0 0.0
      %1555 = vmatmul.mubr.f32.gmra.mrb[0].mxu0 %v1463
      %v1556 = vpop.f32.mrb[0].mxu0
      %v1557 = vadd.f32 %v1396, %v1556
      %v1558 = vpop.f32.mrb[0].mxu0
      %1559 = vmatprep.mubr.f32.mxu0 0.0
      %1560 = vmatmul.mubr.f32.gmra.mrb[0].mxu0 %v1466
      %v1561 = vpop.f32.mrb[0].mxu0
      %v1562 = vadd.f32 %v1401, %v1561
      %v1563 = vpop.f32.mrb[0].mxu0
      %1564 = vmatprep.mubr.f32.mxu0 0.0
      %1565 = vmatmul.mubr.f32.gmra.mrb[0].mxu0 %v1469
      %v1566 = vpop.f32.mrb[0].mxu0
      %v1567 = vadd.f32 %v1406, %v1566
      %v1568 = vpop.f32.mrb[0].mxu0
      %1569 = vmatprep.mubr.f32.mxu0 0.0
      %1570 = vmatmul.mubr.f32.gmra.mrb[0].mxu0 %v1472
      %v1571 = vpop.f32.mrb[0].mxu0
      %v1572 = vadd.f32 %v1411, %v1571
      %v1573 = vpop.f32.mrb[0].mxu0
      %1574 = vmatprep.mubr.f32.mxu0 0.0
      %1575 = vmatmul.mubr.f32.gmra.mrb[0].mxu0 %v1475
      %v1576 = vpop.f32.mrb[0].mxu0
      %v1577 = vadd.f32 %v1416, %v1576
      %v1578 = vpop.f32.mrb[0].mxu0
      %1579 = vmatprep.mubr.f32.mxu0 0.0
      %1580 = vmatmul.mubr.f32.gmra.mrb[0].mxu0 %v1478
      %v1581 = vpop.f32.mrb[0].mxu0
      %v1582 = vadd.f32 %v1421, %v1581
      %v1583 = vpop.f32.mrb[0].mxu0
      %1584 = vdwg.mxu0
      %1586 = vrot.lane.b32.xlu0 %v222, 64
      %v1587 = vpop.permute.xlu0 %1586
      %v1589 = vmul.f32 %v455, %v1587
      %v1590 = vmul.f32 %v460, %v1587
      %v1591 = vmul.f32 %v465, %v1587
      %v1592 = vmul.f32 %v470, %v1587
      %v1593 = vmul.f32 %v475, %v1587
      %v1594 = vmul.f32 %v480, %v1587
      %v1595 = vmul.f32 %v485, %v1587
      %v1596 = vmul.f32 %v490, %v1587
      %1605 = vrot.lane.b32.xlu0 %v1589, 64
      %v1606 = vpop.permute.xlu0 %1605
      %1607 = vrot.lane.b32.xlu0 %v1590, 64
      %v1608 = vpop.permute.xlu0 %1607
      %1609 = vrot.lane.b32.xlu0 %v1591, 64
      %v1610 = vpop.permute.xlu0 %1609
      %1611 = vrot.lane.b32.xlu0 %v1592, 64
      %v1612 = vpop.permute.xlu0 %1611
      %1613 = vrot.lane.b32.xlu0 %v1593, 64
      %v1614 = vpop.permute.xlu0 %1613
      %1615 = vrot.lane.b32.xlu0 %v1594, 64
      %v1616 = vpop.permute.xlu0 %1615
      %1617 = vrot.lane.b32.xlu0 %v1595, 64
      %v1618 = vpop.permute.xlu0 %1617
      %1619 = vrot.lane.b32.xlu0 %v1596, 64
      %v1620 = vpop.permute.xlu0 %1619
      %v1630 = vsel %vm886, %v1223, 0
      %v1633 = vsel %vm886, %v1224, 0
      %v1636 = vsel %vm886, %v1225, 0
      %v1639 = vsel %vm886, %v1226, 0
      %v1642 = vsel %vm886, %v1227, 0
      %v1645 = vsel %vm886, %v1228, 0
      %v1648 = vsel %vm886, %v1229, 0
      %v1651 = vsel %vm886, %v1230, 0
      %1653 = vmatprep.subr.mxu0 0.0
      %1654 = vmatpush1.msra.mxu0 %v1606
      %1655 = vmatprep.subr.mxu0 0.0
      %1656 = vmatpush1.msra.mxu0 %v1608
      %1657 = vmatprep.subr.mxu0 0.0
      %1658 = vmatpush1.msra.mxu0 %v1610
      %1659 = vmatprep.subr.mxu0 0.0
      %1660 = vmatpush1.msra.mxu0 %v1612
      %1661 = vmatprep.subr.mxu0 0.0
      %1662 = vmatpush1.msra.mxu0 %v1614
      %1663 = vmatprep.subr.mxu0 0.0
      %1664 = vmatpush1.msra.mxu0 %v1616
      %1665 = vmatprep.subr.mxu0 0.0
      %1666 = vmatpush1.msra.mxu0 %v1618
      %1667 = vmatprep.subr.mxu0 0.0
      %1668 = vmatpush1.msra.mxu0 %v1620
      %1669 = vmatprep.subr.mxu0 0.0
      %1670 = vmatpush1.msra.mxu0 0.0
      %1671 = vmatprep.subr.mxu0 0.0
      %1672 = vmatpush1.msra.mxu0 0.0
      %1673 = vmatprep.subr.mxu0 0.0
      %1674 = vmatpush1.msra.mxu0 0.0
      %1675 = vmatprep.subr.mxu0 0.0
      %1676 = vmatpush1.msra.mxu0 0.0
      %1677 = vmatprep.subr.mxu0 0.0
      %1678 = vmatpush1.msra.mxu0 0.0
      %1679 = vmatprep.subr.mxu0 0.0
      %1680 = vmatpush1.msra.mxu0 0.0
      %1681 = vmatprep.subr.mxu0 0.0
      %1682 = vmatpush1.msra.mxu0 0.0
      %1683 = vmatprep.subr.mxu0 0.0
      %1684 = vmatpush1.msra.mxu0 0.0
      %1685 = vmatprep.subr.mxu0 0.0
      %1686 = vmatpush1.msra.mxu0 0.0
      %1687 = vmatprep.subr.mxu0 0.0
      %1688 = vmatpush1.msra.mxu0 0.0
      %1689 = vmatprep.subr.mxu0 0.0
      %1690 = vmatpush1.msra.mxu0 0.0
      %1691 = vmatprep.subr.mxu0 0.0
      %1692 = vmatpush1.msra.mxu0 0.0
      %1693 = vmatprep.subr.mxu0 0.0
      %1694 = vmatpush1.msra.mxu0 0.0
      %1695 = vmatprep.subr.mxu0 0.0
      %1696 = vmatpush1.msra.mxu0 0.0
      %1697 = vmatprep.subr.mxu0 0.0
      %1698 = vmatpush1.msra.mxu0 0.0
      %1699 = vmatprep.subr.mxu0 0.0
      %1700 = vmatpush1.msra.mxu0 0.0
      %1701 = vmatprep.subr.mxu0 0.0
      %1702 = vmatpush1.msra.mxu0 0.0
      %1703 = vmatprep.subr.mxu0 0.0
      %1704 = vmatpush1.msra.mxu0 0.0
      %1705 = vmatprep.subr.mxu0 0.0
      %1706 = vmatpush1.msra.mxu0 0.0
      %1707 = vmatprep.subr.mxu0 0.0
      %1708 = vmatpush1.msra.mxu0 0.0
      %1709 = vmatprep.subr.mxu0 0.0
      %1710 = vmatpush1.msra.mxu0 0.0
      %1711 = vmatprep.subr.mxu0 0.0
      %1712 = vmatpush1.msra.mxu0 0.0
      %1713 = vmatprep.subr.mxu0 0.0
      %1714 = vmatpush1.msra.mxu0 0.0
      %1715 = vmatprep.subr.mxu0 0.0
      %1716 = vmatpush1.msra.mxu0 0.0
      %1717 = vmatprep.mubr.f32.mxu0 0.0
      %1718 = vmatmul.mubr.f32.gmra.mrb[0].mxu0 %v1630
      %v1719 = vpop.f32.mrb[0].mxu0
      %v1720 = vadd.f32 0.0, %v1719
      %v1721 = vpop.f32.mrb[0].mxu0
      %1722 = vmatprep.mubr.f32.mxu0 0.0
      %1723 = vmatmul.mubr.f32.gmra.mrb[0].mxu0 %v1633
      %v1724 = vpop.f32.mrb[0].mxu0
      %v1725 = vadd.f32 0.0, %v1724
      %v1726 = vpop.f32.mrb[0].mxu0
      %1727 = vmatprep.mubr.f32.mxu0 0.0
      %1728 = vmatmul.mubr.f32.gmra.mrb[0].mxu0 %v1636
      %v1729 = vpop.f32.mrb[0].mxu0
      %v1730 = vadd.f32 0.0, %v1729
      %v1731 = vpop.f32.mrb[0].mxu0
      %1732 = vmatprep.mubr.f32.mxu0 0.0
      %1733 = vmatmul.mubr.f32.gmra.mrb[0].mxu0 %v1639
      %v1734 = vpop.f32.mrb[0].mxu0
      %v1735 = vadd.f32 0.0, %v1734
      %v1736 = vpop.f32.mrb[0].mxu0
      %1737 = vmatprep.mubr.f32.mxu0 0.0
      %1738 = vmatmul.mubr.f32.gmra.mrb[0].mxu0 %v1642
      %v1739 = vpop.f32.mrb[0].mxu0
      %v1740 = vadd.f32 0.0, %v1739
      %v1741 = vpop.f32.mrb[0].mxu0
      %1742 = vmatprep.mubr.f32.mxu0 0.0
      %1743 = vmatmul.mubr.f32.gmra.mrb[0].mxu0 %v1645
      %v1744 = vpop.f32.mrb[0].mxu0
      %v1745 = vadd.f32 0.0, %v1744
      %v1746 = vpop.f32.mrb[0].mxu0
      %1747 = vmatprep.mubr.f32.mxu0 0.0
      %1748 = vmatmul.mubr.f32.gmra.mrb[0].mxu0 %v1648
      %v1749 = vpop.f32.mrb[0].mxu0
      %v1750 = vadd.f32 0.0, %v1749
      %v1751 = vpop.f32.mrb[0].mxu0
      %1752 = vmatprep.mubr.f32.mxu0 0.0
      %1753 = vmatmul.mubr.f32.gmra.mrb[0].mxu0 %v1651
      %v1754 = vpop.f32.mrb[0].mxu0
      %v1755 = vadd.f32 0.0, %v1754
      %v1756 = vpop.f32.mrb[0].mxu0
      %1757 = vdwg.mxu0
      %v1758 = vadd.f32 %v1547, %v1720
      %v1759 = vadd.f32 %v1552, %v1725
      %v1760 = vadd.f32 %v1557, %v1730
      %v1761 = vadd.f32 %v1562, %v1735
      %v1762 = vadd.f32 %v1567, %v1740
      %v1763 = vadd.f32 %v1572, %v1745
      %v1764 = vadd.f32 %v1577, %v1750
      %v1765 = vadd.f32 %v1582, %v1755
      %1767 = vrot.lane.b32.xlu0 %v227, 64
      %v1768 = vpop.permute.xlu0 %1767
      %v1770 = vmul.f32 %v455, %v1768
      %v1771 = vmul.f32 %v460, %v1768
      %v1772 = vmul.f32 %v465, %v1768
      %v1773 = vmul.f32 %v470, %v1768
      %v1774 = vmul.f32 %v475, %v1768
      %v1775 = vmul.f32 %v480, %v1768
      %v1776 = vmul.f32 %v485, %v1768
      %v1777 = vmul.f32 %v490, %v1768
      %1786 = vrot.lane.b32.xlu0 %v1770, 64
      %v1787 = vpop.permute.xlu0 %1786
      %1788 = vrot.lane.b32.xlu0 %v1771, 64
      %v1789 = vpop.permute.xlu0 %1788
      %1790 = vrot.lane.b32.xlu0 %v1772, 64
      %v1791 = vpop.permute.xlu0 %1790
      %1792 = vrot.lane.b32.xlu0 %v1773, 64
      %v1793 = vpop.permute.xlu0 %1792
      %1794 = vrot.lane.b32.xlu0 %v1774, 64
      %v1795 = vpop.permute.xlu0 %1794
      %1796 = vrot.lane.b32.xlu0 %v1775, 64
      %v1797 = vpop.permute.xlu0 %1796
      %1798 = vrot.lane.b32.xlu0 %v1776, 64
      %v1799 = vpop.permute.xlu0 %1798
      %1800 = vrot.lane.b32.xlu0 %v1777, 64
      %v1801 = vpop.permute.xlu0 %1800
      %v1811 = vsel %vm886, %v1231, 0
      %v1814 = vsel %vm886, %v1232, 0
      %v1817 = vsel %vm886, %v1233, 0
      %v1820 = vsel %vm886, %v1234, 0
      %v1823 = vsel %vm886, %v1235, 0
      %v1826 = vsel %vm886, %v1236, 0
      %v1829 = vsel %vm886, %v1237, 0
      %v1832 = vsel %vm886, %v1238, 0
      %1834 = vmatprep.subr.mxu0 0.0
      %1835 = vmatpush1.msra.mxu0 %v1787
      %1836 = vmatprep.subr.mxu0 0.0
      %1837 = vmatpush1.msra.mxu0 %v1789
      %1838 = vmatprep.subr.mxu0 0.0
      %1839 = vmatpush1.msra.mxu0 %v1791
      %1840 = vmatprep.subr.mxu0 0.0
      %1841 = vmatpush1.msra.mxu0 %v1793
      %1842 = vmatprep.subr.mxu0 0.0
      %1843 = vmatpush1.msra.mxu0 %v1795
      %1844 = vmatprep.subr.mxu0 0.0
      %1845 = vmatpush1.msra.mxu0 %v1797
      %1846 = vmatprep.subr.mxu0 0.0
      %1847 = vmatpush1.msra.mxu0 %v1799
      %1848 = vmatprep.subr.mxu0 0.0
      %1849 = vmatpush1.msra.mxu0 %v1801
      %1850 = vmatprep.subr.mxu0 0.0
      %1851 = vmatpush1.msra.mxu0 0.0
      %1852 = vmatprep.subr.mxu0 0.0
      %1853 = vmatpush1.msra.mxu0 0.0
      %1854 = vmatprep.subr.mxu0 0.0
      %1855 = vmatpush1.msra.mxu0 0.0
      %1856 = vmatprep.subr.mxu0 0.0
      %1857 = vmatpush1.msra.mxu0 0.0
      %1858 = vmatprep.subr.mxu0 0.0
      %1859 = vmatpush1.msra.mxu0 0.0
      %1860 = vmatprep.subr.mxu0 0.0
      %1861 = vmatpush1.msra.mxu0 0.0
      %1862 = vmatprep.subr.mxu0 0.0
      %1863 = vmatpush1.msra.mxu0 0.0
      %1864 = vmatprep.subr.mxu0 0.0
      %1865 = vmatpush1.msra.mxu0 0.0
      %1866 = vmatprep.subr.mxu0 0.0
      %1867 = vmatpush1.msra.mxu0 0.0
      %1868 = vmatprep.subr.mxu0 0.0
      %1869 = vmatpush1.msra.mxu0 0.0
      %1870 = vmatprep.subr.mxu0 0.0
      %1871 = vmatpush1.msra.mxu0 0.0
      %1872 = vmatprep.subr.mxu0 0.0
      %1873 = vmatpush1.msra.mxu0 0.0
      %1874 = vmatprep.subr.mxu0 0.0
      %1875 = vmatpush1.msra.mxu0 0.0
      %1876 = vmatprep.subr.mxu0 0.0
      %1877 = vmatpush1.msra.mxu0 0.0
      %1878 = vmatprep.subr.mxu0 0.0
      %1879 = vmatpush1.msra.mxu0 0.0
      %1880 = vmatprep.subr.mxu0 0.0
      %1881 = vmatpush1.msra.mxu0 0.0
      %1882 = vmatprep.subr.mxu0 0.0
      %1883 = vmatpush1.msra.mxu0 0.0
      %1884 = vmatprep.subr.mxu0 0.0
      %1885 = vmatpush1.msra.mxu0 0.0
      %1886 = vmatprep.subr.mxu0 0.0
      %1887 = vmatpush1.msra.mxu0 0.0
      %1888 = vmatprep.subr.mxu0 0.0
      %1889 = vmatpush1.msra.mxu0 0.0
      %1890 = vmatprep.subr.mxu0 0.0
      %1891 = vmatpush1.msra.mxu0 0.0
      %1892 = vmatprep.subr.mxu0 0.0
      %1893 = vmatpush1.msra.mxu0 0.0
      %1894 = vmatprep.subr.mxu0 0.0
      %1895 = vmatpush1.msra.mxu0 0.0
      %1896 = vmatprep.subr.mxu0 0.0
      %1897 = vmatpush1.msra.mxu0 0.0
      %1898 = vmatprep.mubr.f32.mxu0 0.0
      %1899 = vmatmul.mubr.f32.gmra.mrb[0].mxu0 %v1811
      %v1900 = vpop.f32.mrb[0].mxu0
      %v1901 = vadd.f32 0.0, %v1900
      %v1902 = vpop.f32.mrb[0].mxu0
      %1903 = vmatprep.mubr.f32.mxu0 0.0
      %1904 = vmatmul.mubr.f32.gmra.mrb[0].mxu0 %v1814
      %v1905 = vpop.f32.mrb[0].mxu0
      %v1906 = vadd.f32 0.0, %v1905
      %v1907 = vpop.f32.mrb[0].mxu0
      %1908 = vmatprep.mubr.f32.mxu0 0.0
      %1909 = vmatmul.mubr.f32.gmra.mrb[0].mxu0 %v1817
      %v1910 = vpop.f32.mrb[0].mxu0
      %v1911 = vadd.f32 0.0, %v1910
      %v1912 = vpop.f32.mrb[0].mxu0
      %1913 = vmatprep.mubr.f32.mxu0 0.0
      %1914 = vmatmul.mubr.f32.gmra.mrb[0].mxu0 %v1820
      %v1915 = vpop.f32.mrb[0].mxu0
      %v1916 = vadd.f32 0.0, %v1915
      %v1917 = vpop.f32.mrb[0].mxu0
      %1918 = vmatprep.mubr.f32.mxu0 0.0
      %1919 = vmatmul.mubr.f32.gmra.mrb[0].mxu0 %v1823
      %v1920 = vpop.f32.mrb[0].mxu0
      %v1921 = vadd.f32 0.0, %v1920
      %v1922 = vpop.f32.mrb[0].mxu0
      %1923 = vmatprep.mubr.f32.mxu0 0.0
      %1924 = vmatmul.mubr.f32.gmra.mrb[0].mxu0 %v1826
      %v1925 = vpop.f32.mrb[0].mxu0
      %v1926 = vadd.f32 0.0, %v1925
      %v1927 = vpop.f32.mrb[0].mxu0
      %1928 = vmatprep.mubr.f32.mxu0 0.0
      %1929 = vmatmul.mubr.f32.gmra.mrb[0].mxu0 %v1829
      %v1930 = vpop.f32.mrb[0].mxu0
      %v1931 = vadd.f32 0.0, %v1930
      %v1932 = vpop.f32.mrb[0].mxu0
      %1933 = vmatprep.mubr.f32.mxu0 0.0
      %1934 = vmatmul.mubr.f32.gmra.mrb[0].mxu0 %v1832
      %v1935 = vpop.f32.mrb[0].mxu0
      %v1936 = vadd.f32 0.0, %v1935
      %v1937 = vpop.f32.mrb[0].mxu0
      %1938 = vdwg.mxu0
      %v1939 = vadd.f32 %v1758, %v1901
      %v1940 = vadd.f32 %v1759, %v1906
      %v1941 = vadd.f32 %v1760, %v1911
      %v1942 = vadd.f32 %v1761, %v1916
      %v1943 = vadd.f32 %v1762, %v1921
      %v1944 = vadd.f32 %v1763, %v1926
      %v1945 = vadd.f32 %v1764, %v1931
      %v1946 = vadd.f32 %v1765, %v1936
      %v1947 = vld [vmem:[%s2] sm:$0xff]
      %v1948 = vld [vmem:[%s2 + $0x8] sm:$0xff]
      %v1949 = vld [vmem:[%s2 + $0x10] sm:$0xff]
      %v1950 = vld [vmem:[%s2 + $0x18] sm:$0xff]
      %v1952 = vsel %vm230, %v1939, 0
      %v1955 = vsel %vm230, %v1940, 0
      %v1958 = vsel %vm230, %v1941, 0
      %v1961 = vsel %vm230, %v1942, 0
      %v1964 = vsel %vm230, %v1943, 0
      %v1967 = vsel %vm230, %v1944, 0
      %v1970 = vsel %vm230, %v1945, 0
      %v1973 = vsel %vm230, %v1946, 0
      %1975 = vmatprep.subr.mxu0 0.0
      %1976 = vmatpush1.msra.mxu0 %v1947
      %1977 = vmatprep.subr.mxu0 0.0
      %1978 = vmatpush1.msra.mxu0 %v1948
      %1979 = vmatprep.subr.mxu0 0.0
      %1980 = vmatpush1.msra.mxu0 %v1949
      %1981 = vmatprep.subr.mxu0 0.0
      %1982 = vmatpush1.msra.mxu0 %v1950
      %1983 = vmatprep.subr.mxu0 0.0
      %1984 = vmatpush1.msra.mxu0 0.0
      %1985 = vmatprep.subr.mxu0 0.0
      %1986 = vmatpush1.msra.mxu0 0.0
      %1987 = vmatprep.subr.mxu0 0.0
      %1988 = vmatpush1.msra.mxu0 0.0
      %1989 = vmatprep.subr.mxu0 0.0
      %1990 = vmatpush1.msra.mxu0 0.0
      %1991 = vmatprep.subr.mxu0 0.0
      %1992 = vmatpush1.msra.mxu0 0.0
      %1993 = vmatprep.subr.mxu0 0.0
      %1994 = vmatpush1.msra.mxu0 0.0
      %1995 = vmatprep.subr.mxu0 0.0
      %1996 = vmatpush1.msra.mxu0 0.0
      %1997 = vmatprep.subr.mxu0 0.0
      %1998 = vmatpush1.msra.mxu0 0.0
      %1999 = vmatprep.subr.mxu0 0.0
      %2000 = vmatpush1.msra.mxu0 0.0
      %2001 = vmatprep.subr.mxu0 0.0
      %2002 = vmatpush1.msra.mxu0 0.0
      %2003 = vmatprep.subr.mxu0 0.0
      %2004 = vmatpush1.msra.mxu0 0.0
      %2005 = vmatprep.subr.mxu0 0.0
      %2006 = vmatpush1.msra.mxu0 0.0
      %2007 = vmatprep.subr.mxu0 0.0
      %2008 = vmatpush1.msra.mxu0 0.0
      %2009 = vmatprep.subr.mxu0 0.0
      %2010 = vmatpush1.msra.mxu0 0.0
      %2011 = vmatprep.subr.mxu0 0.0
      %2012 = vmatpush1.msra.mxu0 0.0
      %2013 = vmatprep.subr.mxu0 0.0
      %2014 = vmatpush1.msra.mxu0 0.0
      %2015 = vmatprep.subr.mxu0 0.0
      %2016 = vmatpush1.msra.mxu0 0.0
      %2017 = vmatprep.subr.mxu0 0.0
      %2018 = vmatpush1.msra.mxu0 0.0
      %2019 = vmatprep.subr.mxu0 0.0
      %2020 = vmatpush1.msra.mxu0 0.0
      %2021 = vmatprep.subr.mxu0 0.0
      %2022 = vmatpush1.msra.mxu0 0.0
      %2023 = vmatprep.subr.mxu0 0.0
      %2024 = vmatpush1.msra.mxu0 0.0
      %2025 = vmatprep.subr.mxu0 0.0
      %2026 = vmatpush1.msra.mxu0 0.0
      %2027 = vmatprep.subr.mxu0 0.0
      %2028 = vmatpush1.msra.mxu0 0.0
      %2029 = vmatprep.subr.mxu0 0.0
      %2030 = vmatpush1.msra.mxu0 0.0
      %2031 = vmatprep.subr.mxu0 0.0
      %2032 = vmatpush1.msra.mxu0 0.0
      %2033 = vmatprep.subr.mxu0 0.0
      %2034 = vmatpush1.msra.mxu0 0.0
      %2035 = vmatprep.subr.mxu0 0.0
      %2036 = vmatpush1.msra.mxu0 0.0
      %2037 = vmatprep.subr.mxu0 0.0
      %2038 = vmatpush1.msra.mxu0 0.0
      %2039 = vmatprep.mubr.f32.mxu0 0.0
      %2040 = vmatmul.mubr.f32.gmra.mrb[0].mxu0 %v1952
      %v2041 = vpop.f32.mrb[0].mxu0
      %v2042 = vadd.f32 %v352, %v2041
      %v2043 = vpop.f32.mrb[0].mxu0
      %2044 = vmatprep.mubr.f32.mxu0 0.0
      %2045 = vmatmul.mubr.f32.gmra.mrb[0].mxu0 %v1955
      %v2046 = vpop.f32.mrb[0].mxu0
      %v2047 = vadd.f32 %v353, %v2046
      %v2048 = vpop.f32.mrb[0].mxu0
      %2049 = vmatprep.mubr.f32.mxu0 0.0
      %2050 = vmatmul.mubr.f32.gmra.mrb[0].mxu0 %v1958
      %v2051 = vpop.f32.mrb[0].mxu0
      %v2052 = vadd.f32 %v354, %v2051
      %v2053 = vpop.f32.mrb[0].mxu0
      %2054 = vmatprep.mubr.f32.mxu0 0.0
      %2055 = vmatmul.mubr.f32.gmra.mrb[0].mxu0 %v1961
      %v2056 = vpop.f32.mrb[0].mxu0
      %v2057 = vadd.f32 %v355, %v2056
      %v2058 = vpop.f32.mrb[0].mxu0
      %2059 = vmatprep.mubr.f32.mxu0 0.0
      %2060 = vmatmul.mubr.f32.gmra.mrb[0].mxu0 %v1964
      %v2061 = vpop.f32.mrb[0].mxu0
      %v2062 = vadd.f32 %v356, %v2061
      %v2063 = vpop.f32.mrb[0].mxu0
      %2064 = vmatprep.mubr.f32.mxu0 0.0
      %2065 = vmatmul.mubr.f32.gmra.mrb[0].mxu0 %v1967
      %v2066 = vpop.f32.mrb[0].mxu0
      %v2067 = vadd.f32 %v357, %v2066
      %v2068 = vpop.f32.mrb[0].mxu0
      %2069 = vmatprep.mubr.f32.mxu0 0.0
      %2070 = vmatmul.mubr.f32.gmra.mrb[0].mxu0 %v1970
      %v2071 = vpop.f32.mrb[0].mxu0
      %v2072 = vadd.f32 %v358, %v2071
      %v2073 = vpop.f32.mrb[0].mxu0
      %2074 = vmatprep.mubr.f32.mxu0 0.0
      %2075 = vmatmul.mubr.f32.gmra.mrb[0].mxu0 %v1973
      %v2076 = vpop.f32.mrb[0].mxu0
      %v2077 = vadd.f32 %v359, %v2076
      %v2078 = vpop.f32.mrb[0].mxu0
      %2079 = vdwg.mxu0
      %v2080 = vld [vmem:[%s3 + $0x2] sm:$0x1]
      %v2081 = vld [vmem:[%s3 + $0x3] sm:$0x1]
      %v2082 = vld [vmem:[%s2 + $0x20] sm:$0xff]
      %v2083 = vld [vmem:[%s2 + $0x28] sm:$0xff]
      %v2084 = vld [vmem:[%s2 + $0x30] sm:$0xff]
      %v2085 = vld [vmem:[%s2 + $0x38] sm:$0xff]
      %v2086 = vld [vmem:[%s3 + $0x4] sm:$0x1]
      %v2087 = vld [vmem:[%s2 + $0x40] sm:$0xff]
      %v2088 = vld [vmem:[%s2 + $0x48] sm:$0xff]
      %v2089 = vld [vmem:[%s2 + $0x50] sm:$0xff]
      %v2090 = vld [vmem:[%s2 + $0x58] sm:$0xff]
      %v2091 = vld [vmem:[%s3 + $0x5] sm:$0x1]
      %v2092 = vsel %vm230, %v2042, 0.0
      %2093 = vadd.xlane.f32.xlu0 %v2092
      %v2094 = vpop.xlane.xlu0 %2093
      %v2095 = vsel %vm230, %v2047, 0.0
      %2096 = vadd.xlane.f32.xlu0 %v2095
      %v2097 = vpop.xlane.xlu0 %2096
      %v2098 = vsel %vm230, %v2052, 0.0
      %2099 = vadd.xlane.f32.xlu0 %v2098
      %v2100 = vpop.xlane.xlu0 %2099
      %v2101 = vsel %vm230, %v2057, 0.0
      %2102 = vadd.xlane.f32.xlu0 %v2101
      %v2103 = vpop.xlane.xlu0 %2102
      %v2104 = vsel %vm230, %v2062, 0.0
      %2105 = vadd.xlane.f32.xlu0 %v2104
      %v2106 = vpop.xlane.xlu0 %2105
      %v2107 = vsel %vm230, %v2067, 0.0
      %2108 = vadd.xlane.f32.xlu0 %v2107
      %v2109 = vpop.xlane.xlu0 %2108
      %v2110 = vsel %vm230, %v2072, 0.0
      %2111 = vadd.xlane.f32.xlu0 %v2110
      %v2112 = vpop.xlane.xlu0 %2111
      %v2113 = vsel %vm230, %v2077, 0.0
      %2114 = vadd.xlane.f32.xlu0 %v2113
      %v2115 = vpop.xlane.xlu0 %2114
      %v2116 = vmul.f32 %v2094, %v255
      %v2117 = vmul.f32 %v2097, %v255
      %v2118 = vmul.f32 %v2100, %v255
      %v2119 = vmul.f32 %v2103, %v255
      %v2120 = vmul.f32 %v2106, %v255
      %v2121 = vmul.f32 %v2109, %v255
      %v2122 = vmul.f32 %v2112, %v255
      %v2123 = vmul.f32 %v2115, %v255
      %v2124 = vsub.f32 %v2042, %v2116
      %v2125 = vsub.f32 %v2047, %v2117
      %v2126 = vsub.f32 %v2052, %v2118
      %v2127 = vsub.f32 %v2057, %v2119
      %v2128 = vsub.f32 %v2062, %v2120
      %v2129 = vsub.f32 %v2067, %v2121
      %v2130 = vsub.f32 %v2072, %v2122
      %v2131 = vsub.f32 %v2077, %v2123
      %v2132 = vmul.f32 %v2124, %v2124
      %v2133 = vmul.f32 %v2125, %v2125
      %v2134 = vmul.f32 %v2126, %v2126
      %v2135 = vmul.f32 %v2127, %v2127
      %v2136 = vmul.f32 %v2128, %v2128
      %v2137 = vmul.f32 %v2129, %v2129
      %v2138 = vmul.f32 %v2130, %v2130
      %v2139 = vmul.f32 %v2131, %v2131
      %v2140 = vsel %vm230, %v2132, 0.0
      %2141 = vadd.xlane.f32.xlu0 %v2140
      %v2142 = vpop.xlane.xlu0 %2141
      %v2143 = vsel %vm230, %v2133, 0.0
      %2144 = vadd.xlane.f32.xlu0 %v2143
      %v2145 = vpop.xlane.xlu0 %2144
      %v2146 = vsel %vm230, %v2134, 0.0
      %2147 = vadd.xlane.f32.xlu0 %v2146
      %v2148 = vpop.xlane.xlu0 %2147
      %v2149 = vsel %vm230, %v2135, 0.0
      %2150 = vadd.xlane.f32.xlu0 %v2149
      %v2151 = vpop.xlane.xlu0 %2150
      %v2152 = vsel %vm230, %v2136, 0.0
      %2153 = vadd.xlane.f32.xlu0 %v2152
      %v2154 = vpop.xlane.xlu0 %2153
      %v2155 = vsel %vm230, %v2137, 0.0
      %2156 = vadd.xlane.f32.xlu0 %v2155
      %v2157 = vpop.xlane.xlu0 %2156
      %v2158 = vsel %vm230, %v2138, 0.0
      %2159 = vadd.xlane.f32.xlu0 %v2158
      %v2160 = vpop.xlane.xlu0 %2159
      %v2161 = vsel %vm230, %v2139, 0.0
      %2162 = vadd.xlane.f32.xlu0 %v2161
      %v2163 = vpop.xlane.xlu0 %2162
      %v2164 = vmul.f32 %v2142, %v255
      %v2165 = vmul.f32 %v2145, %v255
      %v2166 = vmul.f32 %v2148, %v255
      %v2167 = vmul.f32 %v2151, %v255
      %v2168 = vmul.f32 %v2154, %v255
      %v2169 = vmul.f32 %v2157, %v255
      %v2170 = vmul.f32 %v2160, %v255
      %v2171 = vmul.f32 %v2163, %v255
      %v2172 = vadd.f32 %v2164, 1e-06
      %v2173 = vadd.f32 %v2165, 1e-06
      %v2174 = vadd.f32 %v2166, 1e-06
      %v2175 = vadd.f32 %v2167, 1e-06
      %v2176 = vadd.f32 %v2168, 1e-06
      %v2177 = vadd.f32 %v2169, 1e-06
      %v2178 = vadd.f32 %v2170, 1e-06
      %v2179 = vadd.f32 %v2171, 1e-06
      %v2180 = vrsqrt.pop %v2172
      %v2181 = vrsqrt.pop %v2173
      %v2182 = vrsqrt.pop %v2174
      %v2183 = vrsqrt.pop %v2175
      %v2184 = vrsqrt.pop %v2176
      %v2185 = vrsqrt.pop %v2177
      %v2186 = vrsqrt.pop %v2178
      %v2187 = vrsqrt.pop %v2179
      %v2188 = vmul.f32 %v2124, %v2180
      %v2189 = vmul.f32 %v2125, %v2181
      %v2190 = vmul.f32 %v2126, %v2182
      %v2191 = vmul.f32 %v2127, %v2183
      %v2192 = vmul.f32 %v2128, %v2184
      %v2193 = vmul.f32 %v2129, %v2185
      %v2194 = vmul.f32 %v2130, %v2186
      %v2195 = vmul.f32 %v2131, %v2187
      %v2196 = vlaneseq
      %v2197 = vshrl.u32 %v2196, 7
      %v2198 = vsub.s32 0, %v2197
      %v2199 = vrot.slane %v2080, %v2198
      %v2200 = vmul.f32 %v2188, %v2199
      %v2201 = vmul.f32 %v2189, %v2199
      %v2202 = vmul.f32 %v2190, %v2199
      %v2203 = vmul.f32 %v2191, %v2199
      %v2204 = vmul.f32 %v2192, %v2199
      %v2205 = vmul.f32 %v2193, %v2199
      %v2206 = vmul.f32 %v2194, %v2199
      %v2207 = vmul.f32 %v2195, %v2199
      %v2208 = vlaneseq
      %v2209 = vshrl.u32 %v2208, 7
      %v2210 = vsub.s32 0, %v2209
      %v2211 = vrot.slane %v2081, %v2210
      %v2212 = vadd.f32 %v2200, %v2211
      %v2213 = vadd.f32 %v2201, %v2211
      %v2214 = vadd.f32 %v2202, %v2211
      %v2215 = vadd.f32 %v2203, %v2211
      %v2216 = vadd.f32 %v2204, %v2211
      %v2217 = vadd.f32 %v2205, %v2211
      %v2218 = vadd.f32 %v2206, %v2211
      %v2219 = vadd.f32 %v2207, %v2211
      %v2220 = vlaneseq
      %v2221 = vshrl.u32 %v2220, 7
      %v2222 = vsub.s32 0, %v2221
      %v2223 = vrot.slane %v2086, %v2222
      %v2225 = vsel %vm230, %v2212, 0
      %v2228 = vsel %vm230, %v2213, 0
      %v2231 = vsel %vm230, %v2214, 0
      %v2234 = vsel %vm230, %v2215, 0
      %v2237 = vsel %vm230, %v2216, 0
      %v2240 = vsel %vm230, %v2217, 0
      %v2243 = vsel %vm230, %v2218, 0
      %v2246 = vsel %vm230, %v2219, 0
      %2248 = vmatprep.subr.mxu0 0.0
      %2249 = vmatpush1.msra.mxu0 %v2082
      %2250 = vmatprep.subr.mxu0 0.0
      %2251 = vmatpush1.msra.mxu0 %v2083
      %2252 = vmatprep.subr.mxu0 0.0
      %2253 = vmatpush1.msra.mxu0 %v2084
      %2254 = vmatprep.subr.mxu0 0.0
      %2255 = vmatpush1.msra.mxu0 %v2085
      %2256 = vmatprep.subr.mxu0 0.0
      %2257 = vmatpush1.msra.mxu0 0.0
      %2258 = vmatprep.subr.mxu0 0.0
      %2259 = vmatpush1.msra.mxu0 0.0
      %2260 = vmatprep.subr.mxu0 0.0
      %2261 = vmatpush1.msra.mxu0 0.0
      %2262 = vmatprep.subr.mxu0 0.0
      %2263 = vmatpush1.msra.mxu0 0.0
      %2264 = vmatprep.subr.mxu0 0.0
      %2265 = vmatpush1.msra.mxu0 0.0
      %2266 = vmatprep.subr.mxu0 0.0
      %2267 = vmatpush1.msra.mxu0 0.0
      %2268 = vmatprep.subr.mxu0 0.0
      %2269 = vmatpush1.msra.mxu0 0.0
      %2270 = vmatprep.subr.mxu0 0.0
      %2271 = vmatpush1.msra.mxu0 0.0
      %2272 = vmatprep.subr.mxu0 0.0
      %2273 = vmatpush1.msra.mxu0 0.0
      %2274 = vmatprep.subr.mxu0 0.0
      %2275 = vmatpush1.msra.mxu0 0.0
      %2276 = vmatprep.subr.mxu0 0.0
      %2277 = vmatpush1.msra.mxu0 0.0
      %2278 = vmatprep.subr.mxu0 0.0
      %2279 = vmatpush1.msra.mxu0 0.0
      %2280 = vmatprep.subr.mxu0 0.0
      %2281 = vmatpush1.msra.mxu0 0.0
      %2282 = vmatprep.subr.mxu0 0.0
      %2283 = vmatpush1.msra.mxu0 0.0
      %2284 = vmatprep.subr.mxu0 0.0
      %2285 = vmatpush1.msra.mxu0 0.0
      %2286 = vmatprep.subr.mxu0 0.0
      %2287 = vmatpush1.msra.mxu0 0.0
      %2288 = vmatprep.subr.mxu0 0.0
      %2289 = vmatpush1.msra.mxu0 0.0
      %2290 = vmatprep.subr.mxu0 0.0
      %2291 = vmatpush1.msra.mxu0 0.0
      %2292 = vmatprep.subr.mxu0 0.0
      %2293 = vmatpush1.msra.mxu0 0.0
      %2294 = vmatprep.subr.mxu0 0.0
      %2295 = vmatpush1.msra.mxu0 0.0
      %2296 = vmatprep.subr.mxu0 0.0
      %2297 = vmatpush1.msra.mxu0 0.0
      %2298 = vmatprep.subr.mxu0 0.0
      %2299 = vmatpush1.msra.mxu0 0.0
      %2300 = vmatprep.subr.mxu0 0.0
      %2301 = vmatpush1.msra.mxu0 0.0
      %2302 = vmatprep.subr.mxu0 0.0
      %2303 = vmatpush1.msra.mxu0 0.0
      %2304 = vmatprep.subr.mxu0 0.0
      %2305 = vmatpush1.msra.mxu0 0.0
      %2306 = vmatprep.subr.mxu0 0.0
      %2307 = vmatpush1.msra.mxu0 0.0
      %2308 = vmatprep.subr.mxu0 0.0
      %2309 = vmatpush1.msra.mxu0 0.0
      %2310 = vmatprep.subr.mxu0 0.0
      %2311 = vmatpush1.msra.mxu0 0.0
      %2312 = vmatprep.mubr.f32.mxu0 0.0
      %2313 = vmatmul.mubr.f32.gmra.mrb[0].mxu0 %v2225
      %v2314 = vpop.f32.mrb[0].mxu0
      %v2315 = vadd.f32 %v2223, %v2314
      %v2316 = vpop.f32.mrb[0].mxu0
      %2317 = vmatprep.mubr.f32.mxu0 0.0
      %2318 = vmatmul.mubr.f32.gmra.mrb[0].mxu0 %v2228
      %v2319 = vpop.f32.mrb[0].mxu0
      %v2320 = vadd.f32 %v2223, %v2319
      %v2321 = vpop.f32.mrb[0].mxu0
      %2322 = vmatprep.mubr.f32.mxu0 0.0
      %2323 = vmatmul.mubr.f32.gmra.mrb[0].mxu0 %v2231
      %v2324 = vpop.f32.mrb[0].mxu0
      %v2325 = vadd.f32 %v2223, %v2324
      %v2326 = vpop.f32.mrb[0].mxu0
      %2327 = vmatprep.mubr.f32.mxu0 0.0
      %2328 = vmatmul.mubr.f32.gmra.mrb[0].mxu0 %v2234
      %v2329 = vpop.f32.mrb[0].mxu0
      %v2330 = vadd.f32 %v2223, %v2329
      %v2331 = vpop.f32.mrb[0].mxu0
      %2332 = vmatprep.mubr.f32.mxu0 0.0
      %2333 = vmatmul.mubr.f32.gmra.mrb[0].mxu0 %v2237
      %v2334 = vpop.f32.mrb[0].mxu0
      %v2335 = vadd.f32 %v2223, %v2334
      %v2336 = vpop.f32.mrb[0].mxu0
      %2337 = vmatprep.mubr.f32.mxu0 0.0
      %2338 = vmatmul.mubr.f32.gmra.mrb[0].mxu0 %v2240
      %v2339 = vpop.f32.mrb[0].mxu0
      %v2340 = vadd.f32 %v2223, %v2339
      %v2341 = vpop.f32.mrb[0].mxu0
      %2342 = vmatprep.mubr.f32.mxu0 0.0
      %2343 = vmatmul.mubr.f32.gmra.mrb[0].mxu0 %v2243
      %v2344 = vpop.f32.mrb[0].mxu0
      %v2345 = vadd.f32 %v2223, %v2344
      %v2346 = vpop.f32.mrb[0].mxu0
      %2347 = vmatprep.mubr.f32.mxu0 0.0
      %2348 = vmatmul.mubr.f32.gmra.mrb[0].mxu0 %v2246
      %v2349 = vpop.f32.mrb[0].mxu0
      %v2350 = vadd.f32 %v2223, %v2349
      %v2351 = vpop.f32.mrb[0].mxu0
      %2352 = vdwg.mxu0
      %v2353 = vmax.f32 %v2315, 0.0
      %v2354 = vmax.f32 %v2320, 0.0
      %v2355 = vmax.f32 %v2325, 0.0
      %v2356 = vmax.f32 %v2330, 0.0
      %v2357 = vmax.f32 %v2335, 0.0
      %v2358 = vmax.f32 %v2340, 0.0
      %v2359 = vmax.f32 %v2345, 0.0
      %v2360 = vmax.f32 %v2350, 0.0
      %v2361 = vlaneseq
      %v2362 = vshrl.u32 %v2361, 7
      %v2363 = vsub.s32 0, %v2362
      %v2364 = vrot.slane %v2091, %v2363
      %v2366 = vsel %vm230, %v2353, 0
      %v2369 = vsel %vm230, %v2354, 0
      %v2372 = vsel %vm230, %v2355, 0
      %v2375 = vsel %vm230, %v2356, 0
      %v2378 = vsel %vm230, %v2357, 0
      %v2381 = vsel %vm230, %v2358, 0
      %v2384 = vsel %vm230, %v2359, 0
      %v2387 = vsel %vm230, %v2360, 0
      %2389 = vmatprep.subr.mxu0 0.0
      %2390 = vmatpush1.msra.mxu0 %v2087
      %2391 = vmatprep.subr.mxu0 0.0
      %2392 = vmatpush1.msra.mxu0 %v2088
      %2393 = vmatprep.subr.mxu0 0.0
      %2394 = vmatpush1.msra.mxu0 %v2089
      %2395 = vmatprep.subr.mxu0 0.0
      %2396 = vmatpush1.msra.mxu0 %v2090
      %2397 = vmatprep.subr.mxu0 0.0
      %2398 = vmatpush1.msra.mxu0 0.0
      %2399 = vmatprep.subr.mxu0 0.0
      %2400 = vmatpush1.msra.mxu0 0.0
      %2401 = vmatprep.subr.mxu0 0.0
      %2402 = vmatpush1.msra.mxu0 0.0
      %2403 = vmatprep.subr.mxu0 0.0
      %2404 = vmatpush1.msra.mxu0 0.0
      %2405 = vmatprep.subr.mxu0 0.0
      %2406 = vmatpush1.msra.mxu0 0.0
      %2407 = vmatprep.subr.mxu0 0.0
      %2408 = vmatpush1.msra.mxu0 0.0
      %2409 = vmatprep.subr.mxu0 0.0
      %2410 = vmatpush1.msra.mxu0 0.0
      %2411 = vmatprep.subr.mxu0 0.0
      %2412 = vmatpush1.msra.mxu0 0.0
      %2413 = vmatprep.subr.mxu0 0.0
      %2414 = vmatpush1.msra.mxu0 0.0
      %2415 = vmatprep.subr.mxu0 0.0
      %2416 = vmatpush1.msra.mxu0 0.0
      %2417 = vmatprep.subr.mxu0 0.0
      %2418 = vmatpush1.msra.mxu0 0.0
      %2419 = vmatprep.subr.mxu0 0.0
      %2420 = vmatpush1.msra.mxu0 0.0
      %2421 = vmatprep.subr.mxu0 0.0
      %2422 = vmatpush1.msra.mxu0 0.0
      %2423 = vmatprep.subr.mxu0 0.0
      %2424 = vmatpush1.msra.mxu0 0.0
      %2425 = vmatprep.subr.mxu0 0.0
      %2426 = vmatpush1.msra.mxu0 0.0
      %2427 = vmatprep.subr.mxu0 0.0
      %2428 = vmatpush1.msra.mxu0 0.0
      %2429 = vmatprep.subr.mxu0 0.0
      %2430 = vmatpush1.msra.mxu0 0.0
      %2431 = vmatprep.subr.mxu0 0.0
      %2432 = vmatpush1.msra.mxu0 0.0
      %2433 = vmatprep.subr.mxu0 0.0
      %2434 = vmatpush1.msra.mxu0 0.0
      %2435 = vmatprep.subr.mxu0 0.0
      %2436 = vmatpush1.msra.mxu0 0.0
      %2437 = vmatprep.subr.mxu0 0.0
      %2438 = vmatpush1.msra.mxu0 0.0
      %2439 = vmatprep.subr.mxu0 0.0
      %2440 = vmatpush1.msra.mxu0 0.0
      %2441 = vmatprep.subr.mxu0 0.0
      %2442 = vmatpush1.msra.mxu0 0.0
      %2443 = vmatprep.subr.mxu0 0.0
      %2444 = vmatpush1.msra.mxu0 0.0
      %2445 = vmatprep.subr.mxu0 0.0
      %2446 = vmatpush1.msra.mxu0 0.0
      %2447 = vmatprep.subr.mxu0 0.0
      %2448 = vmatpush1.msra.mxu0 0.0
      %2449 = vmatprep.subr.mxu0 0.0
      %2450 = vmatpush1.msra.mxu0 0.0
      %2451 = vmatprep.subr.mxu0 0.0
      %2452 = vmatpush1.msra.mxu0 0.0
      %2453 = vmatprep.mubr.f32.mxu0 0.0
      %2454 = vmatmul.mubr.f32.gmra.mrb[0].mxu0 %v2366
      %v2455 = vpop.f32.mrb[0].mxu0
      %v2456 = vadd.f32 %v2364, %v2455
      %v2457 = vpop.f32.mrb[0].mxu0
      %2458 = vmatprep.mubr.f32.mxu0 0.0
      %2459 = vmatmul.mubr.f32.gmra.mrb[0].mxu0 %v2369
      %v2460 = vpop.f32.mrb[0].mxu0
      %v2461 = vadd.f32 %v2364, %v2460
      %v2462 = vpop.f32.mrb[0].mxu0
      %2463 = vmatprep.mubr.f32.mxu0 0.0
      %2464 = vmatmul.mubr.f32.gmra.mrb[0].mxu0 %v2372
      %v2465 = vpop.f32.mrb[0].mxu0
      %v2466 = vadd.f32 %v2364, %v2465
      %v2467 = vpop.f32.mrb[0].mxu0
      %2468 = vmatprep.mubr.f32.mxu0 0.0
      %2469 = vmatmul.mubr.f32.gmra.mrb[0].mxu0 %v2375
      %v2470 = vpop.f32.mrb[0].mxu0
      %v2471 = vadd.f32 %v2364, %v2470
      %v2472 = vpop.f32.mrb[0].mxu0
      %2473 = vmatprep.mubr.f32.mxu0 0.0
      %2474 = vmatmul.mubr.f32.gmra.mrb[0].mxu0 %v2378
      %v2475 = vpop.f32.mrb[0].mxu0
      %v2476 = vadd.f32 %v2364, %v2475
      %v2477 = vpop.f32.mrb[0].mxu0
      %2478 = vmatprep.mubr.f32.mxu0 0.0
      %2479 = vmatmul.mubr.f32.gmra.mrb[0].mxu0 %v2381
      %v2480 = vpop.f32.mrb[0].mxu0
      %v2481 = vadd.f32 %v2364, %v2480
      %v2482 = vpop.f32.mrb[0].mxu0
      %2483 = vmatprep.mubr.f32.mxu0 0.0
      %2484 = vmatmul.mubr.f32.gmra.mrb[0].mxu0 %v2384
      %v2485 = vpop.f32.mrb[0].mxu0
      %v2486 = vadd.f32 %v2364, %v2485
      %v2487 = vpop.f32.mrb[0].mxu0
      %2488 = vmatprep.mubr.f32.mxu0 0.0
      %2489 = vmatmul.mubr.f32.gmra.mrb[0].mxu0 %v2387
      %v2490 = vpop.f32.mrb[0].mxu0
      %v2491 = vadd.f32 %v2364, %v2490
      %v2492 = vpop.f32.mrb[0].mxu0
      %2493 = vdwg.mxu0
      %v2494 = vadd.f32 %v2456, %v2042
      %v2495 = vadd.f32 %v2461, %v2047
      %v2496 = vadd.f32 %v2466, %v2052
      %v2497 = vadd.f32 %v2471, %v2057
      %v2498 = vadd.f32 %v2476, %v2062
      %v2499 = vadd.f32 %v2481, %v2067
      %v2500 = vadd.f32 %v2486, %v2072
      %v2501 = vadd.f32 %v2491, %v2077
      %v2502 = vsel %vm230, %v2494, 0.0
      %v2503 = vsel %vm230, %v2495, 0.0
      %v2504 = vadd.f32 %v2502, %v2503
      %v2505 = vsel %vm230, %v2496, 0.0
      %v2506 = vadd.f32 %v2504, %v2505
      %v2507 = vsel %vm230, %v2497, 0.0
      %v2508 = vadd.f32 %v2506, %v2507
      %v2509 = vsel %vm230, %v2498, 0.0
      %v2510 = vadd.f32 %v2508, %v2509
      %v2511 = vsel %vm230, %v2499, 0.0
      %v2512 = vadd.f32 %v2510, %v2511
      %v2513 = vsel %vm230, %v2500, 0.0
      %v2514 = vadd.f32 %v2512, %v2513
      %v2515 = vsel %vm230, %v2501, 0.0
      %v2516 = vadd.f32 %v2514, %v2515
      %v2517 = vrot.slane %v2516, 4
      %v2518 = vadd.f32 %v2516, %v2517
      %v2519 = vrot.slane %v2518, 2
      %v2520 = vadd.f32 %v2518, %v2519
      %v2521 = vrot.slane %v2520, 1
      %v2522 = vadd.f32 %v2520, %v2521
      %v2523 = vrcp.pop 64.0
      %v2524 = vmul.f32 %v2522, %v2523
      %v2525 = vld [vmem:[%s3 + $0x6] sm:$0x1]
      %v2526 = vld [vmem:[%s3 + $0x7] sm:$0x1]
      %v2527 = vsel %vm230, %v2524, 0.0
      %2528 = vadd.xlane.f32.xlu0 %v2527
      %v2529 = vpop.xlane.xlu0 %2528
      %v2530 = vmul.f32 %v2529, %v255
      %v2531 = vsub.f32 %v2524, %v2530
      %v2532 = vmul.f32 %v2531, %v2531
      %v2533 = vsel %vm230, %v2532, 0.0
      %2534 = vadd.xlane.f32.xlu0 %v2533
      %v2535 = vpop.xlane.xlu0 %2534
      %v2536 = vmul.f32 %v2535, %v255
      %v2537 = vadd.f32 %v2536, 1e-05
      %v2538 = vrsqrt.pop %v2537
      %v2539 = vmul.f32 %v2531, %v2538
      %v2540 = vmul.f32 %v2539, %v2525
      %v2541 = vadd.f32 %v2540, %v2526
      %v2542 = vld [vmem:[%s2 + $0x60] sm:$0xff]
      %v2543 = vld [vmem:[%s2 + $0x68] sm:$0xff]
      %v2544 = vld [vmem:[%s2 + $0x70] sm:$0xff]
      %v2545 = vld [vmem:[%s2 + $0x78] sm:$0xff]
      %v2547 = vsel %vm230, %v2541, 0
      %2549 = vmatprep.subr.mxu0 0.0
      %2550 = vmatpush1.msra.mxu0 %v2542
      %2551 = vmatprep.subr.mxu0 0.0
      %2552 = vmatpush1.msra.mxu0 %v2543
      %2553 = vmatprep.subr.mxu0 0.0
      %2554 = vmatpush1.msra.mxu0 %v2544
      %2555 = vmatprep.subr.mxu0 0.0
      %2556 = vmatpush1.msra.mxu0 %v2545
      %2557 = vmatprep.subr.mxu0 0.0
      %2558 = vmatpush1.msra.mxu0 0.0
      %2559 = vmatprep.subr.mxu0 0.0
      %2560 = vmatpush1.msra.mxu0 0.0
      %2561 = vmatprep.subr.mxu0 0.0
      %2562 = vmatpush1.msra.mxu0 0.0
      %2563 = vmatprep.subr.mxu0 0.0
      %2564 = vmatpush1.msra.mxu0 0.0
      %2565 = vmatprep.subr.mxu0 0.0
      %2566 = vmatpush1.msra.mxu0 0.0
      %2567 = vmatprep.subr.mxu0 0.0
      %2568 = vmatpush1.msra.mxu0 0.0
      %2569 = vmatprep.subr.mxu0 0.0
      %2570 = vmatpush1.msra.mxu0 0.0
      %2571 = vmatprep.subr.mxu0 0.0
      %2572 = vmatpush1.msra.mxu0 0.0
      %2573 = vmatprep.subr.mxu0 0.0
      %2574 = vmatpush1.msra.mxu0 0.0
      %2575 = vmatprep.subr.mxu0 0.0
      %2576 = vmatpush1.msra.mxu0 0.0
      %2577 = vmatprep.subr.mxu0 0.0
      %2578 = vmatpush1.msra.mxu0 0.0
      %2579 = vmatprep.subr.mxu0 0.0
      %2580 = vmatpush1.msra.mxu0 0.0
      %2581 = vmatprep.subr.mxu0 0.0
      %2582 = vmatpush1.msra.mxu0 0.0
      %2583 = vmatprep.subr.mxu0 0.0
      %2584 = vmatpush1.msra.mxu0 0.0
      %2585 = vmatprep.subr.mxu0 0.0
      %2586 = vmatpush1.msra.mxu0 0.0
      %2587 = vmatprep.subr.mxu0 0.0
      %2588 = vmatpush1.msra.mxu0 0.0
      %2589 = vmatprep.subr.mxu0 0.0
      %2590 = vmatpush1.msra.mxu0 0.0
      %2591 = vmatprep.subr.mxu0 0.0
      %2592 = vmatpush1.msra.mxu0 0.0
      %2593 = vmatprep.subr.mxu0 0.0
      %2594 = vmatpush1.msra.mxu0 0.0
      %2595 = vmatprep.subr.mxu0 0.0
      %2596 = vmatpush1.msra.mxu0 0.0
      %2597 = vmatprep.subr.mxu0 0.0
      %2598 = vmatpush1.msra.mxu0 0.0
      %2599 = vmatprep.subr.mxu0 0.0
      %2600 = vmatpush1.msra.mxu0 0.0
      %2601 = vmatprep.subr.mxu0 0.0
      %2602 = vmatpush1.msra.mxu0 0.0
      %2603 = vmatprep.subr.mxu0 0.0
      %2604 = vmatpush1.msra.mxu0 0.0
      %2605 = vmatprep.subr.mxu0 0.0
      %2606 = vmatpush1.msra.mxu0 0.0
      %2607 = vmatprep.subr.mxu0 0.0
      %2608 = vmatpush1.msra.mxu0 0.0
      %2609 = vmatprep.subr.mxu0 0.0
      %2610 = vmatpush1.msra.mxu0 0.0
      %2611 = vmatprep.subr.mxu0 0.0
      %2612 = vmatpush1.msra.mxu0 0.0
      %2613 = vmatprep.mubr.f32.mxu0 0.0
      %2614 = vmatmul.mubr.f32.gmra.mrb[0].mxu0 %v2547
      %v2615 = vpop.f32.mrb[0].mxu0
      %v2616 = vadd.f32 0.0, %v2615
      %v2617 = vpop.f32.mrb[0].mxu0
      %2618 = vdwg.mxu0
      %v2619 = vld [vmem:[%s3 + $0x8] sm:$0x1]
      %v2620 = vld [vmem:[%s3 + $0x9] sm:$0x1]
      %v2621 = vld [vmem:[%s2 + $0x80] sm:$0xff]
      %v2622 = vld [vmem:[%s2 + $0x88] sm:$0xff]
      %v2623 = vld [vmem:[%s2 + $0x90] sm:$0xff]
      %v2624 = vld [vmem:[%s2 + $0x98] sm:$0xff]
      %v2625 = vld [vmem:[%s3 + $0xa] sm:$0x1]
      %v2626 = vld [vmem:[%s2 + $0xa0] sm:$0xff]
      %v2627 = vld [vmem:[%s2 + $0xa8] sm:$0xff]
      %v2628 = vld [vmem:[%s2 + $0xb0] sm:$0xff]
      %v2629 = vld [vmem:[%s2 + $0xb8] sm:$0xff]
      %v2630 = vld [vmem:[%s3 + $0xb] sm:$0x1]
      %vm2631 = vcmask 253952
      %v2632 = vsel %vm2631, %v2616, 0.0
      %2633 = vadd.xlane.f32.xlu0 %v2632
      %v2634 = vpop.xlane.xlu0 %2633
      %v2635 = vmul.f32 %v2634, %v255
      %v2636 = vsub.f32 %v2616, %v2635
      %v2637 = vmul.f32 %v2636, %v2636
      %v2638 = vsel %vm2631, %v2637, 0.0
      %2639 = vadd.xlane.f32.xlu0 %v2638
      %v2640 = vpop.xlane.xlu0 %2639
      %v2641 = vmul.f32 %v2640, %v255
      %v2642 = vadd.f32 %v2641, 1e-06
      %v2643 = vrsqrt.pop %v2642
      %v2644 = vmul.f32 %v2636, %v2643
      %v2645 = vmul.f32 %v2644, %v2619
      %v2646 = vadd.f32 %v2645, %v2620
      %v2648 = vsel %vm230, %v2646, 0
      %2650 = vmatprep.subr.mxu0 0.0
      %2651 = vmatpush1.msra.mxu0 %v2621
      %2652 = vmatprep.subr.mxu0 0.0
      %2653 = vmatpush1.msra.mxu0 %v2622
      %2654 = vmatprep.subr.mxu0 0.0
      %2655 = vmatpush1.msra.mxu0 %v2623
      %2656 = vmatprep.subr.mxu0 0.0
      %2657 = vmatpush1.msra.mxu0 %v2624
      %2658 = vmatprep.subr.mxu0 0.0
      %2659 = vmatpush1.msra.mxu0 0.0
      %2660 = vmatprep.subr.mxu0 0.0
      %2661 = vmatpush1.msra.mxu0 0.0
      %2662 = vmatprep.subr.mxu0 0.0
      %2663 = vmatpush1.msra.mxu0 0.0
      %2664 = vmatprep.subr.mxu0 0.0
      %2665 = vmatpush1.msra.mxu0 0.0
      %2666 = vmatprep.subr.mxu0 0.0
      %2667 = vmatpush1.msra.mxu0 0.0
      %2668 = vmatprep.subr.mxu0 0.0
      %2669 = vmatpush1.msra.mxu0 0.0
      %2670 = vmatprep.subr.mxu0 0.0
      %2671 = vmatpush1.msra.mxu0 0.0
      %2672 = vmatprep.subr.mxu0 0.0
      %2673 = vmatpush1.msra.mxu0 0.0
      %2674 = vmatprep.subr.mxu0 0.0
      %2675 = vmatpush1.msra.mxu0 0.0
      %2676 = vmatprep.subr.mxu0 0.0
      %2677 = vmatpush1.msra.mxu0 0.0
      %2678 = vmatprep.subr.mxu0 0.0
      %2679 = vmatpush1.msra.mxu0 0.0
      %2680 = vmatprep.subr.mxu0 0.0
      %2681 = vmatpush1.msra.mxu0 0.0
      %2682 = vmatprep.subr.mxu0 0.0
      %2683 = vmatpush1.msra.mxu0 0.0
      %2684 = vmatprep.subr.mxu0 0.0
      %2685 = vmatpush1.msra.mxu0 0.0
      %2686 = vmatprep.subr.mxu0 0.0
      %2687 = vmatpush1.msra.mxu0 0.0
      %2688 = vmatprep.subr.mxu0 0.0
      %2689 = vmatpush1.msra.mxu0 0.0
      %2690 = vmatprep.subr.mxu0 0.0
      %2691 = vmatpush1.msra.mxu0 0.0
      %2692 = vmatprep.subr.mxu0 0.0
      %2693 = vmatpush1.msra.mxu0 0.0
      %2694 = vmatprep.subr.mxu0 0.0
      %2695 = vmatpush1.msra.mxu0 0.0
      %2696 = vmatprep.subr.mxu0 0.0
      %2697 = vmatpush1.msra.mxu0 0.0
      %2698 = vmatprep.subr.mxu0 0.0
      %2699 = vmatpush1.msra.mxu0 0.0
      %2700 = vmatprep.subr.mxu0 0.0
      %2701 = vmatpush1.msra.mxu0 0.0
      %2702 = vmatprep.subr.mxu0 0.0
      %2703 = vmatpush1.msra.mxu0 0.0
      %2704 = vmatprep.subr.mxu0 0.0
      %2705 = vmatpush1.msra.mxu0 0.0
      %2706 = vmatprep.subr.mxu0 0.0
      %2707 = vmatpush1.msra.mxu0 0.0
      %2708 = vmatprep.subr.mxu0 0.0
      %2709 = vmatpush1.msra.mxu0 0.0
      %2710 = vmatprep.subr.mxu0 0.0
      %2711 = vmatpush1.msra.mxu0 0.0
      %2712 = vmatprep.subr.mxu0 0.0
      %2713 = vmatpush1.msra.mxu0 0.0
      %2714 = vmatprep.mubr.f32.mxu0 0.0
      %2715 = vmatmul.mubr.f32.gmra.mrb[0].mxu0 %v2648
      %v2716 = vpop.f32.mrb[0].mxu0
      %v2717 = vadd.f32 %v2625, %v2716
      %v2718 = vpop.f32.mrb[0].mxu0
      %2719 = vdwg.mxu0
      %v2720 = vmax.f32 %v2717, 0.0
      %v2722 = vsel %vm230, %v2720, 0
      %2724 = vmatprep.subr.mxu0 0.0
      %2725 = vmatpush1.msra.mxu0 %v2626
      %2726 = vmatprep.subr.mxu0 0.0
      %2727 = vmatpush1.msra.mxu0 %v2627
      %2728 = vmatprep.subr.mxu0 0.0
      %2729 = vmatpush1.msra.mxu0 %v2628
      %2730 = vmatprep.subr.mxu0 0.0
      %2731 = vmatpush1.msra.mxu0 %v2629
      %2732 = vmatprep.subr.mxu0 0.0
      %2733 = vmatpush1.msra.mxu0 0.0
      %2734 = vmatprep.subr.mxu0 0.0
      %2735 = vmatpush1.msra.mxu0 0.0
      %2736 = vmatprep.subr.mxu0 0.0
      %2737 = vmatpush1.msra.mxu0 0.0
      %2738 = vmatprep.subr.mxu0 0.0
      %2739 = vmatpush1.msra.mxu0 0.0
      %2740 = vmatprep.subr.mxu0 0.0
      %2741 = vmatpush1.msra.mxu0 0.0
      %2742 = vmatprep.subr.mxu0 0.0
      %2743 = vmatpush1.msra.mxu0 0.0
      %2744 = vmatprep.subr.mxu0 0.0
      %2745 = vmatpush1.msra.mxu0 0.0
      %2746 = vmatprep.subr.mxu0 0.0
      %2747 = vmatpush1.msra.mxu0 0.0
      %2748 = vmatprep.subr.mxu0 0.0
      %2749 = vmatpush1.msra.mxu0 0.0
      %2750 = vmatprep.subr.mxu0 0.0
      %2751 = vmatpush1.msra.mxu0 0.0
      %2752 = vmatprep.subr.mxu0 0.0
      %2753 = vmatpush1.msra.mxu0 0.0
      %2754 = vmatprep.subr.mxu0 0.0
      %2755 = vmatpush1.msra.mxu0 0.0
      %2756 = vmatprep.subr.mxu0 0.0
      %2757 = vmatpush1.msra.mxu0 0.0
      %2758 = vmatprep.subr.mxu0 0.0
      %2759 = vmatpush1.msra.mxu0 0.0
      %2760 = vmatprep.subr.mxu0 0.0
      %2761 = vmatpush1.msra.mxu0 0.0
      %2762 = vmatprep.subr.mxu0 0.0
      %2763 = vmatpush1.msra.mxu0 0.0
      %2764 = vmatprep.subr.mxu0 0.0
      %2765 = vmatpush1.msra.mxu0 0.0
      %2766 = vmatprep.subr.mxu0 0.0
      %2767 = vmatpush1.msra.mxu0 0.0
      %2768 = vmatprep.subr.mxu0 0.0
      %2769 = vmatpush1.msra.mxu0 0.0
      %2770 = vmatprep.subr.mxu0 0.0
      %2771 = vmatpush1.msra.mxu0 0.0
      %2772 = vmatprep.subr.mxu0 0.0
      %2773 = vmatpush1.msra.mxu0 0.0
      %2774 = vmatprep.subr.mxu0 0.0
      %2775 = vmatpush1.msra.mxu0 0.0
      %2776 = vmatprep.subr.mxu0 0.0
      %2777 = vmatpush1.msra.mxu0 0.0
      %2778 = vmatprep.subr.mxu0 0.0
      %2779 = vmatpush1.msra.mxu0 0.0
      %2780 = vmatprep.subr.mxu0 0.0
      %2781 = vmatpush1.msra.mxu0 0.0
      %2782 = vmatprep.subr.mxu0 0.0
      %2783 = vmatpush1.msra.mxu0 0.0
      %2784 = vmatprep.subr.mxu0 0.0
      %2785 = vmatpush1.msra.mxu0 0.0
      %2786 = vmatprep.subr.mxu0 0.0
      %2787 = vmatpush1.msra.mxu0 0.0
      %2788 = vmatprep.mubr.f32.mxu0 0.0
      %2789 = vmatmul.mubr.f32.gmra.mrb[0].mxu0 %v2722
      %v2790 = vpop.f32.mrb[0].mxu0
      %v2791 = vadd.f32 %v2630, %v2790
      %v2792 = vpop.f32.mrb[0].mxu0
      %2793 = vdwg.mxu0
      %v2794 = vadd.f32 %v2791, %v2616
      %v2795 = vld [vmem:[%s2 + $0xc0] sm:$0xff]
      %v2796 = vld [vmem:[%s2 + $0xc8] sm:$0xff]
      %v2797 = vld [vmem:[%s2 + $0xd0] sm:$0xff]
      %v2798 = vld [vmem:[%s2 + $0xd8] sm:$0xff]
      %v2799 = vld [vmem:[%s2 + $0xe0] sm:$0xff]
      %v2800 = vld [vmem:[%s2 + $0xe8] sm:$0xff]
      %v2801 = vld [vmem:[%s2 + $0xf0] sm:$0xff]
      %v2802 = vld [vmem:[%s2 + $0xf8] sm:$0xff]
      %v2804 = vsel %vm230, %v2794, 0
      %2806 = vmatprep.subr.mxu0 0.0
      %2807 = vmatpush1.msra.mxu0 %v2799
      %2808 = vmatprep.subr.mxu0 0.0
      %2809 = vmatpush1.msra.mxu0 %v2800
      %2810 = vmatprep.subr.mxu0 0.0
      %2811 = vmatpush1.msra.mxu0 %v2801
      %2812 = vmatprep.subr.mxu0 0.0
      %2813 = vmatpush1.msra.mxu0 %v2802
      %2814 = vmatprep.subr.mxu0 0.0
      %2815 = vmatpush1.msra.mxu0 0.0
      %2816 = vmatprep.subr.mxu0 0.0
      %2817 = vmatpush1.msra.mxu0 0.0
      %2818 = vmatprep.subr.mxu0 0.0
      %2819 = vmatpush1.msra.mxu0 0.0
      %2820 = vmatprep.subr.mxu0 0.0
      %2821 = vmatpush1.msra.mxu0 0.0
      %2822 = vmatprep.subr.mxu0 0.0
      %2823 = vmatpush1.msra.mxu0 0.0
      %2824 = vmatprep.subr.mxu0 0.0
      %2825 = vmatpush1.msra.mxu0 0.0
      %2826 = vmatprep.subr.mxu0 0.0
      %2827 = vmatpush1.msra.mxu0 0.0
      %2828 = vmatprep.subr.mxu0 0.0
      %2829 = vmatpush1.msra.mxu0 0.0
      %2830 = vmatprep.subr.mxu0 0.0
      %2831 = vmatpush1.msra.mxu0 0.0
      %2832 = vmatprep.subr.mxu0 0.0
      %2833 = vmatpush1.msra.mxu0 0.0
      %2834 = vmatprep.subr.mxu0 0.0
      %2835 = vmatpush1.msra.mxu0 0.0
      %2836 = vmatprep.subr.mxu0 0.0
      %2837 = vmatpush1.msra.mxu0 0.0
      %2838 = vmatprep.subr.mxu0 0.0
      %2839 = vmatpush1.msra.mxu0 0.0
      %2840 = vmatprep.subr.mxu0 0.0
      %2841 = vmatpush1.msra.mxu0 0.0
      %2842 = vmatprep.subr.mxu0 0.0
      %2843 = vmatpush1.msra.mxu0 0.0
      %2844 = vmatprep.subr.mxu0 0.0
      %2845 = vmatpush1.msra.mxu0 0.0
      %2846 = vmatprep.subr.mxu0 0.0
      %2847 = vmatpush1.msra.mxu0 0.0
      %2848 = vmatprep.subr.mxu0 0.0
      %2849 = vmatpush1.msra.mxu0 0.0
      %2850 = vmatprep.subr.mxu0 0.0
      %2851 = vmatpush1.msra.mxu0 0.0
      %2852 = vmatprep.subr.mxu0 0.0
      %2853 = vmatpush1.msra.mxu0 0.0
      %2854 = vmatprep.subr.mxu0 0.0
      %2855 = vmatpush1.msra.mxu0 0.0
      %2856 = vmatprep.subr.mxu0 0.0
      %2857 = vmatpush1.msra.mxu0 0.0
      %2858 = vmatprep.subr.mxu0 0.0
      %2859 = vmatpush1.msra.mxu0 0.0
      %2860 = vmatprep.subr.mxu0 0.0
      %2861 = vmatpush1.msra.mxu0 0.0
      %2862 = vmatprep.subr.mxu0 0.0
      %2863 = vmatpush1.msra.mxu0 0.0
      %2864 = vmatprep.subr.mxu0 0.0
      %2865 = vmatpush1.msra.mxu0 0.0
      %2866 = vmatprep.subr.mxu0 0.0
      %2867 = vmatpush1.msra.mxu0 0.0
      %2868 = vmatprep.subr.mxu0 0.0
      %2869 = vmatpush1.msra.mxu0 0.0
      %2870 = vmatprep.mubr.f32.mxu0 0.0
      %2871 = vmatmul.mubr.f32.gmra.mrb[0].mxu0 %v2804
      %v2872 = vpop.f32.mrb[0].mxu0
      %v2873 = vadd.f32 0.0, %v2872
      %v2874 = vpop.f32.mrb[0].mxu0
      %2875 = vdwg.mxu0
      %v2876 = vlaneseq
      %v2877 = vshrl.u32 %v2876, 7
      %v2878 = vsub.s32 0, %v2877
      %v2879 = vrot.slane %v2873, %v2878
      %v2881 = vsel %vm230, %v2494, 0
      %v2884 = vsel %vm230, %v2495, 0
      %v2887 = vsel %vm230, %v2496, 0
      %v2890 = vsel %vm230, %v2497, 0
      %v2893 = vsel %vm230, %v2498, 0
      %v2896 = vsel %vm230, %v2499, 0
      %v2899 = vsel %vm230, %v2500, 0
      %v2902 = vsel %vm230, %v2501, 0
      %2904 = vmatprep.subr.mxu0 0.0
      %2905 = vmatpush1.msra.mxu0 %v2795
      %2906 = vmatprep.subr.mxu0 0.0
      %2907 = vmatpush1.msra.mxu0 %v2796
      %2908 = vmatprep.subr.mxu0 0.0
      %2909 = vmatpush1.msra.mxu0 %v2797
      %2910 = vmatprep.subr.mxu0 0.0
      %2911 = vmatpush1.msra.mxu0 %v2798
      %2912 = vmatprep.subr.mxu0 0.0
      %2913 = vmatpush1.msra.mxu0 0.0
      %2914 = vmatprep.subr.mxu0 0.0
      %2915 = vmatpush1.msra.mxu0 0.0
      %2916 = vmatprep.subr.mxu0 0.0
      %2917 = vmatpush1.msra.mxu0 0.0
      %2918 = vmatprep.subr.mxu0 0.0
      %2919 = vmatpush1.msra.mxu0 0.0
      %2920 = vmatprep.subr.mxu0 0.0
      %2921 = vmatpush1.msra.mxu0 0.0
      %2922 = vmatprep.subr.mxu0 0.0
      %2923 = vmatpush1.msra.mxu0 0.0
      %2924 = vmatprep.subr.mxu0 0.0
      %2925 = vmatpush1.msra.mxu0 0.0
      %2926 = vmatprep.subr.mxu0 0.0
      %2927 = vmatpush1.msra.mxu0 0.0
      %2928 = vmatprep.subr.mxu0 0.0
      %2929 = vmatpush1.msra.mxu0 0.0
      %2930 = vmatprep.subr.mxu0 0.0
      %2931 = vmatpush1.msra.mxu0 0.0
      %2932 = vmatprep.subr.mxu0 0.0
      %2933 = vmatpush1.msra.mxu0 0.0
      %2934 = vmatprep.subr.mxu0 0.0
      %2935 = vmatpush1.msra.mxu0 0.0
      %2936 = vmatprep.subr.mxu0 0.0
      %2937 = vmatpush1.msra.mxu0 0.0
      %2938 = vmatprep.subr.mxu0 0.0
      %2939 = vmatpush1.msra.mxu0 0.0
      %2940 = vmatprep.subr.mxu0 0.0
      %2941 = vmatpush1.msra.mxu0 0.0
      %2942 = vmatprep.subr.mxu0 0.0
      %2943 = vmatpush1.msra.mxu0 0.0
      %2944 = vmatprep.subr.mxu0 0.0
      %2945 = vmatpush1.msra.mxu0 0.0
      %2946 = vmatprep.subr.mxu0 0.0
      %2947 = vmatpush1.msra.mxu0 0.0
      %2948 = vmatprep.subr.mxu0 0.0
      %2949 = vmatpush1.msra.mxu0 0.0
      %2950 = vmatprep.subr.mxu0 0.0
      %2951 = vmatpush1.msra.mxu0 0.0
      %2952 = vmatprep.subr.mxu0 0.0
      %2953 = vmatpush1.msra.mxu0 0.0
      %2954 = vmatprep.subr.mxu0 0.0
      %2955 = vmatpush1.msra.mxu0 0.0
      %2956 = vmatprep.subr.mxu0 0.0
      %2957 = vmatpush1.msra.mxu0 0.0
      %2958 = vmatprep.subr.mxu0 0.0
      %2959 = vmatpush1.msra.mxu0 0.0
      %2960 = vmatprep.subr.mxu0 0.0
      %2961 = vmatpush1.msra.mxu0 0.0
      %2962 = vmatprep.subr.mxu0 0.0
      %2963 = vmatpush1.msra.mxu0 0.0
      %2964 = vmatprep.subr.mxu0 0.0
      %2965 = vmatpush1.msra.mxu0 0.0
      %2966 = vmatprep.subr.mxu0 0.0
      %2967 = vmatpush1.msra.mxu0 0.0
      %2968 = vmatprep.mubr.f32.mxu0 0.0
      %2969 = vmatmul.mubr.f32.gmra.mrb[0].mxu0 %v2881
      %v2970 = vpop.f32.mrb[0].mxu0
      %v2971 = vadd.f32 %v2879, %v2970
      %v2972 = vpop.f32.mrb[0].mxu0
      %2973 = vmatprep.mubr.f32.mxu0 0.0
      %2974 = vmatmul.mubr.f32.gmra.mrb[0].mxu0 %v2884
      %v2975 = vpop.f32.mrb[0].mxu0
      %v2976 = vadd.f32 %v2879, %v2975
      %v2977 = vpop.f32.mrb[0].mxu0
      %2978 = vmatprep.mubr.f32.mxu0 0.0
      %2979 = vmatmul.mubr.f32.gmra.mrb[0].mxu0 %v2887
      %v2980 = vpop.f32.mrb[0].mxu0
      %v2981 = vadd.f32 %v2879, %v2980
      %v2982 = vpop.f32.mrb[0].mxu0
      %2983 = vmatprep.mubr.f32.mxu0 0.0
      %2984 = vmatmul.mubr.f32.gmra.mrb[0].mxu0 %v2890
      %v2985 = vpop.f32.mrb[0].mxu0
      %v2986 = vadd.f32 %v2879, %v2985
      %v2987 = vpop.f32.mrb[0].mxu0
      %2988 = vmatprep.mubr.f32.mxu0 0.0
      %2989 = vmatmul.mubr.f32.gmra.mrb[0].mxu0 %v2893
      %v2990 = vpop.f32.mrb[0].mxu0
      %v2991 = vadd.f32 %v2879, %v2990
      %v2992 = vpop.f32.mrb[0].mxu0
      %2993 = vmatprep.mubr.f32.mxu0 0.0
      %2994 = vmatmul.mubr.f32.gmra.mrb[0].mxu0 %v2896
      %v2995 = vpop.f32.mrb[0].mxu0
      %v2996 = vadd.f32 %v2879, %v2995
      %v2997 = vpop.f32.mrb[0].mxu0
      %2998 = vmatprep.mubr.f32.mxu0 0.0
      %2999 = vmatmul.mubr.f32.gmra.mrb[0].mxu0 %v2899
      %v3000 = vpop.f32.mrb[0].mxu0
      %v3001 = vadd.f32 %v2879, %v3000
      %v3002 = vpop.f32.mrb[0].mxu0
      %3003 = vmatprep.mubr.f32.mxu0 0.0
      %3004 = vmatmul.mubr.f32.gmra.mrb[0].mxu0 %v2902
      %v3005 = vpop.f32.mrb[0].mxu0
      %v3006 = vadd.f32 %v2879, %v3005
      %v3007 = vpop.f32.mrb[0].mxu0
      %3008 = vdwg.mxu0
      %v3009 = vld [vmem:[%s3 + $0xc] sm:$0x1]
      %v3010 = vlaneseq
      %v3011 = vshrl.u32 %v3010, 7
      %v3012 = vsub.s32 0, %v3011
      %v3013 = vrot.slane %v3009, %v3012
      %v3014 = vadd.f32 %v2971, %v3013
      %v3015 = vadd.f32 %v2976, %v3013
      %v3016 = vadd.f32 %v2981, %v3013
      %v3017 = vadd.f32 %v2986, %v3013
      %v3018 = vadd.f32 %v2991, %v3013
      %v3019 = vadd.f32 %v2996, %v3013
      %v3020 = vadd.f32 %v3001, %v3013
      %v3021 = vadd.f32 %v3006, %v3013
      %v3022 = vmax.f32 %v3014, 0.0
      %v3023 = vmax.f32 %v3015, 0.0
      %v3024 = vmax.f32 %v3016, 0.0
      %v3025 = vmax.f32 %v3017, 0.0
      %v3026 = vmax.f32 %v3018, 0.0
      %v3027 = vmax.f32 %v3019, 0.0
      %v3028 = vmax.f32 %v3020, 0.0
      %v3029 = vmax.f32 %v3021, 0.0
      %v3030 = vadd.f32 %v3022, %v2494
      %v3031 = vadd.f32 %v3023, %v2495
      %v3032 = vadd.f32 %v3024, %v2496
      %v3033 = vadd.f32 %v3025, %v2497
      %v3034 = vadd.f32 %v3026, %v2498
      %v3035 = vadd.f32 %v3027, %v2499
      %v3036 = vadd.f32 %v3028, %v2500
      %v3037 = vadd.f32 %v3029, %v2501
      %3038 = vst.msk [vmem:[%s197] sm:$0xff] %vm230, %v3030
      %3039 = vst.msk [vmem:[%s197 + $0x8] sm:$0xff] %vm230, %v3031
      %3040 = vst.msk [vmem:[%s197 + $0x10] sm:$0xff] %vm230, %v3032
      %3041 = vst.msk [vmem:[%s197 + $0x18] sm:$0xff] %vm230, %v3033
      %3042 = vst.msk [vmem:[%s197 + $0x20] sm:$0xff] %vm230, %v3034
      %3043 = vst.msk [vmem:[%s197 + $0x28] sm:$0xff] %vm230, %v3035
      %3044 = vst.msk [vmem:[%s197 + $0x30] sm:$0xff] %vm230, %v3036
      %3045 = vst.msk [vmem:[%s197 + $0x38] sm:$0xff] %vm230, %v3037
      %p3046 = scmp.lt.s32.totalorder %s15, 3
      %s3047 = scalar_select %p3046, %s15, 3
      %s3048 = smul.addr %s3047, 8
      %s3049 = smul.addr %s3048, 8
      %s3050 = scalar_lea.vmem %s4, %s3049
      // Predicated region
      $region37: #{tpu_custom_call.1} parent=35 // pred_check
        %p3051 = pneg %p122
      $region38: #{tpu_custom_call.1} parent=35 // pred_check_branch
        %3053 = sbr.rel (%p3051) target = $region40
      $region39: #{tpu_custom_call.1} parent=35 // pred_region
        _
      $region40: #{tpu_custom_call.1} parent=35 // pred_fallthru
        _
    $region36: #{tpu_custom_call.1} parent=5 // pred_fallthru
      _
    %p3054 = scmp.le.s32.totalorder 2, %s10
    // Predicated region
    $region41: #{tpu_custom_call.1} parent=5 // pred_check
      %p3055 = pneg %p3054
    $region42: #{tpu_custom_call.1} parent=5 // pred_check_branch
      %3057 = sbr.rel (%p3055) target = $region44
    $region43: #{tpu_custom_call.1} parent=5 // pred_region
      %s3058 = ssub.s32 %s10, 2
      // Predicated region
      $region45: #{tpu_custom_call.1} parent=43 // pred_check
        %p3059 = pneg %p128
      $region46: #{tpu_custom_call.1} parent=43 // pred_check_branch
        %3061 = sbr.rel (%p3059) target = $region48
      $region47: #{tpu_custom_call.1} parent=43 // pred_region
        %p3062 = scmp.lt.s32.totalorder %s16, 3
        %s3063 = scalar_select %p3062, %s16, 3
        %s3064 = smul.addr %s3063, 8
        %s3065 = smul.addr %s3064, 8
        %s3066 = scalar_lea.vmem %s4, %s3065
      $region48: #{tpu_custom_call.1} parent=43 // pred_fallthru
        _
    $region44: #{tpu_custom_call.1} parent=5 // pred_fallthru
      _
  $region6: #{tpu_custom_call.1} parent=0 // loop_footer
    %s14 = sadd.s32 1, %s10
  $region7: #{tpu_custom_call.1} parent=0 // loop_footer_branch
    %9 = sbr.rel target = $region3
  $region8: #{tpu_custom_call.1} parent=0 // loop_exit
    _

</llo_original>
